<compile_context>
chip_gen: v6e
topology: v6e:2x2x1
jax: 0.10.0
libtpu: 0.0.40
codegen_flags: <defaults>
</compile_context>

<pallas_src>
import functools

import jax
import jax.numpy as jnp
from jax.experimental import pallas as pl
from jax.experimental.pallas import tpu as pltpu


# ----------------------------------------------------------------------------
# Fused kernel: one batch-block (default: the whole batch) per grid step
# ----------------------------------------------------------------------------
def mha_fused_kernel(x_ref, gamma_ref, beta_ref, wqkv_ref, wproj_ref, out_ref,
                     o_slab_ref, *, batch_block, seq_len, num_heads, head_dim,
                     scale, mxu_dtype):
    attn_dim = num_heads * head_dim

    x = x_ref[...]                                  # (Mblk, C) float32, Mblk = batch_block*N

    # ---- LayerNorm (eps=1e-6, biased variance, affine) -- f32 VPU/EUP math ----
    mean = jnp.mean(x, axis=-1, keepdims=True)
    var = jnp.mean(jnp.square(x - mean), axis=-1, keepdims=True)
    xn = (x - mean) * jax.lax.rsqrt(var + 1e-6)
    xn = xn * gamma_ref[...] + beta_ref[...]        # broadcast (1, C), hoisted (no loop)

    # ---- QKV projection: ONE sublane-dense MXU matmul for the whole block ----
    # TODO(synk): qkv_bias=False in the module default, so no bias add here.
    qkv = jnp.dot(xn.astype(mxu_dtype), wqkv_ref[...],
                  preferred_element_type=jnp.float32)        # (Mblk, 3*attn_dim) f32
    q = qkv[:, :attn_dim] * scale                   # softmax scale applied once to q
    k = qkv[:, attn_dim:2 * attn_dim]
    v = qkv[:, 2 * attn_dim:]

    # ---- Per-batch, per-head attention; heads write into the o-slab scratch ----
    dn = (((1,), (1,)), ((), ()))                   # contract head_dim; no transpose
    for b in range(batch_block):                    # small fixed trip counts: unrolled
        r0 = b * seq_len
        for h in range(num_heads):
            lo = h * head_dim
            hi = lo + head_dim
            q_h = q[r0:r0 + seq_len, lo:hi].astype(mxu_dtype)   # static in-VMEM slices
            k_h = k[r0:r0 + seq_len, lo:hi].astype(mxu_dtype)
            v_h = v[r0:r0 + seq_len, lo:hi].astype(mxu_dtype)
            logits = jax.lax.dot_general(q_h, k_h, dimension_numbers=dn,
                                         preferred_element_type=jnp.float32)  # (N, N)
            logits = logits - jnp.max(logits, axis=-1, keepdims=True)         # stable softmax
            e = jnp.exp(logits)                                                # EUP
            p = e * pl.reciprocal(jnp.sum(e, axis=-1, keepdims=True), approx=True)
            # TODO(synk): attn_drop / proj_drop ratios are 0.0 (inference) -> identity.
            o_h = jnp.dot(p.astype(mxu_dtype), v_h,
                          preferred_element_type=jnp.float32)                  # (N, d)
            o_slab_ref[r0:r0 + seq_len, lo:hi] = o_h

    # ---- Output projection: ONE K=attn_dim matmul for the whole block ----
    out_ref[...] = jnp.dot(o_slab_ref[...].astype(mxu_dtype), wproj_ref[...],
                           preferred_element_type=jnp.float32)   # (Mblk, C), lane/sublane-dense store


# ----------------------------------------------------------------------------
# Wrapper: whole MultiHeadAttention forward
# ----------------------------------------------------------------------------
def multi_head_attention(x_bchw, params, *, num_heads, batch_block=None,
                         mxu_dtype=jnp.bfloat16):
    B, C, H, W = x_bchw.shape
    N = H * W
    gamma, beta, w_qkv_t, w_proj_t = params
    attn_dim3 = w_qkv_t.shape[1]
    attn_dim = attn_dim3 // 3
    head_dim = attn_dim // num_heads
    scale = head_dim ** (-0.5)

    if batch_block is None:
        batch_block = B                              # whole batch in one grid step
    assert B % batch_block == 0
    num_blocks = B // batch_block
    m_blk = batch_block * N

    # BCHW -> (B*N, C): channels on the TPU lane axis, tokens stacked on sublanes.
    x_flat = jnp.transpose(x_bchw.reshape(B, C, N), (0, 2, 1)).reshape(B * N, C)

    # Weights as bf16 MXU operands (halves weight DMA / VMEM footprint).
    w_qkv_mxu = w_qkv_t.astype(mxu_dtype)
    w_proj_mxu = w_proj_t.astype(mxu_dtype)

    kernel = functools.partial(mha_fused_kernel, batch_block=batch_block,
                               seq_len=N, num_heads=num_heads, head_dim=head_dim,
                               scale=scale, mxu_dtype=mxu_dtype)

    out_flat = pl.pallas_call(
        kernel,
        out_shape=jax.ShapeDtypeStruct((B * N, C), jnp.float32),
        grid=(num_blocks,),
        in_specs=[
            pl.BlockSpec((m_blk, C), lambda i: (i, 0)),          # x slab (per block)
            pl.BlockSpec((1, C), lambda i: (0, 0)),              # gamma
            pl.BlockSpec((1, C), lambda i: (0, 0)),              # beta
            pl.BlockSpec((C, attn_dim3), lambda i: (0, 0)),      # W_qkv^T (bf16)
            pl.BlockSpec((attn_dim, C), lambda i: (0, 0)),       # W_proj^T (bf16)
        ],
        out_specs=pl.BlockSpec((m_blk, C), lambda i: (i, 0)),
        scratch_shapes=[pltpu.VMEM((m_blk, attn_dim), jnp.float32)],  # o-slab
        compiler_params=pltpu.CompilerParams(
            dimension_semantics=("parallel",)),
    )(x_flat, gamma, beta, w_qkv_mxu, w_proj_mxu)

    return out_flat.reshape(B, N, C)                 # out_format='BNC'


# ----------------------------------------------------------------------------
# Pure-JAX f32 reference (for correctness check)
# ----------------------------------------------------------------------------
def reference(x_bchw, params, *, num_heads):
    B, C, H, W = x_bchw.shape
    N = H * W
    gamma, beta, w_qkv_t, w_proj_t = params
    attn_dim = w_qkv_t.shape[1] // 3
    head_dim = attn_dim // num_heads
    scale = head_dim ** (-0.5)

    x = jnp.transpose(x_bchw.reshape(B, C, N), (0, 2, 1))
    mean = jnp.mean(x, axis=-1, keepdims=True)
    var = jnp.mean((x - mean) ** 2, axis=-1, keepdims=True)
    xn = (x - mean) / jnp.sqrt(var + 1e-6) * gamma[0] + beta[0]
    qkv = xn @ w_qkv_t
    qkv = qkv.reshape(B, N, 3, num_heads, head_dim).transpose(2, 0, 3, 1, 4)
    q, k, v = qkv[0], qkv[1], qkv[2]
    dots = jnp.einsum("bhqd,bhkd->bhqk", q, k) * scale
    attn = jax.nn.softmax(dots, axis=-1)
    o = jnp.einsum("bhqk,bhkd->bhqd", attn, v)
    o = o.transpose(0, 2, 1, 3).reshape(B, N, attn_dim)
    return o @ w_proj_t


if __name__ == "__main__":
    # Module config: dim=32, num_heads=8 -> head_dim=4, attn_dim=32, qkv_bias=False.
    B, C, H, W = 2, 32, 4, 4
    num_heads = 8
    attn_dim = C  # head_dim * num_heads

    key = jax.random.PRNGKey(0)
    k_x, k_qkv, k_proj = jax.random.split(key, 3)

    x = jax.random.normal(k_x, (B, C, H, W), dtype=jnp.float32)

    # Deterministic parameter init (PyTorch Linear stores (out, in); we pass W^T).
    gamma = jnp.ones((1, C), dtype=jnp.float32)
    beta = jnp.zeros((1, C), dtype=jnp.float32)
    w_qkv_t = 0.02 * jax.random.normal(k_qkv, (C, 3 * attn_dim), dtype=jnp.float32)
    w_proj_t = 0.02 * jax.random.normal(k_proj, (attn_dim, C), dtype=jnp.float32)
    params = (gamma, beta, w_qkv_t, w_proj_t)

    out = multi_head_attention(x, params, num_heads=num_heads)
    out = jax.block_until_ready(out)

    ref = reference(x, params, num_heads=num_heads)
    assert out.shape == (B, H * W, C)
    # Tolerance loosened for bf16 MXU inputs + approx (EUP) reciprocal.
    assert jnp.allclose(out, ref, atol=2e-3, rtol=2e-2), "mismatch vs reference"

    print("KERNEL_OK")
</pallas_src>

<mosaic_0001>
module attributes {stable_mosaic.version = 11 : i64} {
  func.func @mha_fused_kernel(%arg0: i32, %arg1: memref<32x32xf32, #tpu.memory_space<vmem>>, %arg2: memref<1x32xf32, #tpu.memory_space<vmem>>, %arg3: memref<1x32xf32, #tpu.memory_space<vmem>>, %arg4: memref<32x96xbf16, #tpu.memory_space<vmem>>, %arg5: memref<32x32xbf16, #tpu.memory_space<vmem>>, %arg6: memref<32x32xf32, #tpu.memory_space<vmem>>, %arg7: memref<32x32xf32, #tpu.memory_space<vmem>>) attributes {dimension_semantics = [#tpu.dimension_semantics<parallel>], iteration_bounds = array<i64: 1>, scalar_prefetch = 0 : i64, scratch_operands = 1 : i64, tpu.core_type = #tpu.core_type<tc>, window_params = [{transform_indices = @transform_0, window_bounds = array<i64: 32, 32>}, {pipeline_mode = #tpu.pipeline_mode<synchronous>, transform_indices = @transform_1, window_bounds = array<i64: 1, 32>}, {pipeline_mode = #tpu.pipeline_mode<synchronous>, transform_indices = @transform_2, window_bounds = array<i64: 1, 32>}, {pipeline_mode = #tpu.pipeline_mode<synchronous>, transform_indices = @transform_3, window_bounds = array<i64: 32, 96>}, {pipeline_mode = #tpu.pipeline_mode<synchronous>, transform_indices = @transform_4, window_bounds = array<i64: 32, 32>}, {transform_indices = @transform_5, window_bounds = array<i64: 32, 32>}]} {
    %c0 = arith.constant 0 : index
    %c0_0 = arith.constant 0 : index
    %0 = vector.load %arg1[%c0, %c0_0] : memref<32x32xf32, #tpu.memory_space<vmem>>, vector<32x32xf32>
    %cst = arith.constant dense<0.000000e+00> : vector<32xf32>
    %1 = vector.multi_reduction <add>, %0, %cst [1] : vector<32x32xf32> to vector<32xf32>
    %2 = vector.shape_cast %1 : vector<32xf32> to vector<32x1xf32>
    %cst_1 = arith.constant 3.200000e+01 : f32
    %3 = vector.broadcast %cst_1 : f32 to vector<32x1xf32>
    %4 = arith.divf %2, %3 : vector<32x1xf32>
    %5 = vector.broadcast %4 : vector<32x1xf32> to vector<32x32xf32>
    %6 = arith.subf %0, %5 : vector<32x32xf32>
    %7 = arith.mulf %6, %6 : vector<32x32xf32>
    %cst_2 = arith.constant dense<0.000000e+00> : vector<32xf32>
    %8 = vector.multi_reduction <add>, %7, %cst_2 [1] : vector<32x32xf32> to vector<32xf32>
    %9 = vector.shape_cast %8 : vector<32xf32> to vector<32x1xf32>
    %cst_3 = arith.constant 3.200000e+01 : f32
    %10 = vector.broadcast %cst_3 : f32 to vector<32x1xf32>
    %11 = arith.divf %9, %10 : vector<32x1xf32>
    %12 = vector.broadcast %4 : vector<32x1xf32> to vector<32x32xf32>
    %13 = arith.subf %0, %12 : vector<32x32xf32>
    %cst_4 = arith.constant 9.99999997E-7 : f32
    %14 = vector.broadcast %cst_4 : f32 to vector<32x1xf32>
    %15 = arith.addf %11, %14 : vector<32x1xf32>
    %16 = math.rsqrt %15 : vector<32x1xf32>
    %17 = vector.broadcast %16 : vector<32x1xf32> to vector<32x32xf32>
    %18 = arith.mulf %13, %17 : vector<32x32xf32>
    %c0_5 = arith.constant 0 : index
    %c0_6 = arith.constant 0 : index
    %19 = vector.load %arg2[%c0_5, %c0_6] : memref<1x32xf32, #tpu.memory_space<vmem>>, vector<1x32xf32>
    %20 = vector.broadcast %19 : vector<1x32xf32> to vector<32x32xf32>
    %21 = arith.mulf %18, %20 : vector<32x32xf32>
    %c0_7 = arith.constant 0 : index
    %c0_8 = arith.constant 0 : index
    %22 = vector.load %arg3[%c0_7, %c0_8] : memref<1x32xf32, #tpu.memory_space<vmem>>, vector<1x32xf32>
    %23 = vector.broadcast %22 : vector<1x32xf32> to vector<32x32xf32>
    %24 = arith.addf %21, %23 : vector<32x32xf32>
    %25 = arith.truncf %24 : vector<32x32xf32> to vector<32x32xbf16>
    %c0_9 = arith.constant 0 : index
    %c0_10 = arith.constant 0 : index
    %26 = vector.load %arg4[%c0_9, %c0_10] : memref<32x96xbf16, #tpu.memory_space<vmem>>, vector<32x96xbf16>
    %cst_11 = arith.constant dense<0.000000e+00> : vector<32x96xf32>
    %27 = tpu.matmul %25, %26, %cst_11 {dimension_numbers = #tpu.dot_dimension_numbers<[1], [0], [0], [1], [0, 0, 1, 1], [], []>} : vector<32x32xbf16>, vector<32x96xbf16>, vector<32x96xf32> -> vector<32x96xf32>
    %28 = vector.extract_strided_slice %27 {offsets = [0, 0], sizes = [32, 32], strides = [1, 1]} : vector<32x96xf32> to vector<32x32xf32>
    %cst_12 = arith.constant 5.000000e-01 : f32
    %29 = vector.broadcast %cst_12 : f32 to vector<32x32xf32>
    %30 = arith.mulf %28, %29 : vector<32x32xf32>
    %31 = vector.extract_strided_slice %27 {offsets = [0, 32], sizes = [32, 32], strides = [1, 1]} : vector<32x96xf32> to vector<32x32xf32>
    %32 = vector.extract_strided_slice %27 {offsets = [0, 64], sizes = [32, 32], strides = [1, 1]} : vector<32x96xf32> to vector<32x32xf32>
    %33 = vector.extract_strided_slice %30 {offsets = [0, 0], sizes = [16, 4], strides = [1, 1]} : vector<32x32xf32> to vector<16x4xf32>
    %34 = arith.truncf %33 : vector<16x4xf32> to vector<16x4xbf16>
    %35 = vector.extract_strided_slice %31 {offsets = [0, 0], sizes = [16, 4], strides = [1, 1]} : vector<32x32xf32> to vector<16x4xf32>
    %36 = arith.truncf %35 : vector<16x4xf32> to vector<16x4xbf16>
    %37 = vector.extract_strided_slice %32 {offsets = [0, 0], sizes = [16, 4], strides = [1, 1]} : vector<32x32xf32> to vector<16x4xf32>
    %38 = arith.truncf %37 : vector<16x4xf32> to vector<16x4xbf16>
    %cst_13 = arith.constant dense<0.000000e+00> : vector<16x16xf32>
    %39 = tpu.matmul %34, %36, %cst_13 {dimension_numbers = #tpu.dot_dimension_numbers<[1], [1], [0], [0], [0, 0, 1, 0], [], []>} : vector<16x4xbf16>, vector<16x4xbf16>, vector<16x16xf32> -> vector<16x16xf32>
    %cst_14 = arith.constant dense<0xFF800000> : vector<16xf32>
    %40 = vector.multi_reduction <maximumf>, %39, %cst_14 [1] : vector<16x16xf32> to vector<16xf32>
    %41 = vector.shape_cast %40 : vector<16xf32> to vector<16x1xf32>
    %42 = vector.broadcast %41 : vector<16x1xf32> to vector<16x16xf32>
    %43 = arith.subf %39, %42 : vector<16x16xf32>
    %44 = math.exp %43 : vector<16x16xf32>
    %cst_15 = arith.constant dense<0.000000e+00> : vector<16xf32>
    %45 = vector.multi_reduction <add>, %44, %cst_15 [1] : vector<16x16xf32> to vector<16xf32>
    %46 = vector.shape_cast %45 : vector<16xf32> to vector<16x1xf32>
    %47 = tpu.reciprocal %46 {approx = true} : vector<16x1xf32> -> vector<16x1xf32>
    %48 = vector.broadcast %47 : vector<16x1xf32> to vector<16x16xf32>
    %49 = arith.mulf %44, %48 : vector<16x16xf32>
    %50 = arith.truncf %49 : vector<16x16xf32> to vector<16x16xbf16>
    %cst_16 = arith.constant dense<0.000000e+00> : vector<16x4xf32>
    %51 = tpu.matmul %50, %38, %cst_16 {dimension_numbers = #tpu.dot_dimension_numbers<[1], [0], [0], [1], [0, 0, 1, 1], [], []>} : vector<16x16xbf16>, vector<16x4xbf16>, vector<16x4xf32> -> vector<16x4xf32>
    %c0_17 = arith.constant 0 : index
    %c0_18 = arith.constant 0 : index
    %52 = vector.load %arg7[%c0_17, %c0_18] : memref<32x32xf32, #tpu.memory_space<vmem>>, vector<16x4xf32>
    tpu.vector_store %arg7[%c0_17, %c0_18], %51 {strides = array<i32>} : memref<32x32xf32, #tpu.memory_space<vmem>>, vector<16x4xf32>,
    %53 = vector.extract_strided_slice %30 {offsets = [0, 4], sizes = [16, 4], strides = [1, 1]} : vector<32x32xf32> to vector<16x4xf32>
    %54 = arith.truncf %53 : vector<16x4xf32> to vector<16x4xbf16>
    %55 = vector.extract_strided_slice %31 {offsets = [0, 4], sizes = [16, 4], strides = [1, 1]} : vector<32x32xf32> to vector<16x4xf32>
    %56 = arith.truncf %55 : vector<16x4xf32> to vector<16x4xbf16>
    %57 = vector.extract_strided_slice %32 {offsets = [0, 4], sizes = [16, 4], strides = [1, 1]} : vector<32x32xf32> to vector<16x4xf32>
    %58 = arith.truncf %57 : vector<16x4xf32> to vector<16x4xbf16>
    %cst_19 = arith.constant dense<0.000000e+00> : vector<16x16xf32>
    %59 = tpu.matmul %54, %56, %cst_19 {dimension_numbers = #tpu.dot_dimension_numbers<[1], [1], [0], [0], [0, 0, 1, 0], [], []>} : vector<16x4xbf16>, vector<16x4xbf16>, vector<16x16xf32> -> vector<16x16xf32>
    %cst_20 = arith.constant dense<0xFF800000> : vector<16xf32>
    %60 = vector.multi_reduction <maximumf>, %59, %cst_20 [1] : vector<16x16xf32> to vector<16xf32>
    %61 = vector.shape_cast %60 : vector<16xf32> to vector<16x1xf32>
    %62 = vector.broadcast %61 : vector<16x1xf32> to vector<16x16xf32>
    %63 = arith.subf %59, %62 : vector<16x16xf32>
    %64 = math.exp %63 : vector<16x16xf32>
    %cst_21 = arith.constant dense<0.000000e+00> : vector<16xf32>
    %65 = vector.multi_reduction <add>, %64, %cst_21 [1] : vector<16x16xf32> to vector<16xf32>
    %66 = vector.shape_cast %65 : vector<16xf32> to vector<16x1xf32>
    %67 = tpu.reciprocal %66 {approx = true} : vector<16x1xf32> -> vector<16x1xf32>
    %68 = vector.broadcast %67 : vector<16x1xf32> to vector<16x16xf32>
    %69 = arith.mulf %64, %68 : vector<16x16xf32>
    %70 = arith.truncf %69 : vector<16x16xf32> to vector<16x16xbf16>
    %cst_22 = arith.constant dense<0.000000e+00> : vector<16x4xf32>
    %71 = tpu.matmul %70, %58, %cst_22 {dimension_numbers = #tpu.dot_dimension_numbers<[1], [0], [0], [1], [0, 0, 1, 1], [], []>} : vector<16x16xbf16>, vector<16x4xbf16>, vector<16x4xf32> -> vector<16x4xf32>
    %c0_23 = arith.constant 0 : index
    %c4 = arith.constant 4 : index
    %72 = vector.load %arg7[%c0_23, %c4] : memref<32x32xf32, #tpu.memory_space<vmem>>, vector<16x4xf32>
    tpu.vector_store %arg7[%c0_23, %c4], %71 {strides = array<i32>} : memref<32x32xf32, #tpu.memory_space<vmem>>, vector<16x4xf32>,
    %73 = vector.extract_strided_slice %30 {offsets = [0, 8], sizes = [16, 4], strides = [1, 1]} : vector<32x32xf32> to vector<16x4xf32>
    %74 = arith.truncf %73 : vector<16x4xf32> to vector<16x4xbf16>
    %75 = vector.extract_strided_slice %31 {offsets = [0, 8], sizes = [16, 4], strides = [1, 1]} : vector<32x32xf32> to vector<16x4xf32>
    %76 = arith.truncf %75 : vector<16x4xf32> to vector<16x4xbf16>
    %77 = vector.extract_strided_slice %32 {offsets = [0, 8], sizes = [16, 4], strides = [1, 1]} : vector<32x32xf32> to vector<16x4xf32>
    %78 = arith.truncf %77 : vector<16x4xf32> to vector<16x4xbf16>
    %cst_24 = arith.constant dense<0.000000e+00> : vector<16x16xf32>
    %79 = tpu.matmul %74, %76, %cst_24 {dimension_numbers = #tpu.dot_dimension_numbers<[1], [1], [0], [0], [0, 0, 1, 0], [], []>} : vector<16x4xbf16>, vector<16x4xbf16>, vector<16x16xf32> -> vector<16x16xf32>
    %cst_25 = arith.constant dense<0xFF800000> : vector<16xf32>
    %80 = vector.multi_reduction <maximumf>, %79, %cst_25 [1] : vector<16x16xf32> to vector<16xf32>
    %81 = vector.shape_cast %80 : vector<16xf32> to vector<16x1xf32>
    %82 = vector.broadcast %81 : vector<16x1xf32> to vector<16x16xf32>
    %83 = arith.subf %79, %82 : vector<16x16xf32>
    %84 = math.exp %83 : vector<16x16xf32>
    %cst_26 = arith.constant dense<0.000000e+00> : vector<16xf32>
    %85 = vector.multi_reduction <add>, %84, %cst_26 [1] : vector<16x16xf32> to vector<16xf32>
    %86 = vector.shape_cast %85 : vector<16xf32> to vector<16x1xf32>
    %87 = tpu.reciprocal %86 {approx = true} : vector<16x1xf32> -> vector<16x1xf32>
    %88 = vector.broadcast %87 : vector<16x1xf32> to vector<16x16xf32>
    %89 = arith.mulf %84, %88 : vector<16x16xf32>
    %90 = arith.truncf %89 : vector<16x16xf32> to vector<16x16xbf16>
    %cst_27 = arith.constant dense<0.000000e+00> : vector<16x4xf32>
    %91 = tpu.matmul %90, %78, %cst_27 {dimension_numbers = #tpu.dot_dimension_numbers<[1], [0], [0], [1], [0, 0, 1, 1], [], []>} : vector<16x16xbf16>, vector<16x4xbf16>, vector<16x4xf32> -> vector<16x4xf32>
    %c0_28 = arith.constant 0 : index
    %c8 = arith.constant 8 : index
    %92 = vector.load %arg7[%c0_28, %c8] : memref<32x32xf32, #tpu.memory_space<vmem>>, vector<16x4xf32>
    tpu.vector_store %arg7[%c0_28, %c8], %91 {strides = array<i32>} : memref<32x32xf32, #tpu.memory_space<vmem>>, vector<16x4xf32>,
    %93 = vector.extract_strided_slice %30 {offsets = [0, 12], sizes = [16, 4], strides = [1, 1]} : vector<32x32xf32> to vector<16x4xf32>
    %94 = arith.truncf %93 : vector<16x4xf32> to vector<16x4xbf16>
    %95 = vector.extract_strided_slice %31 {offsets = [0, 12], sizes = [16, 4], strides = [1, 1]} : vector<32x32xf32> to vector<16x4xf32>
    %96 = arith.truncf %95 : vector<16x4xf32> to vector<16x4xbf16>
    %97 = vector.extract_strided_slice %32 {offsets = [0, 12], sizes = [16, 4], strides = [1, 1]} : vector<32x32xf32> to vector<16x4xf32>
    %98 = arith.truncf %97 : vector<16x4xf32> to vector<16x4xbf16>
    %cst_29 = arith.constant dense<0.000000e+00> : vector<16x16xf32>
    %99 = tpu.matmul %94, %96, %cst_29 {dimension_numbers = #tpu.dot_dimension_numbers<[1], [1], [0], [0], [0, 0, 1, 0], [], []>} : vector<16x4xbf16>, vector<16x4xbf16>, vector<16x16xf32> -> vector<16x16xf32>
    %cst_30 = arith.constant dense<0xFF800000> : vector<16xf32>
    %100 = vector.multi_reduction <maximumf>, %99, %cst_30 [1] : vector<16x16xf32> to vector<16xf32>
    %101 = vector.shape_cast %100 : vector<16xf32> to vector<16x1xf32>
    %102 = vector.broadcast %101 : vector<16x1xf32> to vector<16x16xf32>
    %103 = arith.subf %99, %102 : vector<16x16xf32>
    %104 = math.exp %103 : vector<16x16xf32>
    %cst_31 = arith.constant dense<0.000000e+00> : vector<16xf32>
    %105 = vector.multi_reduction <add>, %104, %cst_31 [1] : vector<16x16xf32> to vector<16xf32>
    %106 = vector.shape_cast %105 : vector<16xf32> to vector<16x1xf32>
    %107 = tpu.reciprocal %106 {approx = true} : vector<16x1xf32> -> vector<16x1xf32>
    %108 = vector.broadcast %107 : vector<16x1xf32> to vector<16x16xf32>
    %109 = arith.mulf %104, %108 : vector<16x16xf32>
    %110 = arith.truncf %109 : vector<16x16xf32> to vector<16x16xbf16>
    %cst_32 = arith.constant dense<0.000000e+00> : vector<16x4xf32>
    %111 = tpu.matmul %110, %98, %cst_32 {dimension_numbers = #tpu.dot_dimension_numbers<[1], [0], [0], [1], [0, 0, 1, 1], [], []>} : vector<16x16xbf16>, vector<16x4xbf16>, vector<16x4xf32> -> vector<16x4xf32>
    %c0_33 = arith.constant 0 : index
    %c12 = arith.constant 12 : index
    %112 = vector.load %arg7[%c0_33, %c12] : memref<32x32xf32, #tpu.memory_space<vmem>>, vector<16x4xf32>
    tpu.vector_store %arg7[%c0_33, %c12], %111 {strides = array<i32>} : memref<32x32xf32, #tpu.memory_space<vmem>>, vector<16x4xf32>,
    %113 = vector.extract_strided_slice %30 {offsets = [0, 16], sizes = [16, 4], strides = [1, 1]} : vector<32x32xf32> to vector<16x4xf32>
    %114 = arith.truncf %113 : vector<16x4xf32> to vector<16x4xbf16>
    %115 = vector.extract_strided_slice %31 {offsets = [0, 16], sizes = [16, 4], strides = [1, 1]} : vector<32x32xf32> to vector<16x4xf32>
    %116 = arith.truncf %115 : vector<16x4xf32> to vector<16x4xbf16>
    %117 = vector.extract_strided_slice %32 {offsets = [0, 16], sizes = [16, 4], strides = [1, 1]} : vector<32x32xf32> to vector<16x4xf32>
    %118 = arith.truncf %117 : vector<16x4xf32> to vector<16x4xbf16>
    %cst_34 = arith.constant dense<0.000000e+00> : vector<16x16xf32>
    %119 = tpu.matmul %114, %116, %cst_34 {dimension_numbers = #tpu.dot_dimension_numbers<[1], [1], [0], [0], [0, 0, 1, 0], [], []>} : vector<16x4xbf16>, vector<16x4xbf16>, vector<16x16xf32> -> vector<16x16xf32>
    %cst_35 = arith.constant dense<0xFF800000> : vector<16xf32>
    %120 = vector.multi_reduction <maximumf>, %119, %cst_35 [1] : vector<16x16xf32> to vector<16xf32>
    %121 = vector.shape_cast %120 : vector<16xf32> to vector<16x1xf32>
    %122 = vector.broadcast %121 : vector<16x1xf32> to vector<16x16xf32>
    %123 = arith.subf %119, %122 : vector<16x16xf32>
    %124 = math.exp %123 : vector<16x16xf32>
    %cst_36 = arith.constant dense<0.000000e+00> : vector<16xf32>
    %125 = vector.multi_reduction <add>, %124, %cst_36 [1] : vector<16x16xf32> to vector<16xf32>
    %126 = vector.shape_cast %125 : vector<16xf32> to vector<16x1xf32>
    %127 = tpu.reciprocal %126 {approx = true} : vector<16x1xf32> -> vector<16x1xf32>
    %128 = vector.broadcast %127 : vector<16x1xf32> to vector<16x16xf32>
    %129 = arith.mulf %124, %128 : vector<16x16xf32>
    %130 = arith.truncf %129 : vector<16x16xf32> to vector<16x16xbf16>
    %cst_37 = arith.constant dense<0.000000e+00> : vector<16x4xf32>
    %131 = tpu.matmul %130, %118, %cst_37 {dimension_numbers = #tpu.dot_dimension_numbers<[1], [0], [0], [1], [0, 0, 1, 1], [], []>} : vector<16x16xbf16>, vector<16x4xbf16>, vector<16x4xf32> -> vector<16x4xf32>
    %c0_38 = arith.constant 0 : index
    %c16 = arith.constant 16 : index
    %132 = vector.load %arg7[%c0_38, %c16] : memref<32x32xf32, #tpu.memory_space<vmem>>, vector<16x4xf32>
    tpu.vector_store %arg7[%c0_38, %c16], %131 {strides = array<i32>} : memref<32x32xf32, #tpu.memory_space<vmem>>, vector<16x4xf32>,
    %133 = vector.extract_strided_slice %30 {offsets = [0, 20], sizes = [16, 4], strides = [1, 1]} : vector<32x32xf32> to vector<16x4xf32>
    %134 = arith.truncf %133 : vector<16x4xf32> to vector<16x4xbf16>
    %135 = vector.extract_strided_slice %31 {offsets = [0, 20], sizes = [16, 4], strides = [1, 1]} : vector<32x32xf32> to vector<16x4xf32>
    %136 = arith.truncf %135 : vector<16x4xf32> to vector<16x4xbf16>
    %137 = vector.extract_strided_slice %32 {offsets = [0, 20], sizes = [16, 4], strides = [1, 1]} : vector<32x32xf32> to vector<16x4xf32>
    %138 = arith.truncf %137 : vector<16x4xf32> to vector<16x4xbf16>
    %cst_39 = arith.constant dense<0.000000e+00> : vector<16x16xf32>
    %139 = tpu.matmul %134, %136, %cst_39 {dimension_numbers = #tpu.dot_dimension_numbers<[1], [1], [0], [0], [0, 0, 1, 0], [], []>} : vector<16x4xbf16>, vector<16x4xbf16>, vector<16x16xf32> -> vector<16x16xf32>
    %cst_40 = arith.constant dense<0xFF800000> : vector<16xf32>
    %140 = vector.multi_reduction <maximumf>, %139, %cst_40 [1] : vector<16x16xf32> to vector<16xf32>
    %141 = vector.shape_cast %140 : vector<16xf32> to vector<16x1xf32>
    %142 = vector.broadcast %141 : vector<16x1xf32> to vector<16x16xf32>
    %143 = arith.subf %139, %142 : vector<16x16xf32>
    %144 = math.exp %143 : vector<16x16xf32>
    %cst_41 = arith.constant dense<0.000000e+00> : vector<16xf32>
    %145 = vector.multi_reduction <add>, %144, %cst_41 [1] : vector<16x16xf32> to vector<16xf32>
    %146 = vector.shape_cast %145 : vector<16xf32> to vector<16x1xf32>
    %147 = tpu.reciprocal %146 {approx = true} : vector<16x1xf32> -> vector<16x1xf32>
    %148 = vector.broadcast %147 : vector<16x1xf32> to vector<16x16xf32>
    %149 = arith.mulf %144, %148 : vector<16x16xf32>
    %150 = arith.truncf %149 : vector<16x16xf32> to vector<16x16xbf16>
    %cst_42 = arith.constant dense<0.000000e+00> : vector<16x4xf32>
    %151 = tpu.matmul %150, %138, %cst_42 {dimension_numbers = #tpu.dot_dimension_numbers<[1], [0], [0], [1], [0, 0, 1, 1], [], []>} : vector<16x16xbf16>, vector<16x4xbf16>, vector<16x4xf32> -> vector<16x4xf32>
    %c0_43 = arith.constant 0 : index
    %c20 = arith.constant 20 : index
    %152 = vector.load %arg7[%c0_43, %c20] : memref<32x32xf32, #tpu.memory_space<vmem>>, vector<16x4xf32>
    tpu.vector_store %arg7[%c0_43, %c20], %151 {strides = array<i32>} : memref<32x32xf32, #tpu.memory_space<vmem>>, vector<16x4xf32>,
    %153 = vector.extract_strided_slice %30 {offsets = [0, 24], sizes = [16, 4], strides = [1, 1]} : vector<32x32xf32> to vector<16x4xf32>
    %154 = arith.truncf %153 : vector<16x4xf32> to vector<16x4xbf16>
    %155 = vector.extract_strided_slice %31 {offsets = [0, 24], sizes = [16, 4], strides = [1, 1]} : vector<32x32xf32> to vector<16x4xf32>
    %156 = arith.truncf %155 : vector<16x4xf32> to vector<16x4xbf16>
    %157 = vector.extract_strided_slice %32 {offsets = [0, 24], sizes = [16, 4], strides = [1, 1]} : vector<32x32xf32> to vector<16x4xf32>
    %158 = arith.truncf %157 : vector<16x4xf32> to vector<16x4xbf16>
    %cst_44 = arith.constant dense<0.000000e+00> : vector<16x16xf32>
    %159 = tpu.matmul %154, %156, %cst_44 {dimension_numbers = #tpu.dot_dimension_numbers<[1], [1], [0], [0], [0, 0, 1, 0], [], []>} : vector<16x4xbf16>, vector<16x4xbf16>, vector<16x16xf32> -> vector<16x16xf32>
    %cst_45 = arith.constant dense<0xFF800000> : vector<16xf32>
    %160 = vector.multi_reduction <maximumf>, %159, %cst_45 [1] : vector<16x16xf32> to vector<16xf32>
    %161 = vector.shape_cast %160 : vector<16xf32> to vector<16x1xf32>
    %162 = vector.broadcast %161 : vector<16x1xf32> to vector<16x16xf32>
    %163 = arith.subf %159, %162 : vector<16x16xf32>
    %164 = math.exp %163 : vector<16x16xf32>
    %cst_46 = arith.constant dense<0.000000e+00> : vector<16xf32>
    %165 = vector.multi_reduction <add>, %164, %cst_46 [1] : vector<16x16xf32> to vector<16xf32>
    %166 = vector.shape_cast %165 : vector<16xf32> to vector<16x1xf32>
    %167 = tpu.reciprocal %166 {approx = true} : vector<16x1xf32> -> vector<16x1xf32>
    %168 = vector.broadcast %167 : vector<16x1xf32> to vector<16x16xf32>
    %169 = arith.mulf %164, %168 : vector<16x16xf32>
    %170 = arith.truncf %169 : vector<16x16xf32> to vector<16x16xbf16>
    %cst_47 = arith.constant dense<0.000000e+00> : vector<16x4xf32>
    %171 = tpu.matmul %170, %158, %cst_47 {dimension_numbers = #tpu.dot_dimension_numbers<[1], [0], [0], [1], [0, 0, 1, 1], [], []>} : vector<16x16xbf16>, vector<16x4xbf16>, vector<16x4xf32> -> vector<16x4xf32>
    %c0_48 = arith.constant 0 : index
    %c24 = arith.constant 24 : index
    %172 = vector.load %arg7[%c0_48, %c24] : memref<32x32xf32, #tpu.memory_space<vmem>>, vector<16x4xf32>
    tpu.vector_store %arg7[%c0_48, %c24], %171 {strides = array<i32>} : memref<32x32xf32, #tpu.memory_space<vmem>>, vector<16x4xf32>,
    %173 = vector.extract_strided_slice %30 {offsets = [0, 28], sizes = [16, 4], strides = [1, 1]} : vector<32x32xf32> to vector<16x4xf32>
    %174 = arith.truncf %173 : vector<16x4xf32> to vector<16x4xbf16>
    %175 = vector.extract_strided_slice %31 {offsets = [0, 28], sizes = [16, 4], strides = [1, 1]} : vector<32x32xf32> to vector<16x4xf32>
    %176 = arith.truncf %175 : vector<16x4xf32> to vector<16x4xbf16>
    %177 = vector.extract_strided_slice %32 {offsets = [0, 28], sizes = [16, 4], strides = [1, 1]} : vector<32x32xf32> to vector<16x4xf32>
    %178 = arith.truncf %177 : vector<16x4xf32> to vector<16x4xbf16>
    %cst_49 = arith.constant dense<0.000000e+00> : vector<16x16xf32>
    %179 = tpu.matmul %174, %176, %cst_49 {dimension_numbers = #tpu.dot_dimension_numbers<[1], [1], [0], [0], [0, 0, 1, 0], [], []>} : vector<16x4xbf16>, vector<16x4xbf16>, vector<16x16xf32> -> vector<16x16xf32>
    %cst_50 = arith.constant dense<0xFF800000> : vector<16xf32>
    %180 = vector.multi_reduction <maximumf>, %179, %cst_50 [1] : vector<16x16xf32> to vector<16xf32>
    %181 = vector.shape_cast %180 : vector<16xf32> to vector<16x1xf32>
    %182 = vector.broadcast %181 : vector<16x1xf32> to vector<16x16xf32>
    %183 = arith.subf %179, %182 : vector<16x16xf32>
    %184 = math.exp %183 : vector<16x16xf32>
    %cst_51 = arith.constant dense<0.000000e+00> : vector<16xf32>
    %185 = vector.multi_reduction <add>, %184, %cst_51 [1] : vector<16x16xf32> to vector<16xf32>
    %186 = vector.shape_cast %185 : vector<16xf32> to vector<16x1xf32>
    %187 = tpu.reciprocal %186 {approx = true} : vector<16x1xf32> -> vector<16x1xf32>
    %188 = vector.broadcast %187 : vector<16x1xf32> to vector<16x16xf32>
    %189 = arith.mulf %184, %188 : vector<16x16xf32>
    %190 = arith.truncf %189 : vector<16x16xf32> to vector<16x16xbf16>
    %cst_52 = arith.constant dense<0.000000e+00> : vector<16x4xf32>
    %191 = tpu.matmul %190, %178, %cst_52 {dimension_numbers = #tpu.dot_dimension_numbers<[1], [0], [0], [1], [0, 0, 1, 1], [], []>} : vector<16x16xbf16>, vector<16x4xbf16>, vector<16x4xf32> -> vector<16x4xf32>
    %c0_53 = arith.constant 0 : index
    %c28 = arith.constant 28 : index
    %192 = vector.load %arg7[%c0_53, %c28] : memref<32x32xf32, #tpu.memory_space<vmem>>, vector<16x4xf32>
    tpu.vector_store %arg7[%c0_53, %c28], %191 {strides = array<i32>} : memref<32x32xf32, #tpu.memory_space<vmem>>, vector<16x4xf32>,
    %193 = vector.extract_strided_slice %30 {offsets = [16, 0], sizes = [16, 4], strides = [1, 1]} : vector<32x32xf32> to vector<16x4xf32>
    %194 = arith.truncf %193 : vector<16x4xf32> to vector<16x4xbf16>
    %195 = vector.extract_strided_slice %31 {offsets = [16, 0], sizes = [16, 4], strides = [1, 1]} : vector<32x32xf32> to vector<16x4xf32>
    %196 = arith.truncf %195 : vector<16x4xf32> to vector<16x4xbf16>
    %197 = vector.extract_strided_slice %32 {offsets = [16, 0], sizes = [16, 4], strides = [1, 1]} : vector<32x32xf32> to vector<16x4xf32>
    %198 = arith.truncf %197 : vector<16x4xf32> to vector<16x4xbf16>
    %cst_54 = arith.constant dense<0.000000e+00> : vector<16x16xf32>
    %199 = tpu.matmul %194, %196, %cst_54 {dimension_numbers = #tpu.dot_dimension_numbers<[1], [1], [0], [0], [0, 0, 1, 0], [], []>} : vector<16x4xbf16>, vector<16x4xbf16>, vector<16x16xf32> -> vector<16x16xf32>
    %cst_55 = arith.constant dense<0xFF800000> : vector<16xf32>
    %200 = vector.multi_reduction <maximumf>, %199, %cst_55 [1] : vector<16x16xf32> to vector<16xf32>
    %201 = vector.shape_cast %200 : vector<16xf32> to vector<16x1xf32>
    %202 = vector.broadcast %201 : vector<16x1xf32> to vector<16x16xf32>
    %203 = arith.subf %199, %202 : vector<16x16xf32>
    %204 = math.exp %203 : vector<16x16xf32>
    %cst_56 = arith.constant dense<0.000000e+00> : vector<16xf32>
    %205 = vector.multi_reduction <add>, %204, %cst_56 [1] : vector<16x16xf32> to vector<16xf32>
    %206 = vector.shape_cast %205 : vector<16xf32> to vector<16x1xf32>
    %207 = tpu.reciprocal %206 {approx = true} : vector<16x1xf32> -> vector<16x1xf32>
    %208 = vector.broadcast %207 : vector<16x1xf32> to vector<16x16xf32>
    %209 = arith.mulf %204, %208 : vector<16x16xf32>
    %210 = arith.truncf %209 : vector<16x16xf32> to vector<16x16xbf16>
    %cst_57 = arith.constant dense<0.000000e+00> : vector<16x4xf32>
    %211 = tpu.matmul %210, %198, %cst_57 {dimension_numbers = #tpu.dot_dimension_numbers<[1], [0], [0], [1], [0, 0, 1, 1], [], []>} : vector<16x16xbf16>, vector<16x4xbf16>, vector<16x4xf32> -> vector<16x4xf32>
    %c16_58 = arith.constant 16 : index
    %c0_59 = arith.constant 0 : index
    %212 = vector.load %arg7[%c16_58, %c0_59] : memref<32x32xf32, #tpu.memory_space<vmem>>, vector<16x4xf32>
    tpu.vector_store %arg7[%c16_58, %c0_59], %211 {strides = array<i32>} : memref<32x32xf32, #tpu.memory_space<vmem>>, vector<16x4xf32>,
    %213 = vector.extract_strided_slice %30 {offsets = [16, 4], sizes = [16, 4], strides = [1, 1]} : vector<32x32xf32> to vector<16x4xf32>
    %214 = arith.truncf %213 : vector<16x4xf32> to vector<16x4xbf16>
    %215 = vector.extract_strided_slice %31 {offsets = [16, 4], sizes = [16, 4], strides = [1, 1]} : vector<32x32xf32> to vector<16x4xf32>
    %216 = arith.truncf %215 : vector<16x4xf32> to vector<16x4xbf16>
    %217 = vector.extract_strided_slice %32 {offsets = [16, 4], sizes = [16, 4], strides = [1, 1]} : vector<32x32xf32> to vector<16x4xf32>
    %218 = arith.truncf %217 : vector<16x4xf32> to vector<16x4xbf16>
    %cst_60 = arith.constant dense<0.000000e+00> : vector<16x16xf32>
    %219 = tpu.matmul %214, %216, %cst_60 {dimension_numbers = #tpu.dot_dimension_numbers<[1], [1], [0], [0], [0, 0, 1, 0], [], []>} : vector<16x4xbf16>, vector<16x4xbf16>, vector<16x16xf32> -> vector<16x16xf32>
    %cst_61 = arith.constant dense<0xFF800000> : vector<16xf32>
    %220 = vector.multi_reduction <maximumf>, %219, %cst_61 [1] : vector<16x16xf32> to vector<16xf32>
    %221 = vector.shape_cast %220 : vector<16xf32> to vector<16x1xf32>
    %222 = vector.broadcast %221 : vector<16x1xf32> to vector<16x16xf32>
    %223 = arith.subf %219, %222 : vector<16x16xf32>
    %224 = math.exp %223 : vector<16x16xf32>
    %cst_62 = arith.constant dense<0.000000e+00> : vector<16xf32>
    %225 = vector.multi_reduction <add>, %224, %cst_62 [1] : vector<16x16xf32> to vector<16xf32>
    %226 = vector.shape_cast %225 : vector<16xf32> to vector<16x1xf32>
    %227 = tpu.reciprocal %226 {approx = true} : vector<16x1xf32> -> vector<16x1xf32>
    %228 = vector.broadcast %227 : vector<16x1xf32> to vector<16x16xf32>
    %229 = arith.mulf %224, %228 : vector<16x16xf32>
    %230 = arith.truncf %229 : vector<16x16xf32> to vector<16x16xbf16>
    %cst_63 = arith.constant dense<0.000000e+00> : vector<16x4xf32>
    %231 = tpu.matmul %230, %218, %cst_63 {dimension_numbers = #tpu.dot_dimension_numbers<[1], [0], [0], [1], [0, 0, 1, 1], [], []>} : vector<16x16xbf16>, vector<16x4xbf16>, vector<16x4xf32> -> vector<16x4xf32>
    %c16_64 = arith.constant 16 : index
    %c4_65 = arith.constant 4 : index
    %232 = vector.load %arg7[%c16_64, %c4_65] : memref<32x32xf32, #tpu.memory_space<vmem>>, vector<16x4xf32>
    tpu.vector_store %arg7[%c16_64, %c4_65], %231 {strides = array<i32>} : memref<32x32xf32, #tpu.memory_space<vmem>>, vector<16x4xf32>,
    %233 = vector.extract_strided_slice %30 {offsets = [16, 8], sizes = [16, 4], strides = [1, 1]} : vector<32x32xf32> to vector<16x4xf32>
    %234 = arith.truncf %233 : vector<16x4xf32> to vector<16x4xbf16>
    %235 = vector.extract_strided_slice %31 {offsets = [16, 8], sizes = [16, 4], strides = [1, 1]} : vector<32x32xf32> to vector<16x4xf32>
    %236 = arith.truncf %235 : vector<16x4xf32> to vector<16x4xbf16>
    %237 = vector.extract_strided_slice %32 {offsets = [16, 8], sizes = [16, 4], strides = [1, 1]} : vector<32x32xf32> to vector<16x4xf32>
    %238 = arith.truncf %237 : vector<16x4xf32> to vector<16x4xbf16>
    %cst_66 = arith.constant dense<0.000000e+00> : vector<16x16xf32>
    %239 = tpu.matmul %234, %236, %cst_66 {dimension_numbers = #tpu.dot_dimension_numbers<[1], [1], [0], [0], [0, 0, 1, 0], [], []>} : vector<16x4xbf16>, vector<16x4xbf16>, vector<16x16xf32> -> vector<16x16xf32>
    %cst_67 = arith.constant dense<0xFF800000> : vector<16xf32>
    %240 = vector.multi_reduction <maximumf>, %239, %cst_67 [1] : vector<16x16xf32> to vector<16xf32>
    %241 = vector.shape_cast %240 : vector<16xf32> to vector<16x1xf32>
    %242 = vector.broadcast %241 : vector<16x1xf32> to vector<16x16xf32>
    %243 = arith.subf %239, %242 : vector<16x16xf32>
    %244 = math.exp %243 : vector<16x16xf32>
    %cst_68 = arith.constant dense<0.000000e+00> : vector<16xf32>
    %245 = vector.multi_reduction <add>, %244, %cst_68 [1] : vector<16x16xf32> to vector<16xf32>
    %246 = vector.shape_cast %245 : vector<16xf32> to vector<16x1xf32>
    %247 = tpu.reciprocal %246 {approx = true} : vector<16x1xf32> -> vector<16x1xf32>
    %248 = vector.broadcast %247 : vector<16x1xf32> to vector<16x16xf32>
    %249 = arith.mulf %244, %248 : vector<16x16xf32>
    %250 = arith.truncf %249 : vector<16x16xf32> to vector<16x16xbf16>
    %cst_69 = arith.constant dense<0.000000e+00> : vector<16x4xf32>
    %251 = tpu.matmul %250, %238, %cst_69 {dimension_numbers = #tpu.dot_dimension_numbers<[1], [0], [0], [1], [0, 0, 1, 1], [], []>} : vector<16x16xbf16>, vector<16x4xbf16>, vector<16x4xf32> -> vector<16x4xf32>
    %c16_70 = arith.constant 16 : index
    %c8_71 = arith.constant 8 : index
    %252 = vector.load %arg7[%c16_70, %c8_71] : memref<32x32xf32, #tpu.memory_space<vmem>>, vector<16x4xf32>
    tpu.vector_store %arg7[%c16_70, %c8_71], %251 {strides = array<i32>} : memref<32x32xf32, #tpu.memory_space<vmem>>, vector<16x4xf32>,
    %253 = vector.extract_strided_slice %30 {offsets = [16, 12], sizes = [16, 4], strides = [1, 1]} : vector<32x32xf32> to vector<16x4xf32>
    %254 = arith.truncf %253 : vector<16x4xf32> to vector<16x4xbf16>
    %255 = vector.extract_strided_slice %31 {offsets = [16, 12], sizes = [16, 4], strides = [1, 1]} : vector<32x32xf32> to vector<16x4xf32>
    %256 = arith.truncf %255 : vector<16x4xf32> to vector<16x4xbf16>
    %257 = vector.extract_strided_slice %32 {offsets = [16, 12], sizes = [16, 4], strides = [1, 1]} : vector<32x32xf32> to vector<16x4xf32>
    %258 = arith.truncf %257 : vector<16x4xf32> to vector<16x4xbf16>
    %cst_72 = arith.constant dense<0.000000e+00> : vector<16x16xf32>
    %259 = tpu.matmul %254, %256, %cst_72 {dimension_numbers = #tpu.dot_dimension_numbers<[1], [1], [0], [0], [0, 0, 1, 0], [], []>} : vector<16x4xbf16>, vector<16x4xbf16>, vector<16x16xf32> -> vector<16x16xf32>
    %cst_73 = arith.constant dense<0xFF800000> : vector<16xf32>
    %260 = vector.multi_reduction <maximumf>, %259, %cst_73 [1] : vector<16x16xf32> to vector<16xf32>
    %261 = vector.shape_cast %260 : vector<16xf32> to vector<16x1xf32>
    %262 = vector.broadcast %261 : vector<16x1xf32> to vector<16x16xf32>
    %263 = arith.subf %259, %262 : vector<16x16xf32>
    %264 = math.exp %263 : vector<16x16xf32>
    %cst_74 = arith.constant dense<0.000000e+00> : vector<16xf32>
    %265 = vector.multi_reduction <add>, %264, %cst_74 [1] : vector<16x16xf32> to vector<16xf32>
    %266 = vector.shape_cast %265 : vector<16xf32> to vector<16x1xf32>
    %267 = tpu.reciprocal %266 {approx = true} : vector<16x1xf32> -> vector<16x1xf32>
    %268 = vector.broadcast %267 : vector<16x1xf32> to vector<16x16xf32>
    %269 = arith.mulf %264, %268 : vector<16x16xf32>
    %270 = arith.truncf %269 : vector<16x16xf32> to vector<16x16xbf16>
    %cst_75 = arith.constant dense<0.000000e+00> : vector<16x4xf32>
    %271 = tpu.matmul %270, %258, %cst_75 {dimension_numbers = #tpu.dot_dimension_numbers<[1], [0], [0], [1], [0, 0, 1, 1], [], []>} : vector<16x16xbf16>, vector<16x4xbf16>, vector<16x4xf32> -> vector<16x4xf32>
    %c16_76 = arith.constant 16 : index
    %c12_77 = arith.constant 12 : index
    %272 = vector.load %arg7[%c16_76, %c12_77] : memref<32x32xf32, #tpu.memory_space<vmem>>, vector<16x4xf32>
    tpu.vector_store %arg7[%c16_76, %c12_77], %271 {strides = array<i32>} : memref<32x32xf32, #tpu.memory_space<vmem>>, vector<16x4xf32>,
    %273 = vector.extract_strided_slice %30 {offsets = [16, 16], sizes = [16, 4], strides = [1, 1]} : vector<32x32xf32> to vector<16x4xf32>
    %274 = arith.truncf %273 : vector<16x4xf32> to vector<16x4xbf16>
    %275 = vector.extract_strided_slice %31 {offsets = [16, 16], sizes = [16, 4], strides = [1, 1]} : vector<32x32xf32> to vector<16x4xf32>
    %276 = arith.truncf %275 : vector<16x4xf32> to vector<16x4xbf16>
    %277 = vector.extract_strided_slice %32 {offsets = [16, 16], sizes = [16, 4], strides = [1, 1]} : vector<32x32xf32> to vector<16x4xf32>
    %278 = arith.truncf %277 : vector<16x4xf32> to vector<16x4xbf16>
    %cst_78 = arith.constant dense<0.000000e+00> : vector<16x16xf32>
    %279 = tpu.matmul %274, %276, %cst_78 {dimension_numbers = #tpu.dot_dimension_numbers<[1], [1], [0], [0], [0, 0, 1, 0], [], []>} : vector<16x4xbf16>, vector<16x4xbf16>, vector<16x16xf32> -> vector<16x16xf32>
    %cst_79 = arith.constant dense<0xFF800000> : vector<16xf32>
    %280 = vector.multi_reduction <maximumf>, %279, %cst_79 [1] : vector<16x16xf32> to vector<16xf32>
    %281 = vector.shape_cast %280 : vector<16xf32> to vector<16x1xf32>
    %282 = vector.broadcast %281 : vector<16x1xf32> to vector<16x16xf32>
    %283 = arith.subf %279, %282 : vector<16x16xf32>
    %284 = math.exp %283 : vector<16x16xf32>
    %cst_80 = arith.constant dense<0.000000e+00> : vector<16xf32>
    %285 = vector.multi_reduction <add>, %284, %cst_80 [1] : vector<16x16xf32> to vector<16xf32>
    %286 = vector.shape_cast %285 : vector<16xf32> to vector<16x1xf32>
    %287 = tpu.reciprocal %286 {approx = true} : vector<16x1xf32> -> vector<16x1xf32>
    %288 = vector.broadcast %287 : vector<16x1xf32> to vector<16x16xf32>
    %289 = arith.mulf %284, %288 : vector<16x16xf32>
    %290 = arith.truncf %289 : vector<16x16xf32> to vector<16x16xbf16>
    %cst_81 = arith.constant dense<0.000000e+00> : vector<16x4xf32>
    %291 = tpu.matmul %290, %278, %cst_81 {dimension_numbers = #tpu.dot_dimension_numbers<[1], [0], [0], [1], [0, 0, 1, 1], [], []>} : vector<16x16xbf16>, vector<16x4xbf16>, vector<16x4xf32> -> vector<16x4xf32>
    %c16_82 = arith.constant 16 : index
    %c16_83 = arith.constant 16 : index
    %292 = vector.load %arg7[%c16_82, %c16_83] : memref<32x32xf32, #tpu.memory_space<vmem>>, vector<16x4xf32>
    tpu.vector_store %arg7[%c16_82, %c16_83], %291 {strides = array<i32>} : memref<32x32xf32, #tpu.memory_space<vmem>>, vector<16x4xf32>,
    %293 = vector.extract_strided_slice %30 {offsets = [16, 20], sizes = [16, 4], strides = [1, 1]} : vector<32x32xf32> to vector<16x4xf32>
    %294 = arith.truncf %293 : vector<16x4xf32> to vector<16x4xbf16>
    %295 = vector.extract_strided_slice %31 {offsets = [16, 20], sizes = [16, 4], strides = [1, 1]} : vector<32x32xf32> to vector<16x4xf32>
    %296 = arith.truncf %295 : vector<16x4xf32> to vector<16x4xbf16>
    %297 = vector.extract_strided_slice %32 {offsets = [16, 20], sizes = [16, 4], strides = [1, 1]} : vector<32x32xf32> to vector<16x4xf32>
    %298 = arith.truncf %297 : vector<16x4xf32> to vector<16x4xbf16>
    %cst_84 = arith.constant dense<0.000000e+00> : vector<16x16xf32>
    %299 = tpu.matmul %294, %296, %cst_84 {dimension_numbers = #tpu.dot_dimension_numbers<[1], [1], [0], [0], [0, 0, 1, 0], [], []>} : vector<16x4xbf16>, vector<16x4xbf16>, vector<16x16xf32> -> vector<16x16xf32>
    %cst_85 = arith.constant dense<0xFF800000> : vector<16xf32>
    %300 = vector.multi_reduction <maximumf>, %299, %cst_85 [1] : vector<16x16xf32> to vector<16xf32>
    %301 = vector.shape_cast %300 : vector<16xf32> to vector<16x1xf32>
    %302 = vector.broadcast %301 : vector<16x1xf32> to vector<16x16xf32>
    %303 = arith.subf %299, %302 : vector<16x16xf32>
    %304 = math.exp %303 : vector<16x16xf32>
    %cst_86 = arith.constant dense<0.000000e+00> : vector<16xf32>
    %305 = vector.multi_reduction <add>, %304, %cst_86 [1] : vector<16x16xf32> to vector<16xf32>
    %306 = vector.shape_cast %305 : vector<16xf32> to vector<16x1xf32>
    %307 = tpu.reciprocal %306 {approx = true} : vector<16x1xf32> -> vector<16x1xf32>
    %308 = vector.broadcast %307 : vector<16x1xf32> to vector<16x16xf32>
    %309 = arith.mulf %304, %308 : vector<16x16xf32>
    %310 = arith.truncf %309 : vector<16x16xf32> to vector<16x16xbf16>
    %cst_87 = arith.constant dense<0.000000e+00> : vector<16x4xf32>
    %311 = tpu.matmul %310, %298, %cst_87 {dimension_numbers = #tpu.dot_dimension_numbers<[1], [0], [0], [1], [0, 0, 1, 1], [], []>} : vector<16x16xbf16>, vector<16x4xbf16>, vector<16x4xf32> -> vector<16x4xf32>
    %c16_88 = arith.constant 16 : index
    %c20_89 = arith.constant 20 : index
    %312 = vector.load %arg7[%c16_88, %c20_89] : memref<32x32xf32, #tpu.memory_space<vmem>>, vector<16x4xf32>
    tpu.vector_store %arg7[%c16_88, %c20_89], %311 {strides = array<i32>} : memref<32x32xf32, #tpu.memory_space<vmem>>, vector<16x4xf32>,
    %313 = vector.extract_strided_slice %30 {offsets = [16, 24], sizes = [16, 4], strides = [1, 1]} : vector<32x32xf32> to vector<16x4xf32>
    %314 = arith.truncf %313 : vector<16x4xf32> to vector<16x4xbf16>
    %315 = vector.extract_strided_slice %31 {offsets = [16, 24], sizes = [16, 4], strides = [1, 1]} : vector<32x32xf32> to vector<16x4xf32>
    %316 = arith.truncf %315 : vector<16x4xf32> to vector<16x4xbf16>
    %317 = vector.extract_strided_slice %32 {offsets = [16, 24], sizes = [16, 4], strides = [1, 1]} : vector<32x32xf32> to vector<16x4xf32>
    %318 = arith.truncf %317 : vector<16x4xf32> to vector<16x4xbf16>
    %cst_90 = arith.constant dense<0.000000e+00> : vector<16x16xf32>
    %319 = tpu.matmul %314, %316, %cst_90 {dimension_numbers = #tpu.dot_dimension_numbers<[1], [1], [0], [0], [0, 0, 1, 0], [], []>} : vector<16x4xbf16>, vector<16x4xbf16>, vector<16x16xf32> -> vector<16x16xf32>
    %cst_91 = arith.constant dense<0xFF800000> : vector<16xf32>
    %320 = vector.multi_reduction <maximumf>, %319, %cst_91 [1] : vector<16x16xf32> to vector<16xf32>
    %321 = vector.shape_cast %320 : vector<16xf32> to vector<16x1xf32>
    %322 = vector.broadcast %321 : vector<16x1xf32> to vector<16x16xf32>
    %323 = arith.subf %319, %322 : vector<16x16xf32>
    %324 = math.exp %323 : vector<16x16xf32>
    %cst_92 = arith.constant dense<0.000000e+00> : vector<16xf32>
    %325 = vector.multi_reduction <add>, %324, %cst_92 [1] : vector<16x16xf32> to vector<16xf32>
    %326 = vector.shape_cast %325 : vector<16xf32> to vector<16x1xf32>
    %327 = tpu.reciprocal %326 {approx = true} : vector<16x1xf32> -> vector<16x1xf32>
    %328 = vector.broadcast %327 : vector<16x1xf32> to vector<16x16xf32>
    %329 = arith.mulf %324, %328 : vector<16x16xf32>
    %330 = arith.truncf %329 : vector<16x16xf32> to vector<16x16xbf16>
    %cst_93 = arith.constant dense<0.000000e+00> : vector<16x4xf32>
    %331 = tpu.matmul %330, %318, %cst_93 {dimension_numbers = #tpu.dot_dimension_numbers<[1], [0], [0], [1], [0, 0, 1, 1], [], []>} : vector<16x16xbf16>, vector<16x4xbf16>, vector<16x4xf32> -> vector<16x4xf32>
    %c16_94 = arith.constant 16 : index
    %c24_95 = arith.constant 24 : index
    %332 = vector.load %arg7[%c16_94, %c24_95] : memref<32x32xf32, #tpu.memory_space<vmem>>, vector<16x4xf32>
    tpu.vector_store %arg7[%c16_94, %c24_95], %331 {strides = array<i32>} : memref<32x32xf32, #tpu.memory_space<vmem>>, vector<16x4xf32>,
    %333 = vector.extract_strided_slice %30 {offsets = [16, 28], sizes = [16, 4], strides = [1, 1]} : vector<32x32xf32> to vector<16x4xf32>
    %334 = arith.truncf %333 : vector<16x4xf32> to vector<16x4xbf16>
    %335 = vector.extract_strided_slice %31 {offsets = [16, 28], sizes = [16, 4], strides = [1, 1]} : vector<32x32xf32> to vector<16x4xf32>
    %336 = arith.truncf %335 : vector<16x4xf32> to vector<16x4xbf16>
    %337 = vector.extract_strided_slice %32 {offsets = [16, 28], sizes = [16, 4], strides = [1, 1]} : vector<32x32xf32> to vector<16x4xf32>
    %338 = arith.truncf %337 : vector<16x4xf32> to vector<16x4xbf16>
    %cst_96 = arith.constant dense<0.000000e+00> : vector<16x16xf32>
    %339 = tpu.matmul %334, %336, %cst_96 {dimension_numbers = #tpu.dot_dimension_numbers<[1], [1], [0], [0], [0, 0, 1, 0], [], []>} : vector<16x4xbf16>, vector<16x4xbf16>, vector<16x16xf32> -> vector<16x16xf32>
    %cst_97 = arith.constant dense<0xFF800000> : vector<16xf32>
    %340 = vector.multi_reduction <maximumf>, %339, %cst_97 [1] : vector<16x16xf32> to vector<16xf32>
    %341 = vector.shape_cast %340 : vector<16xf32> to vector<16x1xf32>
    %342 = vector.broadcast %341 : vector<16x1xf32> to vector<16x16xf32>
    %343 = arith.subf %339, %342 : vector<16x16xf32>
    %344 = math.exp %343 : vector<16x16xf32>
    %cst_98 = arith.constant dense<0.000000e+00> : vector<16xf32>
    %345 = vector.multi_reduction <add>, %344, %cst_98 [1] : vector<16x16xf32> to vector<16xf32>
    %346 = vector.shape_cast %345 : vector<16xf32> to vector<16x1xf32>
    %347 = tpu.reciprocal %346 {approx = true} : vector<16x1xf32> -> vector<16x1xf32>
    %348 = vector.broadcast %347 : vector<16x1xf32> to vector<16x16xf32>
    %349 = arith.mulf %344, %348 : vector<16x16xf32>
    %350 = arith.truncf %349 : vector<16x16xf32> to vector<16x16xbf16>
    %cst_99 = arith.constant dense<0.000000e+00> : vector<16x4xf32>
    %351 = tpu.matmul %350, %338, %cst_99 {dimension_numbers = #tpu.dot_dimension_numbers<[1], [0], [0], [1], [0, 0, 1, 1], [], []>} : vector<16x16xbf16>, vector<16x4xbf16>, vector<16x4xf32> -> vector<16x4xf32>
    %c16_100 = arith.constant 16 : index
    %c28_101 = arith.constant 28 : index
    %352 = vector.load %arg7[%c16_100, %c28_101] : memref<32x32xf32, #tpu.memory_space<vmem>>, vector<16x4xf32>
    tpu.vector_store %arg7[%c16_100, %c28_101], %351 {strides = array<i32>} : memref<32x32xf32, #tpu.memory_space<vmem>>, vector<16x4xf32>,
    %c0_102 = arith.constant 0 : index
    %c0_103 = arith.constant 0 : index
    %353 = vector.load %arg7[%c0_102, %c0_103] : memref<32x32xf32, #tpu.memory_space<vmem>>, vector<32x32xf32>
    %354 = arith.truncf %353 : vector<32x32xf32> to vector<32x32xbf16>
    %c0_104 = arith.constant 0 : index
    %c0_105 = arith.constant 0 : index
    %355 = vector.load %arg5[%c0_104, %c0_105] : memref<32x32xbf16, #tpu.memory_space<vmem>>, vector<32x32xbf16>
    %cst_106 = arith.constant dense<0.000000e+00> : vector<32x32xf32>
    %356 = tpu.matmul %354, %355, %cst_106 {dimension_numbers = #tpu.dot_dimension_numbers<[1], [0], [0], [1], [0, 0, 1, 1], [], []>} : vector<32x32xbf16>, vector<32x32xbf16>, vector<32x32xf32> -> vector<32x32xf32>
    %c0_107 = arith.constant 0 : index
    %c0_108 = arith.constant 0 : index
    %357 = vector.load %arg6[%c0_107, %c0_108] : memref<32x32xf32, #tpu.memory_space<vmem>>, vector<32x32xf32>
    tpu.vector_store %arg6[%c0_107, %c0_108], %356 {strides = array<i32>} : memref<32x32xf32, #tpu.memory_space<vmem>>, vector<32x32xf32>,
    return
  }
  func.func @transform_0(%arg0: i32) -> (i32, i32) {
    %c0_i32 = arith.constant 0 : i32
    %c0_i32_0 = arith.constant 0 : i32
    return %arg0, %c0_i32 : i32, i32
  }
  func.func @transform_1(%arg0: i32) -> (i32, i32) {
    %c0_i32 = arith.constant 0 : i32
    %c0_i32_0 = arith.constant 0 : i32
    %c0_i32_1 = arith.constant 0 : i32
    return %c0_i32, %c0_i32_0 : i32, i32
  }
  func.func @transform_2(%arg0: i32) -> (i32, i32) {
    %c0_i32 = arith.constant 0 : i32
    %c0_i32_0 = arith.constant 0 : i32
    %c0_i32_1 = arith.constant 0 : i32
    return %c0_i32, %c0_i32_0 : i32, i32
  }
  func.func @transform_3(%arg0: i32) -> (i32, i32) {
    %c0_i32 = arith.constant 0 : i32
    %c0_i32_0 = arith.constant 0 : i32
    %c0_i32_1 = arith.constant 0 : i32
    return %c0_i32, %c0_i32_0 : i32, i32
  }
  func.func @transform_4(%arg0: i32) -> (i32, i32) {
    %c0_i32 = arith.constant 0 : i32
    %c0_i32_0 = arith.constant 0 : i32
    %c0_i32_1 = arith.constant 0 : i32
    return %c0_i32, %c0_i32_0 : i32, i32
  }
  func.func @transform_5(%arg0: i32) -> (i32, i32) {
    %c0_i32 = arith.constant 0 : i32
    %c0_i32_0 = arith.constant 0 : i32
    return %arg0, %c0_i32 : i32, i32
  }
}

</mosaic_0001>

<llo_original>
// kernel: tpu_custom_call.1
$region0: #{tpu_custom_call.1}
  #allocation0 [shape = 'u32[]', space=smem, size = 0x4, offset = 0x4, fixed_abs, tag = 'smem constant byte address 0x4 - core index']
  #allocation1 [shape = 'u32[144,128]{1,0:T(1,128)}', space=vmem, size = 0x12000, scoped, tag = 'internal scratch']
  #allocation2 [shape = 'f32[32,32]{1,0:T(8,128)}', space=vmem, size = 0x4000, scoped, tag = 'scratch operand']
  %s0 = inlined_call_operand.hbm [shape: f32[32,32], index: 0, kind: input, shape index: {}]
  %s1 = inlined_call_operand.vmem [shape: f32[1,32], index: 1, kind: input, shape index: {}]
  %s2 = inlined_call_operand.vmem [shape: f32[1,32], index: 2, kind: input, shape index: {}]
  %s3 = inlined_call_operand.hbm [shape: bf16[32,96], index: 3, kind: input, shape index: {}]
  %s4 = inlined_call_operand.hbm [shape: bf16[32,32], index: 4, kind: input, shape index: {}]
  %s5 = inlined_call_operand.hbm [shape: f32[32,32], index: 5, kind: output, shape index: {}]
  %s6 = sld [smem:[#allocation0]]
  $region42: #{tpu_custom_call.1} parent=0
    _
  %s8 = ssub.s32 1, %s6
  %s9 = scalar_select 0, %s8, %s6
  $region1: #{tpu_custom_call.1} parent=0
    #allocation3 [shape = 'u8[16384]{0}', space=vmem, size = 0x4000, scoped, tag = 'input window, operand 0, single buffered']
    #allocation4 [shape = 's32[1]{0}', space=sflag, size = 0x4, scoped, tag = 'scoped memory for tpu_custom_call.1']
    #allocation5 [shape = 's32[1]{0}', space=sflag, size = 0x4, scoped, tag = 'scoped memory for tpu_custom_call.1']
    #allocation6 [shape = 'u8[8192]{0}', space=vmem, size = 0x2000, scoped, tag = 'input window, operand 3, single buffered']
    #allocation7 [shape = 's32[1]{0}', space=sflag, size = 0x4, scoped, tag = 'scoped memory for tpu_custom_call.1']
    #allocation8 [shape = 'u8[8192]{0}', space=vmem, size = 0x2000, scoped, tag = 'input window, operand 4, single buffered']
    #allocation9 [shape = 'u8[16384]{0}', space=vmem, size = 0x4000, scoped, tag = 'output window, operand 0, single buffered']
    %10 = vsyncpa [#allocation4], 0
    %11 = vsyncpa [#allocation7], 0
    %12 = vsyncpa [#allocation5], 0
    // Predicated region
    $region2: #{tpu_custom_call.1} parent=1 // pred_check
      _
    $region3: #{tpu_custom_call.1} parent=1 // pred_check_branch
      %14 = sbr.rel (0) target = $region5
    $region4: #{tpu_custom_call.1} parent=1 // pred_region
      %s16 = ssub.s32 512, 512
      %17 = vsyncadd [#allocation4], %s16
      %s18 = sshll.u32 [#allocation3], 4
      %s19 = int_to_ptr.vmem [resolvable:$true] %s18
      %24 = dma.hbm_to_vmem [thread:$0]  %s0, 512, %s19, [#allocation4], 128, 128, 8
    $region5: #{tpu_custom_call.1} parent=1 // pred_fallthru
      _
    // Predicated region
    $region6: #{tpu_custom_call.1} parent=1 // pred_check
      _
    $region7: #{tpu_custom_call.1} parent=1 // pred_check_branch
      %26 = sbr.rel (0) target = $region9
    $region8: #{tpu_custom_call.1} parent=1 // pred_region
      _
    $region9: #{tpu_custom_call.1} parent=1 // pred_fallthru
      _
    // Predicated region
    $region10: #{tpu_custom_call.1} parent=1 // pred_check
      _
    $region11: #{tpu_custom_call.1} parent=1 // pred_check_branch
      %28 = sbr.rel (0) target = $region13
    $region12: #{tpu_custom_call.1} parent=1 // pred_region
      _
    $region13: #{tpu_custom_call.1} parent=1 // pred_fallthru
      _
    // Predicated region
    $region14: #{tpu_custom_call.1} parent=1 // pred_check
      _
    $region15: #{tpu_custom_call.1} parent=1 // pred_check_branch
      %30 = sbr.rel (0) target = $region17
    $region16: #{tpu_custom_call.1} parent=1 // pred_region
      %s32 = ssub.s32 256, 256
      %33 = vsyncadd [#allocation7], %s32
      %s34 = sshll.u32 [#allocation6], 4
      %s35 = int_to_ptr.vmem [resolvable:$true] %s34
      %40 = dma.hbm_to_vmem [thread:$0]  %s3, 256, %s35, [#allocation7], 64, 64, 4
    $region17: #{tpu_custom_call.1} parent=1 // pred_fallthru
      _
    // Predicated region
    $region18: #{tpu_custom_call.1} parent=1 // pred_check
      _
    $region19: #{tpu_custom_call.1} parent=1 // pred_check_branch
      %42 = sbr.rel (0) target = $region21
    $region20: #{tpu_custom_call.1} parent=1 // pred_region
      %s44 = ssub.s32 256, 256
      %45 = vsyncadd [#allocation7], %s44
      %s46 = sshll.u32 [#allocation8], 4
      %s47 = int_to_ptr.vmem [resolvable:$true] %s46
      %52 = dma.hbm_to_vmem [thread:$0]  %s4, 256, %s47, [#allocation7], 64, 64, 4
    $region21: #{tpu_custom_call.1} parent=1 // pred_fallthru
      _
    // Predicated region
    $region22: #{tpu_custom_call.1} parent=1 // pred_check
      _
    $region23: #{tpu_custom_call.1} parent=1 // pred_check_branch
      %54 = sbr.rel (0) target = $region25
    $region24: #{tpu_custom_call.1} parent=1 // pred_region
      %55 = dma.done [#allocation4], 512
    $region25: #{tpu_custom_call.1} parent=1 // pred_fallthru
      _
    // Predicated region
    $region26: #{tpu_custom_call.1} parent=1 // pred_check
      _
    $region27: #{tpu_custom_call.1} parent=1 // pred_check_branch
      %57 = sbr.rel (0) target = $region29
    $region28: #{tpu_custom_call.1} parent=1 // pred_region
      %58 = dma.done [#allocation7], 256
    $region29: #{tpu_custom_call.1} parent=1 // pred_fallthru
      _
    // Predicated region
    $region30: #{tpu_custom_call.1} parent=1 // pred_check
      _
    $region31: #{tpu_custom_call.1} parent=1 // pred_check_branch
      %60 = sbr.rel (0) target = $region33
    $region32: #{tpu_custom_call.1} parent=1 // pred_region
      %61 = dma.done [#allocation7], 256
    $region33: #{tpu_custom_call.1} parent=1 // pred_fallthru
      _
    %v63 = vld [vmem:[#allocation3] sm:$0xff]
    %v64 = vld [vmem:[#allocation3 + $0x8] sm:$0xff]
    %v65 = vld [vmem:[#allocation3 + $0x10] sm:$0xff]
    %v66 = vld [vmem:[#allocation3 + $0x18] sm:$0xff]
    %vm67 = vcmask 261120
    %v68 = vsel %vm67, %v63, 0.0
    %69 = vadd.xlane.f32.xlu0 %v68
    %v70 = vpop.xlane.xlu0 %69
    %v71 = vsel %vm67, %v64, 0.0
    %72 = vadd.xlane.f32.xlu0 %v71
    %v73 = vpop.xlane.xlu0 %72
    %v74 = vsel %vm67, %v65, 0.0
    %75 = vadd.xlane.f32.xlu0 %v74
    %v76 = vpop.xlane.xlu0 %75
    %v77 = vsel %vm67, %v66, 0.0
    %78 = vadd.xlane.f32.xlu0 %v77
    %v79 = vpop.xlane.xlu0 %78
    %v80 = vrcp.pop 32.0
    %v81 = vmul.f32 %v70, %v80
    %v82 = vmul.f32 %v73, %v80
    %v83 = vmul.f32 %v76, %v80
    %v84 = vmul.f32 %v79, %v80
    %v85 = vsub.f32 %v63, %v81
    %v86 = vsub.f32 %v64, %v82
    %v87 = vsub.f32 %v65, %v83
    %v88 = vsub.f32 %v66, %v84
    %v89 = vmul.f32 %v85, %v85
    %v90 = vmul.f32 %v86, %v86
    %v91 = vmul.f32 %v87, %v87
    %v92 = vmul.f32 %v88, %v88
    %v93 = vsel %vm67, %v89, 0.0
    %94 = vadd.xlane.f32.xlu0 %v93
    %v95 = vpop.xlane.xlu0 %94
    %v96 = vsel %vm67, %v90, 0.0
    %97 = vadd.xlane.f32.xlu0 %v96
    %v98 = vpop.xlane.xlu0 %97
    %v99 = vsel %vm67, %v91, 0.0
    %100 = vadd.xlane.f32.xlu0 %v99
    %v101 = vpop.xlane.xlu0 %100
    %v102 = vsel %vm67, %v92, 0.0
    %103 = vadd.xlane.f32.xlu0 %v102
    %v104 = vpop.xlane.xlu0 %103
    %v105 = vmul.f32 %v95, %v80
    %v106 = vmul.f32 %v98, %v80
    %v107 = vmul.f32 %v101, %v80
    %v108 = vmul.f32 %v104, %v80
    %v109 = vadd.f32 %v105, 1e-06
    %v110 = vadd.f32 %v106, 1e-06
    %v111 = vadd.f32 %v107, 1e-06
    %v112 = vadd.f32 %v108, 1e-06
    %v113 = vrsqrt.pop %v109
    %v114 = vrsqrt.pop %v110
    %v115 = vrsqrt.pop %v111
    %v116 = vrsqrt.pop %v112
    %v117 = vmul.f32 %v85, %v113
    %v118 = vmul.f32 %v86, %v114
    %v119 = vmul.f32 %v87, %v115
    %v120 = vmul.f32 %v88, %v116
    %v121 = vld [vmem:[%s1] sm:$0x1]
    %v123 = vlaneseq
    %v124 = vshrl.u32 %v123, 7
    %v125 = vsub.s32 0, %v124
    %v126 = vrot.slane %v121, %v125
    %v128 = vmul.f32 %v117, %v126
    %v129 = vmul.f32 %v118, %v126
    %v130 = vmul.f32 %v119, %v126
    %v131 = vmul.f32 %v120, %v126
    %v132 = vld [vmem:[%s2] sm:$0x1]
    %v134 = vlaneseq
    %v135 = vshrl.u32 %v134, 7
    %v136 = vsub.s32 0, %v135
    %v137 = vrot.slane %v132, %v136
    %v139 = vadd.f32 %v128, %v137
    %v140 = vadd.f32 %v129, %v137
    %v141 = vadd.f32 %v130, %v137
    %v142 = vadd.f32 %v131, %v137
    %v143 = vpack.c.bf16 %v140, %v139
    %v144 = vpack.c.bf16 %v142, %v141
    %v145 = vld [vmem:[#allocation6] sm:$0xf]
    %v146 = vld [vmem:[#allocation6 + $0x4] sm:$0xf]
    %v147 = vld [vmem:[#allocation6 + $0x8] sm:$0xf]
    %v148 = vld [vmem:[#allocation6 + $0xc] sm:$0xf]
    %v153 = vunpack.c.l.b16 %v145
    %v154 = vunpack.c.l.b16 %v146
    %v155 = vunpack.c.l.b16 %v147
    %v156 = vunpack.c.l.b16 %v148
    %v157 = vpack.c.b16 %v154, %v153
    %v158 = vpack.c.b16 %v156, %v155
    %v162 = vsel %vm67, %v143, 0
    %v165 = vsel %vm67, %v144, 0
    %167 = vmatprep.subr.bf16.mxu0 0
    %168 = vmatpush1.bf16.msra.mxu0 0
    %169 = vmatprep.subr.bf16.mxu0 0
    %170 = vmatpush1.bf16.msra.mxu0 0
    %171 = vmatprep.subr.bf16.mxu0 0
    %172 = vmatpush1.bf16.msra.mxu0 0
    %173 = vmatprep.subr.bf16.mxu0 0
    %174 = vmatpush1.bf16.msra.mxu0 0
    %175 = vmatprep.subr.bf16.mxu0 0
    %176 = vmatpush1.bf16.msra.mxu0 0
    %177 = vmatprep.subr.bf16.mxu0 0
    %178 = vmatpush1.bf16.msra.mxu0 0
    %179 = vmatprep.subr.bf16.mxu0 0
    %180 = vmatpush1.bf16.msra.mxu0 %v158
    %181 = vmatprep.subr.bf16.mxu0 0
    %182 = vmatpush1.bf16.msra.mxu0 %v157
    %183 = vmatprep.subr.bf16.mxu0 0
    %184 = vmatpush2.bf16.msra.mxu0 0
    %185 = vmatprep.subr.bf16.mxu0 0
    %186 = vmatpush2.bf16.msra.mxu0 0
    %187 = vmatprep.subr.bf16.mxu0 0
    %188 = vmatpush2.bf16.msra.mxu0 0
    %189 = vmatprep.subr.bf16.mxu0 0
    %190 = vmatpush2.bf16.msra.mxu0 0
    %191 = vmatprep.subr.bf16.mxu0 0
    %192 = vmatpush2.bf16.msra.mxu0 0
    %193 = vmatprep.subr.bf16.mxu0 0
    %194 = vmatpush2.bf16.msra.mxu0 0
    %195 = vmatprep.subr.bf16.mxu0 0
    %196 = vmatpush2.bf16.msra.mxu0 0
    %197 = vmatprep.subr.bf16.mxu0 0
    %198 = vmatpush2.bf16.msra.mxu0 0
    %199 = vmatprep.mubr.bf16.mxu0 0
    %200 = vmatmul.mubr.bf16.gmra.mxu0 %v162
    %v201 = vpop.f32.mrf.mxu0
    %v202 = vadd.f32 0.0, %v201
    %v203 = vpop.f32.mrf.mxu0
    %v204 = vpop.f32.mrf.mxu0
    %v205 = vadd.f32 0.0, %v204
    %v206 = vpop.f32.mrf.mxu0
    %207 = vmatprep.mubr.bf16.mxu0 0
    %208 = vmatmul.mubr.bf16.gmra.mxu0 %v165
    %v209 = vpop.f32.mrf.mxu0
    %v210 = vadd.f32 0.0, %v209
    %v211 = vpop.f32.mrf.mxu0
    %v212 = vpop.f32.mrf.mxu0
    %v213 = vadd.f32 0.0, %v212
    %v214 = vpop.f32.mrf.mxu0
    %215 = vdwg.mxu0
    %v216 = vmul.f32 %v202, 0.5
    %v217 = vmul.f32 %v205, 0.5
    %v218 = vmul.f32 %v210, 0.5
    %v219 = vmul.f32 %v213, 0.5
    %v220 = vpack.c.bf16 %v217, %v216
    %v221 = vpack.c.bf16 %v205, %v202
    %223 = vrot.lane.b32.xlu0 %v221, 96
    %v224 = vpop.permute.xlu0 %223
    %vm225 = vcmask 31744
    %v227 = vsel %vm225, %v220, 0
    %v230 = vsel %vm225, %v224, 0
    %232 = vmatprep.subr.bf16.mxu0 0
    %233 = vmatpush1.bf16.xpose.msra.mxu0 0
    %234 = vmatprep.subr.bf16.mxu0 0
    %235 = vmatpush1.bf16.xpose.msra.mxu0 0
    %236 = vmatprep.subr.bf16.mxu0 0
    %237 = vmatpush1.bf16.xpose.msra.mxu0 0
    %238 = vmatprep.subr.bf16.mxu0 0
    %239 = vmatpush1.bf16.xpose.msra.mxu0 0
    %240 = vmatprep.subr.bf16.mxu0 0
    %241 = vmatpush1.bf16.xpose.msra.mxu0 0
    %242 = vmatprep.subr.bf16.mxu0 0
    %243 = vmatpush1.bf16.xpose.msra.mxu0 0
    %244 = vmatprep.subr.bf16.mxu0 0
    %245 = vmatpush1.bf16.xpose.msra.mxu0 0
    %246 = vmatprep.subr.bf16.mxu0 0
    %247 = vmatpush1.bf16.xpose.msra.mxu0 %v230
    %248 = vmatprep.subr.bf16.mxu0 0
    %249 = vmatpush2.bf16.xpose.msra.mxu0 0
    %250 = vmatprep.subr.bf16.mxu0 0
    %251 = vmatpush2.bf16.xpose.msra.mxu0 0
    %252 = vmatprep.subr.bf16.mxu0 0
    %253 = vmatpush2.bf16.xpose.msra.mxu0 0
    %254 = vmatprep.subr.bf16.mxu0 0
    %255 = vmatpush2.bf16.xpose.msra.mxu0 0
    %256 = vmatprep.subr.bf16.mxu0 0
    %257 = vmatpush2.bf16.xpose.msra.mxu0 0
    %258 = vmatprep.subr.bf16.mxu0 0
    %259 = vmatpush2.bf16.xpose.msra.mxu0 0
    %260 = vmatprep.subr.bf16.mxu0 0
    %261 = vmatpush2.bf16.xpose.msra.mxu0 0
    %262 = vmatprep.subr.bf16.mxu0 0
    %263 = vmatpush2.bf16.xpose.msra.mxu0 0
    %264 = vmatprep.mubr.bf16.mxu0 0
    %265 = vmatmul.mubr.bf16.gmra.mxu0 %v227
    %v266 = vpop.f32.mrf.mxu0
    %v267 = vadd.f32 0.0, %v266
    %v268 = vpop.f32.mrf.mxu0
    %v269 = vpop.f32.mrf.mxu0
    %v270 = vadd.f32 0.0, %v269
    %v271 = vpop.f32.mrf.mxu0
    %272 = vdwg.mxu0
    %vm273 = vcmask 130048
    %v274 = vsel %vm273, %v267, -inf
    %275 = vmax.xlane.f32.xlu0 %v274
    %v276 = vpop.xlane.xlu0 %275
    %v277 = vsel %vm273, %v270, -inf
    %278 = vmax.xlane.f32.xlu0 %v277
    %v279 = vpop.xlane.xlu0 %278
    %v280 = vsub.f32 %v267, %v276
    %v281 = vsub.f32 %v270, %v279
    %v282 = vmul.f32 %v280, 1.442695
    %v283 = vpow.pop %v282
    %v284 = vmul.f32 %v281, 1.442695
    %v285 = vpow.pop %v284
    %v286 = vsel %vm273, %v283, 0.0
    %287 = vadd.xlane.f32.xlu0 %v286
    %v288 = vpop.xlane.xlu0 %287
    %v289 = vsel %vm273, %v285, 0.0
    %290 = vadd.xlane.f32.xlu0 %v289
    %v291 = vpop.xlane.xlu0 %290
    %v292 = vrcp.pop %v288
    %v293 = vrcp.pop %v291
    %v294 = vmul.f32 %v283, %v292
    %v295 = vmul.f32 %v285, %v293
    %v296 = vpack.c.bf16 %v295, %v294
    %297 = vrot.lane.b32.xlu0 %v221, 64
    %v298 = vpop.permute.xlu0 %297
    %v301 = vsel %vm273, %v296, 0
    %303 = vmatprep.subr.bf16.mxu0 0
    %304 = vmatpush1.bf16.msra.mxu0 0
    %305 = vmatprep.subr.bf16.mxu0 0
    %306 = vmatpush1.bf16.msra.mxu0 0
    %307 = vmatprep.subr.bf16.mxu0 0
    %308 = vmatpush1.bf16.msra.mxu0 0
    %309 = vmatprep.subr.bf16.mxu0 0
    %310 = vmatpush1.bf16.msra.mxu0 0
    %311 = vmatprep.subr.bf16.mxu0 0
    %312 = vmatpush1.bf16.msra.mxu0 0
    %313 = vmatprep.subr.bf16.mxu0 0
    %314 = vmatpush1.bf16.msra.mxu0 0
    %315 = vmatprep.subr.bf16.mxu0 0
    %316 = vmatpush1.bf16.msra.mxu0 0
    %317 = vmatprep.subr.bf16.mxu0 0
    %318 = vmatpush1.bf16.msra.mxu0 %v298
    %319 = vmatprep.subr.bf16.mxu0 0
    %320 = vmatpush2.bf16.msra.mxu0 0
    %321 = vmatprep.subr.bf16.mxu0 0
    %322 = vmatpush2.bf16.msra.mxu0 0
    %323 = vmatprep.subr.bf16.mxu0 0
    %324 = vmatpush2.bf16.msra.mxu0 0
    %325 = vmatprep.subr.bf16.mxu0 0
    %326 = vmatpush2.bf16.msra.mxu0 0
    %327 = vmatprep.subr.bf16.mxu0 0
    %328 = vmatpush2.bf16.msra.mxu0 0
    %329 = vmatprep.subr.bf16.mxu0 0
    %330 = vmatpush2.bf16.msra.mxu0 0
    %331 = vmatprep.subr.bf16.mxu0 0
    %332 = vmatpush2.bf16.msra.mxu0 0
    %333 = vmatprep.subr.bf16.mxu0 0
    %334 = vmatpush2.bf16.msra.mxu0 0
    %335 = vmatprep.mubr.bf16.mxu0 0
    %336 = vmatmul.mubr.bf16.gmra.mxu0 %v301
    %v337 = vpop.f32.mrf.mxu0
    %v338 = vadd.f32 0.0, %v337
    %v339 = vpop.f32.mrf.mxu0
    %v340 = vpop.f32.mrf.mxu0
    %v341 = vadd.f32 0.0, %v340
    %v342 = vpop.f32.mrf.mxu0
    %343 = vdwg.mxu0
    %344 = vst.msk [vmem:[#allocation2] sm:$0xff] %vm225, %v338
    %345 = vst.msk [vmem:[#allocation2 + $0x8] sm:$0xff] %vm225, %v341
    %347 = vrot.lane.b32.xlu0 %v220, 124
    %v348 = vpop.permute.xlu0 %347
    %349 = vrot.lane.b32.xlu0 %v221, 92
    %v350 = vpop.permute.xlu0 %349
    %v352 = vsel %vm225, %v348, 0
    %v355 = vsel %vm225, %v350, 0
    %357 = vmatprep.subr.bf16.mxu0 0
    %358 = vmatpush1.bf16.xpose.msra.mxu0 0
    %359 = vmatprep.subr.bf16.mxu0 0
    %360 = vmatpush1.bf16.xpose.msra.mxu0 0
    %361 = vmatprep.subr.bf16.mxu0 0
    %362 = vmatpush1.bf16.xpose.msra.mxu0 0
    %363 = vmatprep.subr.bf16.mxu0 0
    %364 = vmatpush1.bf16.xpose.msra.mxu0 0
    %365 = vmatprep.subr.bf16.mxu0 0
    %366 = vmatpush1.bf16.xpose.msra.mxu0 0
    %367 = vmatprep.subr.bf16.mxu0 0
    %368 = vmatpush1.bf16.xpose.msra.mxu0 0
    %369 = vmatprep.subr.bf16.mxu0 0
    %370 = vmatpush1.bf16.xpose.msra.mxu0 0
    %371 = vmatprep.subr.bf16.mxu0 0
    %372 = vmatpush1.bf16.xpose.msra.mxu0 %v355
    %373 = vmatprep.subr.bf16.mxu0 0
    %374 = vmatpush2.bf16.xpose.msra.mxu0 0
    %375 = vmatprep.subr.bf16.mxu0 0
    %376 = vmatpush2.bf16.xpose.msra.mxu0 0
    %377 = vmatprep.subr.bf16.mxu0 0
    %378 = vmatpush2.bf16.xpose.msra.mxu0 0
    %379 = vmatprep.subr.bf16.mxu0 0
    %380 = vmatpush2.bf16.xpose.msra.mxu0 0
    %381 = vmatprep.subr.bf16.mxu0 0
    %382 = vmatpush2.bf16.xpose.msra.mxu0 0
    %383 = vmatprep.subr.bf16.mxu0 0
    %384 = vmatpush2.bf16.xpose.msra.mxu0 0
    %385 = vmatprep.subr.bf16.mxu0 0
    %386 = vmatpush2.bf16.xpose.msra.mxu0 0
    %387 = vmatprep.subr.bf16.mxu0 0
    %388 = vmatpush2.bf16.xpose.msra.mxu0 0
    %389 = vmatprep.mubr.bf16.mxu0 0
    %390 = vmatmul.mubr.bf16.gmra.mxu0 %v352
    %v391 = vpop.f32.mrf.mxu0
    %v392 = vadd.f32 0.0, %v391
    %v393 = vpop.f32.mrf.mxu0
    %v394 = vpop.f32.mrf.mxu0
    %v395 = vadd.f32 0.0, %v394
    %v396 = vpop.f32.mrf.mxu0
    %397 = vdwg.mxu0
    %v398 = vsel %vm273, %v392, -inf
    %399 = vmax.xlane.f32.xlu0 %v398
    %v400 = vpop.xlane.xlu0 %399
    %v401 = vsel %vm273, %v395, -inf
    %402 = vmax.xlane.f32.xlu0 %v401
    %v403 = vpop.xlane.xlu0 %402
    %v404 = vsub.f32 %v392, %v400
    %v405 = vsub.f32 %v395, %v403
    %v406 = vmul.f32 %v404, 1.442695
    %v407 = vpow.pop %v406
    %v408 = vmul.f32 %v405, 1.442695
    %v409 = vpow.pop %v408
    %v410 = vsel %vm273, %v407, 0.0
    %411 = vadd.xlane.f32.xlu0 %v410
    %v412 = vpop.xlane.xlu0 %411
    %v413 = vsel %vm273, %v409, 0.0
    %414 = vadd.xlane.f32.xlu0 %v413
    %v415 = vpop.xlane.xlu0 %414
    %v416 = vrcp.pop %v412
    %v417 = vrcp.pop %v415
    %v418 = vmul.f32 %v407, %v416
    %v419 = vmul.f32 %v409, %v417
    %v420 = vpack.c.bf16 %v419, %v418
    %421 = vrot.lane.b32.xlu0 %v221, 60
    %v422 = vpop.permute.xlu0 %421
    %v425 = vsel %vm273, %v420, 0
    %427 = vmatprep.subr.bf16.mxu0 0
    %428 = vmatpush1.bf16.msra.mxu0 0
    %429 = vmatprep.subr.bf16.mxu0 0
    %430 = vmatpush1.bf16.msra.mxu0 0
    %431 = vmatprep.subr.bf16.mxu0 0
    %432 = vmatpush1.bf16.msra.mxu0 0
    %433 = vmatprep.subr.bf16.mxu0 0
    %434 = vmatpush1.bf16.msra.mxu0 0
    %435 = vmatprep.subr.bf16.mxu0 0
    %436 = vmatpush1.bf16.msra.mxu0 0
    %437 = vmatprep.subr.bf16.mxu0 0
    %438 = vmatpush1.bf16.msra.mxu0 0
    %439 = vmatprep.subr.bf16.mxu0 0
    %440 = vmatpush1.bf16.msra.mxu0 0
    %441 = vmatprep.subr.bf16.mxu0 0
    %442 = vmatpush1.bf16.msra.mxu0 %v422
    %443 = vmatprep.subr.bf16.mxu0 0
    %444 = vmatpush2.bf16.msra.mxu0 0
    %445 = vmatprep.subr.bf16.mxu0 0
    %446 = vmatpush2.bf16.msra.mxu0 0
    %447 = vmatprep.subr.bf16.mxu0 0
    %448 = vmatpush2.bf16.msra.mxu0 0
    %449 = vmatprep.subr.bf16.mxu0 0
    %450 = vmatpush2.bf16.msra.mxu0 0
    %451 = vmatprep.subr.bf16.mxu0 0
    %452 = vmatpush2.bf16.msra.mxu0 0
    %453 = vmatprep.subr.bf16.mxu0 0
    %454 = vmatpush2.bf16.msra.mxu0 0
    %455 = vmatprep.subr.bf16.mxu0 0
    %456 = vmatpush2.bf16.msra.mxu0 0
    %457 = vmatprep.subr.bf16.mxu0 0
    %458 = vmatpush2.bf16.msra.mxu0 0
    %459 = vmatprep.mubr.bf16.mxu0 0
    %460 = vmatmul.mubr.bf16.gmra.mxu0 %v425
    %v461 = vpop.f32.mrf.mxu0
    %v462 = vadd.f32 0.0, %v461
    %v463 = vpop.f32.mrf.mxu0
    %v464 = vpop.f32.mrf.mxu0
    %v465 = vadd.f32 0.0, %v464
    %v466 = vpop.f32.mrf.mxu0
    %467 = vdwg.mxu0
    %470 = vrot.lane.b32.xlu0 %v462, 4
    %v471 = vpop.permute.xlu0 %470
    %472 = vrot.lane.b32.xlu0 %v465, 4
    %v473 = vpop.permute.xlu0 %472
    %vm476 = vcmask 64544
    %477 = vst.msk [vmem:[#allocation2] sm:$0xff] %vm476, %v471
    %478 = vst.msk [vmem:[#allocation2 + $0x8] sm:$0xff] %vm476, %v473
    %479 = vrot.lane.b32.xlu0 %v220, 120
    %v480 = vpop.permute.xlu0 %479
    %481 = vrot.lane.b32.xlu0 %v221, 88
    %v482 = vpop.permute.xlu0 %481
    %v484 = vsel %vm225, %v480, 0
    %v487 = vsel %vm225, %v482, 0
    %489 = vmatprep.subr.bf16.mxu0 0
    %490 = vmatpush1.bf16.xpose.msra.mxu0 0
    %491 = vmatprep.subr.bf16.mxu0 0
    %492 = vmatpush1.bf16.xpose.msra.mxu0 0
    %493 = vmatprep.subr.bf16.mxu0 0
    %494 = vmatpush1.bf16.xpose.msra.mxu0 0
    %495 = vmatprep.subr.bf16.mxu0 0
    %496 = vmatpush1.bf16.xpose.msra.mxu0 0
    %497 = vmatprep.subr.bf16.mxu0 0
    %498 = vmatpush1.bf16.xpose.msra.mxu0 0
    %499 = vmatprep.subr.bf16.mxu0 0
    %500 = vmatpush1.bf16.xpose.msra.mxu0 0
    %501 = vmatprep.subr.bf16.mxu0 0
    %502 = vmatpush1.bf16.xpose.msra.mxu0 0
    %503 = vmatprep.subr.bf16.mxu0 0
    %504 = vmatpush1.bf16.xpose.msra.mxu0 %v487
    %505 = vmatprep.subr.bf16.mxu0 0
    %506 = vmatpush2.bf16.xpose.msra.mxu0 0
    %507 = vmatprep.subr.bf16.mxu0 0
    %508 = vmatpush2.bf16.xpose.msra.mxu0 0
    %509 = vmatprep.subr.bf16.mxu0 0
    %510 = vmatpush2.bf16.xpose.msra.mxu0 0
    %511 = vmatprep.subr.bf16.mxu0 0
    %512 = vmatpush2.bf16.xpose.msra.mxu0 0
    %513 = vmatprep.subr.bf16.mxu0 0
    %514 = vmatpush2.bf16.xpose.msra.mxu0 0
    %515 = vmatprep.subr.bf16.mxu0 0
    %516 = vmatpush2.bf16.xpose.msra.mxu0 0
    %517 = vmatprep.subr.bf16.mxu0 0
    %518 = vmatpush2.bf16.xpose.msra.mxu0 0
    %519 = vmatprep.subr.bf16.mxu0 0
    %520 = vmatpush2.bf16.xpose.msra.mxu0 0
    %521 = vmatprep.mubr.bf16.mxu0 0
    %522 = vmatmul.mubr.bf16.gmra.mxu0 %v484
    %v523 = vpop.f32.mrf.mxu0
    %v524 = vadd.f32 0.0, %v523
    %v525 = vpop.f32.mrf.mxu0
    %v526 = vpop.f32.mrf.mxu0
    %v527 = vadd.f32 0.0, %v526
    %v528 = vpop.f32.mrf.mxu0
    %529 = vdwg.mxu0
    %v530 = vsel %vm273, %v524, -inf
    %531 = vmax.xlane.f32.xlu0 %v530
    %v532 = vpop.xlane.xlu0 %531
    %v533 = vsel %vm273, %v527, -inf
    %534 = vmax.xlane.f32.xlu0 %v533
    %v535 = vpop.xlane.xlu0 %534
    %v536 = vsub.f32 %v524, %v532
    %v537 = vsub.f32 %v527, %v535
    %v538 = vmul.f32 %v536, 1.442695
    %v539 = vpow.pop %v538
    %v540 = vmul.f32 %v537, 1.442695
    %v541 = vpow.pop %v540
    %v542 = vsel %vm273, %v539, 0.0
    %543 = vadd.xlane.f32.xlu0 %v542
    %v544 = vpop.xlane.xlu0 %543
    %v545 = vsel %vm273, %v541, 0.0
    %546 = vadd.xlane.f32.xlu0 %v545
    %v547 = vpop.xlane.xlu0 %546
    %v548 = vrcp.pop %v544
    %v549 = vrcp.pop %v547
    %v550 = vmul.f32 %v539, %v548
    %v551 = vmul.f32 %v541, %v549
    %v552 = vpack.c.bf16 %v551, %v550
    %553 = vrot.lane.b32.xlu0 %v221, 56
    %v554 = vpop.permute.xlu0 %553
    %v557 = vsel %vm273, %v552, 0
    %559 = vmatprep.subr.bf16.mxu0 0
    %560 = vmatpush1.bf16.msra.mxu0 0
    %561 = vmatprep.subr.bf16.mxu0 0
    %562 = vmatpush1.bf16.msra.mxu0 0
    %563 = vmatprep.subr.bf16.mxu0 0
    %564 = vmatpush1.bf16.msra.mxu0 0
    %565 = vmatprep.subr.bf16.mxu0 0
    %566 = vmatpush1.bf16.msra.mxu0 0
    %567 = vmatprep.subr.bf16.mxu0 0
    %568 = vmatpush1.bf16.msra.mxu0 0
    %569 = vmatprep.subr.bf16.mxu0 0
    %570 = vmatpush1.bf16.msra.mxu0 0
    %571 = vmatprep.subr.bf16.mxu0 0
    %572 = vmatpush1.bf16.msra.mxu0 0
    %573 = vmatprep.subr.bf16.mxu0 0
    %574 = vmatpush1.bf16.msra.mxu0 %v554
    %575 = vmatprep.subr.bf16.mxu0 0
    %576 = vmatpush2.bf16.msra.mxu0 0
    %577 = vmatprep.subr.bf16.mxu0 0
    %578 = vmatpush2.bf16.msra.mxu0 0
    %579 = vmatprep.subr.bf16.mxu0 0
    %580 = vmatpush2.bf16.msra.mxu0 0
    %581 = vmatprep.subr.bf16.mxu0 0
    %582 = vmatpush2.bf16.msra.mxu0 0
    %583 = vmatprep.subr.bf16.mxu0 0
    %584 = vmatpush2.bf16.msra.mxu0 0
    %585 = vmatprep.subr.bf16.mxu0 0
    %586 = vmatpush2.bf16.msra.mxu0 0
    %587 = vmatprep.subr.bf16.mxu0 0
    %588 = vmatpush2.bf16.msra.mxu0 0
    %589 = vmatprep.subr.bf16.mxu0 0
    %590 = vmatpush2.bf16.msra.mxu0 0
    %591 = vmatprep.mubr.bf16.mxu0 0
    %592 = vmatmul.mubr.bf16.gmra.mxu0 %v557
    %v593 = vpop.f32.mrf.mxu0
    %v594 = vadd.f32 0.0, %v593
    %v595 = vpop.f32.mrf.mxu0
    %v596 = vpop.f32.mrf.mxu0
    %v597 = vadd.f32 0.0, %v596
    %v598 = vpop.f32.mrf.mxu0
    %599 = vdwg.mxu0
    %602 = vrot.lane.b32.xlu0 %v594, 8
    %v603 = vpop.permute.xlu0 %602
    %604 = vrot.lane.b32.xlu0 %v597, 8
    %v605 = vpop.permute.xlu0 %604
    %vm608 = vcmask 97344
    %609 = vst.msk [vmem:[#allocation2] sm:$0xff] %vm608, %v603
    %610 = vst.msk [vmem:[#allocation2 + $0x8] sm:$0xff] %vm608, %v605
    %611 = vrot.lane.b32.xlu0 %v220, 116
    %v612 = vpop.permute.xlu0 %611
    %613 = vrot.lane.b32.xlu0 %v221, 84
    %v614 = vpop.permute.xlu0 %613
    %v616 = vsel %vm225, %v612, 0
    %v619 = vsel %vm225, %v614, 0
    %621 = vmatprep.subr.bf16.mxu0 0
    %622 = vmatpush1.bf16.xpose.msra.mxu0 0
    %623 = vmatprep.subr.bf16.mxu0 0
    %624 = vmatpush1.bf16.xpose.msra.mxu0 0
    %625 = vmatprep.subr.bf16.mxu0 0
    %626 = vmatpush1.bf16.xpose.msra.mxu0 0
    %627 = vmatprep.subr.bf16.mxu0 0
    %628 = vmatpush1.bf16.xpose.msra.mxu0 0
    %629 = vmatprep.subr.bf16.mxu0 0
    %630 = vmatpush1.bf16.xpose.msra.mxu0 0
    %631 = vmatprep.subr.bf16.mxu0 0
    %632 = vmatpush1.bf16.xpose.msra.mxu0 0
    %633 = vmatprep.subr.bf16.mxu0 0
    %634 = vmatpush1.bf16.xpose.msra.mxu0 0
    %635 = vmatprep.subr.bf16.mxu0 0
    %636 = vmatpush1.bf16.xpose.msra.mxu0 %v619
    %637 = vmatprep.subr.bf16.mxu0 0
    %638 = vmatpush2.bf16.xpose.msra.mxu0 0
    %639 = vmatprep.subr.bf16.mxu0 0
    %640 = vmatpush2.bf16.xpose.msra.mxu0 0
    %641 = vmatprep.subr.bf16.mxu0 0
    %642 = vmatpush2.bf16.xpose.msra.mxu0 0
    %643 = vmatprep.subr.bf16.mxu0 0
    %644 = vmatpush2.bf16.xpose.msra.mxu0 0
    %645 = vmatprep.subr.bf16.mxu0 0
    %646 = vmatpush2.bf16.xpose.msra.mxu0 0
    %647 = vmatprep.subr.bf16.mxu0 0
    %648 = vmatpush2.bf16.xpose.msra.mxu0 0
    %649 = vmatprep.subr.bf16.mxu0 0
    %650 = vmatpush2.bf16.xpose.msra.mxu0 0
    %651 = vmatprep.subr.bf16.mxu0 0
    %652 = vmatpush2.bf16.xpose.msra.mxu0 0
    %653 = vmatprep.mubr.bf16.mxu0 0
    %654 = vmatmul.mubr.bf16.gmra.mxu0 %v616
    %v655 = vpop.f32.mrf.mxu0
    %v656 = vadd.f32 0.0, %v655
    %v657 = vpop.f32.mrf.mxu0
    %v658 = vpop.f32.mrf.mxu0
    %v659 = vadd.f32 0.0, %v658
    %v660 = vpop.f32.mrf.mxu0
    %661 = vdwg.mxu0
    %v662 = vsel %vm273, %v656, -inf
    %663 = vmax.xlane.f32.xlu0 %v662
    %v664 = vpop.xlane.xlu0 %663
    %v665 = vsel %vm273, %v659, -inf
    %666 = vmax.xlane.f32.xlu0 %v665
    %v667 = vpop.xlane.xlu0 %666
    %v668 = vsub.f32 %v656, %v664
    %v669 = vsub.f32 %v659, %v667
    %v670 = vmul.f32 %v668, 1.442695
    %v671 = vpow.pop %v670
    %v672 = vmul.f32 %v669, 1.442695
    %v673 = vpow.pop %v672
    %v674 = vsel %vm273, %v671, 0.0
    %675 = vadd.xlane.f32.xlu0 %v674
    %v676 = vpop.xlane.xlu0 %675
    %v677 = vsel %vm273, %v673, 0.0
    %678 = vadd.xlane.f32.xlu0 %v677
    %v679 = vpop.xlane.xlu0 %678
    %v680 = vrcp.pop %v676
    %v681 = vrcp.pop %v679
    %v682 = vmul.f32 %v671, %v680
    %v683 = vmul.f32 %v673, %v681
    %v684 = vpack.c.bf16 %v683, %v682
    %685 = vrot.lane.b32.xlu0 %v221, 52
    %v686 = vpop.permute.xlu0 %685
    %v689 = vsel %vm273, %v684, 0
    %691 = vmatprep.subr.bf16.mxu0 0
    %692 = vmatpush1.bf16.msra.mxu0 0
    %693 = vmatprep.subr.bf16.mxu0 0
    %694 = vmatpush1.bf16.msra.mxu0 0
    %695 = vmatprep.subr.bf16.mxu0 0
    %696 = vmatpush1.bf16.msra.mxu0 0
    %697 = vmatprep.subr.bf16.mxu0 0
    %698 = vmatpush1.bf16.msra.mxu0 0
    %699 = vmatprep.subr.bf16.mxu0 0
    %700 = vmatpush1.bf16.msra.mxu0 0
    %701 = vmatprep.subr.bf16.mxu0 0
    %702 = vmatpush1.bf16.msra.mxu0 0
    %703 = vmatprep.subr.bf16.mxu0 0
    %704 = vmatpush1.bf16.msra.mxu0 0
    %705 = vmatprep.subr.bf16.mxu0 0
    %706 = vmatpush1.bf16.msra.mxu0 %v686
    %707 = vmatprep.subr.bf16.mxu0 0
    %708 = vmatpush2.bf16.msra.mxu0 0
    %709 = vmatprep.subr.bf16.mxu0 0
    %710 = vmatpush2.bf16.msra.mxu0 0
    %711 = vmatprep.subr.bf16.mxu0 0
    %712 = vmatpush2.bf16.msra.mxu0 0
    %713 = vmatprep.subr.bf16.mxu0 0
    %714 = vmatpush2.bf16.msra.mxu0 0
    %715 = vmatprep.subr.bf16.mxu0 0
    %716 = vmatpush2.bf16.msra.mxu0 0
    %717 = vmatprep.subr.bf16.mxu0 0
    %718 = vmatpush2.bf16.msra.mxu0 0
    %719 = vmatprep.subr.bf16.mxu0 0
    %720 = vmatpush2.bf16.msra.mxu0 0
    %721 = vmatprep.subr.bf16.mxu0 0
    %722 = vmatpush2.bf16.msra.mxu0 0
    %723 = vmatprep.mubr.bf16.mxu0 0
    %724 = vmatmul.mubr.bf16.gmra.mxu0 %v689
    %v725 = vpop.f32.mrf.mxu0
    %v726 = vadd.f32 0.0, %v725
    %v727 = vpop.f32.mrf.mxu0
    %v728 = vpop.f32.mrf.mxu0
    %v729 = vadd.f32 0.0, %v728
    %v730 = vpop.f32.mrf.mxu0
    %731 = vdwg.mxu0
    %734 = vrot.lane.b32.xlu0 %v726, 12
    %v735 = vpop.permute.xlu0 %734
    %736 = vrot.lane.b32.xlu0 %v729, 12
    %v737 = vpop.permute.xlu0 %736
    %vm740 = vcmask 130144
    %741 = vst.msk [vmem:[#allocation2] sm:$0xff] %vm740, %v735
    %742 = vst.msk [vmem:[#allocation2 + $0x8] sm:$0xff] %vm740, %v737
    %743 = vrot.lane.b32.xlu0 %v220, 112
    %v744 = vpop.permute.xlu0 %743
    %745 = vrot.lane.b32.xlu0 %v221, 80
    %v746 = vpop.permute.xlu0 %745
    %v748 = vsel %vm225, %v744, 0
    %v751 = vsel %vm225, %v746, 0
    %753 = vmatprep.subr.bf16.mxu0 0
    %754 = vmatpush1.bf16.xpose.msra.mxu0 0
    %755 = vmatprep.subr.bf16.mxu0 0
    %756 = vmatpush1.bf16.xpose.msra.mxu0 0
    %757 = vmatprep.subr.bf16.mxu0 0
    %758 = vmatpush1.bf16.xpose.msra.mxu0 0
    %759 = vmatprep.subr.bf16.mxu0 0
    %760 = vmatpush1.bf16.xpose.msra.mxu0 0
    %761 = vmatprep.subr.bf16.mxu0 0
    %762 = vmatpush1.bf16.xpose.msra.mxu0 0
    %763 = vmatprep.subr.bf16.mxu0 0
    %764 = vmatpush1.bf16.xpose.msra.mxu0 0
    %765 = vmatprep.subr.bf16.mxu0 0
    %766 = vmatpush1.bf16.xpose.msra.mxu0 0
    %767 = vmatprep.subr.bf16.mxu0 0
    %768 = vmatpush1.bf16.xpose.msra.mxu0 %v751
    %769 = vmatprep.subr.bf16.mxu0 0
    %770 = vmatpush2.bf16.xpose.msra.mxu0 0
    %771 = vmatprep.subr.bf16.mxu0 0
    %772 = vmatpush2.bf16.xpose.msra.mxu0 0
    %773 = vmatprep.subr.bf16.mxu0 0
    %774 = vmatpush2.bf16.xpose.msra.mxu0 0
    %775 = vmatprep.subr.bf16.mxu0 0
    %776 = vmatpush2.bf16.xpose.msra.mxu0 0
    %777 = vmatprep.subr.bf16.mxu0 0
    %778 = vmatpush2.bf16.xpose.msra.mxu0 0
    %779 = vmatprep.subr.bf16.mxu0 0
    %780 = vmatpush2.bf16.xpose.msra.mxu0 0
    %781 = vmatprep.subr.bf16.mxu0 0
    %782 = vmatpush2.bf16.xpose.msra.mxu0 0
    %783 = vmatprep.subr.bf16.mxu0 0
    %784 = vmatpush2.bf16.xpose.msra.mxu0 0
    %785 = vmatprep.mubr.bf16.mxu0 0
    %786 = vmatmul.mubr.bf16.gmra.mxu0 %v748
    %v787 = vpop.f32.mrf.mxu0
    %v788 = vadd.f32 0.0, %v787
    %v789 = vpop.f32.mrf.mxu0
    %v790 = vpop.f32.mrf.mxu0
    %v791 = vadd.f32 0.0, %v790
    %v792 = vpop.f32.mrf.mxu0
    %793 = vdwg.mxu0
    %v794 = vsel %vm273, %v788, -inf
    %795 = vmax.xlane.f32.xlu0 %v794
    %v796 = vpop.xlane.xlu0 %795
    %v797 = vsel %vm273, %v791, -inf
    %798 = vmax.xlane.f32.xlu0 %v797
    %v799 = vpop.xlane.xlu0 %798
    %v800 = vsub.f32 %v788, %v796
    %v801 = vsub.f32 %v791, %v799
    %v802 = vmul.f32 %v800, 1.442695
    %v803 = vpow.pop %v802
    %v804 = vmul.f32 %v801, 1.442695
    %v805 = vpow.pop %v804
    %v806 = vsel %vm273, %v803, 0.0
    %807 = vadd.xlane.f32.xlu0 %v806
    %v808 = vpop.xlane.xlu0 %807
    %v809 = vsel %vm273, %v805, 0.0
    %810 = vadd.xlane.f32.xlu0 %v809
    %v811 = vpop.xlane.xlu0 %810
    %v812 = vrcp.pop %v808
    %v813 = vrcp.pop %v811
    %v814 = vmul.f32 %v803, %v812
    %v815 = vmul.f32 %v805, %v813
    %v816 = vpack.c.bf16 %v815, %v814
    %817 = vrot.lane.b32.xlu0 %v221, 48
    %v818 = vpop.permute.xlu0 %817
    %v821 = vsel %vm273, %v816, 0
    %823 = vmatprep.subr.bf16.mxu0 0
    %824 = vmatpush1.bf16.msra.mxu0 0
    %825 = vmatprep.subr.bf16.mxu0 0
    %826 = vmatpush1.bf16.msra.mxu0 0
    %827 = vmatprep.subr.bf16.mxu0 0
    %828 = vmatpush1.bf16.msra.mxu0 0
    %829 = vmatprep.subr.bf16.mxu0 0
    %830 = vmatpush1.bf16.msra.mxu0 0
    %831 = vmatprep.subr.bf16.mxu0 0
    %832 = vmatpush1.bf16.msra.mxu0 0
    %833 = vmatprep.subr.bf16.mxu0 0
    %834 = vmatpush1.bf16.msra.mxu0 0
    %835 = vmatprep.subr.bf16.mxu0 0
    %836 = vmatpush1.bf16.msra.mxu0 0
    %837 = vmatprep.subr.bf16.mxu0 0
    %838 = vmatpush1.bf16.msra.mxu0 %v818
    %839 = vmatprep.subr.bf16.mxu0 0
    %840 = vmatpush2.bf16.msra.mxu0 0
    %841 = vmatprep.subr.bf16.mxu0 0
    %842 = vmatpush2.bf16.msra.mxu0 0
    %843 = vmatprep.subr.bf16.mxu0 0
    %844 = vmatpush2.bf16.msra.mxu0 0
    %845 = vmatprep.subr.bf16.mxu0 0
    %846 = vmatpush2.bf16.msra.mxu0 0
    %847 = vmatprep.subr.bf16.mxu0 0
    %848 = vmatpush2.bf16.msra.mxu0 0
    %849 = vmatprep.subr.bf16.mxu0 0
    %850 = vmatpush2.bf16.msra.mxu0 0
    %851 = vmatprep.subr.bf16.mxu0 0
    %852 = vmatpush2.bf16.msra.mxu0 0
    %853 = vmatprep.subr.bf16.mxu0 0
    %854 = vmatpush2.bf16.msra.mxu0 0
    %855 = vmatprep.mubr.bf16.mxu0 0
    %856 = vmatmul.mubr.bf16.gmra.mxu0 %v821
    %v857 = vpop.f32.mrf.mxu0
    %v858 = vadd.f32 0.0, %v857
    %v859 = vpop.f32.mrf.mxu0
    %v860 = vpop.f32.mrf.mxu0
    %v861 = vadd.f32 0.0, %v860
    %v862 = vpop.f32.mrf.mxu0
    %863 = vdwg.mxu0
    %866 = vrot.lane.b32.xlu0 %v858, 16
    %v867 = vpop.permute.xlu0 %866
    %868 = vrot.lane.b32.xlu0 %v861, 16
    %v869 = vpop.permute.xlu0 %868
    %vm872 = vcmask 162944
    %873 = vst.msk [vmem:[#allocation2] sm:$0xff] %vm872, %v867
    %874 = vst.msk [vmem:[#allocation2 + $0x8] sm:$0xff] %vm872, %v869
    %875 = vrot.lane.b32.xlu0 %v220, 108
    %v876 = vpop.permute.xlu0 %875
    %877 = vrot.lane.b32.xlu0 %v221, 76
    %v878 = vpop.permute.xlu0 %877
    %v880 = vsel %vm225, %v876, 0
    %v883 = vsel %vm225, %v878, 0
    %885 = vmatprep.subr.bf16.mxu0 0
    %886 = vmatpush1.bf16.xpose.msra.mxu0 0
    %887 = vmatprep.subr.bf16.mxu0 0
    %888 = vmatpush1.bf16.xpose.msra.mxu0 0
    %889 = vmatprep.subr.bf16.mxu0 0
    %890 = vmatpush1.bf16.xpose.msra.mxu0 0
    %891 = vmatprep.subr.bf16.mxu0 0
    %892 = vmatpush1.bf16.xpose.msra.mxu0 0
    %893 = vmatprep.subr.bf16.mxu0 0
    %894 = vmatpush1.bf16.xpose.msra.mxu0 0
    %895 = vmatprep.subr.bf16.mxu0 0
    %896 = vmatpush1.bf16.xpose.msra.mxu0 0
    %897 = vmatprep.subr.bf16.mxu0 0
    %898 = vmatpush1.bf16.xpose.msra.mxu0 0
    %899 = vmatprep.subr.bf16.mxu0 0
    %900 = vmatpush1.bf16.xpose.msra.mxu0 %v883
    %901 = vmatprep.subr.bf16.mxu0 0
    %902 = vmatpush2.bf16.xpose.msra.mxu0 0
    %903 = vmatprep.subr.bf16.mxu0 0
    %904 = vmatpush2.bf16.xpose.msra.mxu0 0
    %905 = vmatprep.subr.bf16.mxu0 0
    %906 = vmatpush2.bf16.xpose.msra.mxu0 0
    %907 = vmatprep.subr.bf16.mxu0 0
    %908 = vmatpush2.bf16.xpose.msra.mxu0 0
    %909 = vmatprep.subr.bf16.mxu0 0
    %910 = vmatpush2.bf16.xpose.msra.mxu0 0
    %911 = vmatprep.subr.bf16.mxu0 0
    %912 = vmatpush2.bf16.xpose.msra.mxu0 0
    %913 = vmatprep.subr.bf16.mxu0 0
    %914 = vmatpush2.bf16.xpose.msra.mxu0 0
    %915 = vmatprep.subr.bf16.mxu0 0
    %916 = vmatpush2.bf16.xpose.msra.mxu0 0
    %917 = vmatprep.mubr.bf16.mxu0 0
    %918 = vmatmul.mubr.bf16.gmra.mxu0 %v880
    %v919 = vpop.f32.mrf.mxu0
    %v920 = vadd.f32 0.0, %v919
    %v921 = vpop.f32.mrf.mxu0
    %v922 = vpop.f32.mrf.mxu0
    %v923 = vadd.f32 0.0, %v922
    %v924 = vpop.f32.mrf.mxu0
    %925 = vdwg.mxu0
    %v926 = vsel %vm273, %v920, -inf
    %927 = vmax.xlane.f32.xlu0 %v926
    %v928 = vpop.xlane.xlu0 %927
    %v929 = vsel %vm273, %v923, -inf
    %930 = vmax.xlane.f32.xlu0 %v929
    %v931 = vpop.xlane.xlu0 %930
    %v932 = vsub.f32 %v920, %v928
    %v933 = vsub.f32 %v923, %v931
    %v934 = vmul.f32 %v932, 1.442695
    %v935 = vpow.pop %v934
    %v936 = vmul.f32 %v933, 1.442695
    %v937 = vpow.pop %v936
    %v938 = vsel %vm273, %v935, 0.0
    %939 = vadd.xlane.f32.xlu0 %v938
    %v940 = vpop.xlane.xlu0 %939
    %v941 = vsel %vm273, %v937, 0.0
    %942 = vadd.xlane.f32.xlu0 %v941
    %v943 = vpop.xlane.xlu0 %942
    %v944 = vrcp.pop %v940
    %v945 = vrcp.pop %v943
    %v946 = vmul.f32 %v935, %v944
    %v947 = vmul.f32 %v937, %v945
    %v948 = vpack.c.bf16 %v947, %v946
    %949 = vrot.lane.b32.xlu0 %v221, 44
    %v950 = vpop.permute.xlu0 %949
    %v953 = vsel %vm273, %v948, 0
    %955 = vmatprep.subr.bf16.mxu0 0
    %956 = vmatpush1.bf16.msra.mxu0 0
    %957 = vmatprep.subr.bf16.mxu0 0
    %958 = vmatpush1.bf16.msra.mxu0 0
    %959 = vmatprep.subr.bf16.mxu0 0
    %960 = vmatpush1.bf16.msra.mxu0 0
    %961 = vmatprep.subr.bf16.mxu0 0
    %962 = vmatpush1.bf16.msra.mxu0 0
    %963 = vmatprep.subr.bf16.mxu0 0
    %964 = vmatpush1.bf16.msra.mxu0 0
    %965 = vmatprep.subr.bf16.mxu0 0
    %966 = vmatpush1.bf16.msra.mxu0 0
    %967 = vmatprep.subr.bf16.mxu0 0
    %968 = vmatpush1.bf16.msra.mxu0 0
    %969 = vmatprep.subr.bf16.mxu0 0
    %970 = vmatpush1.bf16.msra.mxu0 %v950
    %971 = vmatprep.subr.bf16.mxu0 0
    %972 = vmatpush2.bf16.msra.mxu0 0
    %973 = vmatprep.subr.bf16.mxu0 0
    %974 = vmatpush2.bf16.msra.mxu0 0
    %975 = vmatprep.subr.bf16.mxu0 0
    %976 = vmatpush2.bf16.msra.mxu0 0
    %977 = vmatprep.subr.bf16.mxu0 0
    %978 = vmatpush2.bf16.msra.mxu0 0
    %979 = vmatprep.subr.bf16.mxu0 0
    %980 = vmatpush2.bf16.msra.mxu0 0
    %981 = vmatprep.subr.bf16.mxu0 0
    %982 = vmatpush2.bf16.msra.mxu0 0
    %983 = vmatprep.subr.bf16.mxu0 0
    %984 = vmatpush2.bf16.msra.mxu0 0
    %985 = vmatprep.subr.bf16.mxu0 0
    %986 = vmatpush2.bf16.msra.mxu0 0
    %987 = vmatprep.mubr.bf16.mxu0 0
    %988 = vmatmul.mubr.bf16.gmra.mxu0 %v953
    %v989 = vpop.f32.mrf.mxu0
    %v990 = vadd.f32 0.0, %v989
    %v991 = vpop.f32.mrf.mxu0
    %v992 = vpop.f32.mrf.mxu0
    %v993 = vadd.f32 0.0, %v992
    %v994 = vpop.f32.mrf.mxu0
    %995 = vdwg.mxu0
    %998 = vrot.lane.b32.xlu0 %v990, 20
    %v999 = vpop.permute.xlu0 %998
    %1000 = vrot.lane.b32.xlu0 %v993, 20
    %v1001 = vpop.permute.xlu0 %1000
    %vm1004 = vcmask 195744
    %1005 = vst.msk [vmem:[#allocation2] sm:$0xff] %vm1004, %v999
    %1006 = vst.msk [vmem:[#allocation2 + $0x8] sm:$0xff] %vm1004, %v1001
    %1007 = vrot.lane.b32.xlu0 %v220, 104
    %v1008 = vpop.permute.xlu0 %1007
    %1009 = vrot.lane.b32.xlu0 %v221, 72
    %v1010 = vpop.permute.xlu0 %1009
    %v1012 = vsel %vm225, %v1008, 0
    %v1015 = vsel %vm225, %v1010, 0
    %1017 = vmatprep.subr.bf16.mxu0 0
    %1018 = vmatpush1.bf16.xpose.msra.mxu0 0
    %1019 = vmatprep.subr.bf16.mxu0 0
    %1020 = vmatpush1.bf16.xpose.msra.mxu0 0
    %1021 = vmatprep.subr.bf16.mxu0 0
    %1022 = vmatpush1.bf16.xpose.msra.mxu0 0
    %1023 = vmatprep.subr.bf16.mxu0 0
    %1024 = vmatpush1.bf16.xpose.msra.mxu0 0
    %1025 = vmatprep.subr.bf16.mxu0 0
    %1026 = vmatpush1.bf16.xpose.msra.mxu0 0
    %1027 = vmatprep.subr.bf16.mxu0 0
    %1028 = vmatpush1.bf16.xpose.msra.mxu0 0
    %1029 = vmatprep.subr.bf16.mxu0 0
    %1030 = vmatpush1.bf16.xpose.msra.mxu0 0
    %1031 = vmatprep.subr.bf16.mxu0 0
    %1032 = vmatpush1.bf16.xpose.msra.mxu0 %v1015
    %1033 = vmatprep.subr.bf16.mxu0 0
    %1034 = vmatpush2.bf16.xpose.msra.mxu0 0
    %1035 = vmatprep.subr.bf16.mxu0 0
    %1036 = vmatpush2.bf16.xpose.msra.mxu0 0
    %1037 = vmatprep.subr.bf16.mxu0 0
    %1038 = vmatpush2.bf16.xpose.msra.mxu0 0
    %1039 = vmatprep.subr.bf16.mxu0 0
    %1040 = vmatpush2.bf16.xpose.msra.mxu0 0
    %1041 = vmatprep.subr.bf16.mxu0 0
    %1042 = vmatpush2.bf16.xpose.msra.mxu0 0
    %1043 = vmatprep.subr.bf16.mxu0 0
    %1044 = vmatpush2.bf16.xpose.msra.mxu0 0
    %1045 = vmatprep.subr.bf16.mxu0 0
    %1046 = vmatpush2.bf16.xpose.msra.mxu0 0
    %1047 = vmatprep.subr.bf16.mxu0 0
    %1048 = vmatpush2.bf16.xpose.msra.mxu0 0
    %1049 = vmatprep.mubr.bf16.mxu0 0
    %1050 = vmatmul.mubr.bf16.gmra.mxu0 %v1012
    %v1051 = vpop.f32.mrf.mxu0
    %v1052 = vadd.f32 0.0, %v1051
    %v1053 = vpop.f32.mrf.mxu0
    %v1054 = vpop.f32.mrf.mxu0
    %v1055 = vadd.f32 0.0, %v1054
    %v1056 = vpop.f32.mrf.mxu0
    %1057 = vdwg.mxu0
    %v1058 = vsel %vm273, %v1052, -inf
    %1059 = vmax.xlane.f32.xlu0 %v1058
    %v1060 = vpop.xlane.xlu0 %1059
    %v1061 = vsel %vm273, %v1055, -inf
    %1062 = vmax.xlane.f32.xlu0 %v1061
    %v1063 = vpop.xlane.xlu0 %1062
    %v1064 = vsub.f32 %v1052, %v1060
    %v1065 = vsub.f32 %v1055, %v1063
    %v1066 = vmul.f32 %v1064, 1.442695
    %v1067 = vpow.pop %v1066
    %v1068 = vmul.f32 %v1065, 1.442695
    %v1069 = vpow.pop %v1068
    %v1070 = vsel %vm273, %v1067, 0.0
    %1071 = vadd.xlane.f32.xlu0 %v1070
    %v1072 = vpop.xlane.xlu0 %1071
    %v1073 = vsel %vm273, %v1069, 0.0
    %1074 = vadd.xlane.f32.xlu0 %v1073
    %v1075 = vpop.xlane.xlu0 %1074
    %v1076 = vrcp.pop %v1072
    %v1077 = vrcp.pop %v1075
    %v1078 = vmul.f32 %v1067, %v1076
    %v1079 = vmul.f32 %v1069, %v1077
    %v1080 = vpack.c.bf16 %v1079, %v1078
    %1081 = vrot.lane.b32.xlu0 %v221, 40
    %v1082 = vpop.permute.xlu0 %1081
    %v1085 = vsel %vm273, %v1080, 0
    %1087 = vmatprep.subr.bf16.mxu0 0
    %1088 = vmatpush1.bf16.msra.mxu0 0
    %1089 = vmatprep.subr.bf16.mxu0 0
    %1090 = vmatpush1.bf16.msra.mxu0 0
    %1091 = vmatprep.subr.bf16.mxu0 0
    %1092 = vmatpush1.bf16.msra.mxu0 0
    %1093 = vmatprep.subr.bf16.mxu0 0
    %1094 = vmatpush1.bf16.msra.mxu0 0
    %1095 = vmatprep.subr.bf16.mxu0 0
    %1096 = vmatpush1.bf16.msra.mxu0 0
    %1097 = vmatprep.subr.bf16.mxu0 0
    %1098 = vmatpush1.bf16.msra.mxu0 0
    %1099 = vmatprep.subr.bf16.mxu0 0
    %1100 = vmatpush1.bf16.msra.mxu0 0
    %1101 = vmatprep.subr.bf16.mxu0 0
    %1102 = vmatpush1.bf16.msra.mxu0 %v1082
    %1103 = vmatprep.subr.bf16.mxu0 0
    %1104 = vmatpush2.bf16.msra.mxu0 0
    %1105 = vmatprep.subr.bf16.mxu0 0
    %1106 = vmatpush2.bf16.msra.mxu0 0
    %1107 = vmatprep.subr.bf16.mxu0 0
    %1108 = vmatpush2.bf16.msra.mxu0 0
    %1109 = vmatprep.subr.bf16.mxu0 0
    %1110 = vmatpush2.bf16.msra.mxu0 0
    %1111 = vmatprep.subr.bf16.mxu0 0
    %1112 = vmatpush2.bf16.msra.mxu0 0
    %1113 = vmatprep.subr.bf16.mxu0 0
    %1114 = vmatpush2.bf16.msra.mxu0 0
    %1115 = vmatprep.subr.bf16.mxu0 0
    %1116 = vmatpush2.bf16.msra.mxu0 0
    %1117 = vmatprep.subr.bf16.mxu0 0
    %1118 = vmatpush2.bf16.msra.mxu0 0
    %1119 = vmatprep.mubr.bf16.mxu0 0
    %1120 = vmatmul.mubr.bf16.gmra.mxu0 %v1085
    %v1121 = vpop.f32.mrf.mxu0
    %v1122 = vadd.f32 0.0, %v1121
    %v1123 = vpop.f32.mrf.mxu0
    %v1124 = vpop.f32.mrf.mxu0
    %v1125 = vadd.f32 0.0, %v1124
    %v1126 = vpop.f32.mrf.mxu0
    %1127 = vdwg.mxu0
    %1130 = vrot.lane.b32.xlu0 %v1122, 24
    %v1131 = vpop.permute.xlu0 %1130
    %1132 = vrot.lane.b32.xlu0 %v1125, 24
    %v1133 = vpop.permute.xlu0 %1132
    %vm1136 = vcmask 228544
    %1137 = vst.msk [vmem:[#allocation2] sm:$0xff] %vm1136, %v1131
    %1138 = vst.msk [vmem:[#allocation2 + $0x8] sm:$0xff] %vm1136, %v1133
    %1139 = vrot.lane.b32.xlu0 %v220, 100
    %v1140 = vpop.permute.xlu0 %1139
    %1141 = vrot.lane.b32.xlu0 %v221, 68
    %v1142 = vpop.permute.xlu0 %1141
    %v1144 = vsel %vm225, %v1140, 0
    %v1147 = vsel %vm225, %v1142, 0
    %1149 = vmatprep.subr.bf16.mxu0 0
    %1150 = vmatpush1.bf16.xpose.msra.mxu0 0
    %1151 = vmatprep.subr.bf16.mxu0 0
    %1152 = vmatpush1.bf16.xpose.msra.mxu0 0
    %1153 = vmatprep.subr.bf16.mxu0 0
    %1154 = vmatpush1.bf16.xpose.msra.mxu0 0
    %1155 = vmatprep.subr.bf16.mxu0 0
    %1156 = vmatpush1.bf16.xpose.msra.mxu0 0
    %1157 = vmatprep.subr.bf16.mxu0 0
    %1158 = vmatpush1.bf16.xpose.msra.mxu0 0
    %1159 = vmatprep.subr.bf16.mxu0 0
    %1160 = vmatpush1.bf16.xpose.msra.mxu0 0
    %1161 = vmatprep.subr.bf16.mxu0 0
    %1162 = vmatpush1.bf16.xpose.msra.mxu0 0
    %1163 = vmatprep.subr.bf16.mxu0 0
    %1164 = vmatpush1.bf16.xpose.msra.mxu0 %v1147
    %1165 = vmatprep.subr.bf16.mxu0 0
    %1166 = vmatpush2.bf16.xpose.msra.mxu0 0
    %1167 = vmatprep.subr.bf16.mxu0 0
    %1168 = vmatpush2.bf16.xpose.msra.mxu0 0
    %1169 = vmatprep.subr.bf16.mxu0 0
    %1170 = vmatpush2.bf16.xpose.msra.mxu0 0
    %1171 = vmatprep.subr.bf16.mxu0 0
    %1172 = vmatpush2.bf16.xpose.msra.mxu0 0
    %1173 = vmatprep.subr.bf16.mxu0 0
    %1174 = vmatpush2.bf16.xpose.msra.mxu0 0
    %1175 = vmatprep.subr.bf16.mxu0 0
    %1176 = vmatpush2.bf16.xpose.msra.mxu0 0
    %1177 = vmatprep.subr.bf16.mxu0 0
    %1178 = vmatpush2.bf16.xpose.msra.mxu0 0
    %1179 = vmatprep.subr.bf16.mxu0 0
    %1180 = vmatpush2.bf16.xpose.msra.mxu0 0
    %1181 = vmatprep.mubr.bf16.mxu0 0
    %1182 = vmatmul.mubr.bf16.gmra.mxu0 %v1144
    %v1183 = vpop.f32.mrf.mxu0
    %v1184 = vadd.f32 0.0, %v1183
    %v1185 = vpop.f32.mrf.mxu0
    %v1186 = vpop.f32.mrf.mxu0
    %v1187 = vadd.f32 0.0, %v1186
    %v1188 = vpop.f32.mrf.mxu0
    %1189 = vdwg.mxu0
    %v1190 = vsel %vm273, %v1184, -inf
    %1191 = vmax.xlane.f32.xlu0 %v1190
    %v1192 = vpop.xlane.xlu0 %1191
    %v1193 = vsel %vm273, %v1187, -inf
    %1194 = vmax.xlane.f32.xlu0 %v1193
    %v1195 = vpop.xlane.xlu0 %1194
    %v1196 = vsub.f32 %v1184, %v1192
    %v1197 = vsub.f32 %v1187, %v1195
    %v1198 = vmul.f32 %v1196, 1.442695
    %v1199 = vpow.pop %v1198
    %v1200 = vmul.f32 %v1197, 1.442695
    %v1201 = vpow.pop %v1200
    %v1202 = vsel %vm273, %v1199, 0.0
    %1203 = vadd.xlane.f32.xlu0 %v1202
    %v1204 = vpop.xlane.xlu0 %1203
    %v1205 = vsel %vm273, %v1201, 0.0
    %1206 = vadd.xlane.f32.xlu0 %v1205
    %v1207 = vpop.xlane.xlu0 %1206
    %v1208 = vrcp.pop %v1204
    %v1209 = vrcp.pop %v1207
    %v1210 = vmul.f32 %v1199, %v1208
    %v1211 = vmul.f32 %v1201, %v1209
    %v1212 = vpack.c.bf16 %v1211, %v1210
    %1213 = vrot.lane.b32.xlu0 %v221, 36
    %v1214 = vpop.permute.xlu0 %1213
    %v1217 = vsel %vm273, %v1212, 0
    %1219 = vmatprep.subr.bf16.mxu0 0
    %1220 = vmatpush1.bf16.msra.mxu0 0
    %1221 = vmatprep.subr.bf16.mxu0 0
    %1222 = vmatpush1.bf16.msra.mxu0 0
    %1223 = vmatprep.subr.bf16.mxu0 0
    %1224 = vmatpush1.bf16.msra.mxu0 0
    %1225 = vmatprep.subr.bf16.mxu0 0
    %1226 = vmatpush1.bf16.msra.mxu0 0
    %1227 = vmatprep.subr.bf16.mxu0 0
    %1228 = vmatpush1.bf16.msra.mxu0 0
    %1229 = vmatprep.subr.bf16.mxu0 0
    %1230 = vmatpush1.bf16.msra.mxu0 0
    %1231 = vmatprep.subr.bf16.mxu0 0
    %1232 = vmatpush1.bf16.msra.mxu0 0
    %1233 = vmatprep.subr.bf16.mxu0 0
    %1234 = vmatpush1.bf16.msra.mxu0 %v1214
    %1235 = vmatprep.subr.bf16.mxu0 0
    %1236 = vmatpush2.bf16.msra.mxu0 0
    %1237 = vmatprep.subr.bf16.mxu0 0
    %1238 = vmatpush2.bf16.msra.mxu0 0
    %1239 = vmatprep.subr.bf16.mxu0 0
    %1240 = vmatpush2.bf16.msra.mxu0 0
    %1241 = vmatprep.subr.bf16.mxu0 0
    %1242 = vmatpush2.bf16.msra.mxu0 0
    %1243 = vmatprep.subr.bf16.mxu0 0
    %1244 = vmatpush2.bf16.msra.mxu0 0
    %1245 = vmatprep.subr.bf16.mxu0 0
    %1246 = vmatpush2.bf16.msra.mxu0 0
    %1247 = vmatprep.subr.bf16.mxu0 0
    %1248 = vmatpush2.bf16.msra.mxu0 0
    %1249 = vmatprep.subr.bf16.mxu0 0
    %1250 = vmatpush2.bf16.msra.mxu0 0
    %1251 = vmatprep.mubr.bf16.mxu0 0
    %1252 = vmatmul.mubr.bf16.gmra.mxu0 %v1217
    %v1253 = vpop.f32.mrf.mxu0
    %v1254 = vadd.f32 0.0, %v1253
    %v1255 = vpop.f32.mrf.mxu0
    %v1256 = vpop.f32.mrf.mxu0
    %v1257 = vadd.f32 0.0, %v1256
    %v1258 = vpop.f32.mrf.mxu0
    %1259 = vdwg.mxu0
    %1262 = vrot.lane.b32.xlu0 %v1254, 28
    %v1263 = vpop.permute.xlu0 %1262
    %1264 = vrot.lane.b32.xlu0 %v1257, 28
    %v1265 = vpop.permute.xlu0 %1264
    %vm1268 = vcmask 261344
    %1269 = vst.msk [vmem:[#allocation2] sm:$0xff] %vm1268, %v1263
    %1270 = vst.msk [vmem:[#allocation2 + $0x8] sm:$0xff] %vm1268, %v1265
    %v1271 = vpack.c.bf16 %v219, %v218
    %v1272 = vpack.c.bf16 %v213, %v210
    %1274 = vrot.lane.b32.xlu0 %v1272, 96
    %v1275 = vpop.permute.xlu0 %1274
    %v1277 = vsel %vm225, %v1271, 0
    %v1280 = vsel %vm225, %v1275, 0
    %1282 = vmatprep.subr.bf16.mxu0 0
    %1283 = vmatpush1.bf16.xpose.msra.mxu0 0
    %1284 = vmatprep.subr.bf16.mxu0 0
    %1285 = vmatpush1.bf16.xpose.msra.mxu0 0
    %1286 = vmatprep.subr.bf16.mxu0 0
    %1287 = vmatpush1.bf16.xpose.msra.mxu0 0
    %1288 = vmatprep.subr.bf16.mxu0 0
    %1289 = vmatpush1.bf16.xpose.msra.mxu0 0
    %1290 = vmatprep.subr.bf16.mxu0 0
    %1291 = vmatpush1.bf16.xpose.msra.mxu0 0
    %1292 = vmatprep.subr.bf16.mxu0 0
    %1293 = vmatpush1.bf16.xpose.msra.mxu0 0
    %1294 = vmatprep.subr.bf16.mxu0 0
    %1295 = vmatpush1.bf16.xpose.msra.mxu0 0
    %1296 = vmatprep.subr.bf16.mxu0 0
    %1297 = vmatpush1.bf16.xpose.msra.mxu0 %v1280
    %1298 = vmatprep.subr.bf16.mxu0 0
    %1299 = vmatpush2.bf16.xpose.msra.mxu0 0
    %1300 = vmatprep.subr.bf16.mxu0 0
    %1301 = vmatpush2.bf16.xpose.msra.mxu0 0
    %1302 = vmatprep.subr.bf16.mxu0 0
    %1303 = vmatpush2.bf16.xpose.msra.mxu0 0
    %1304 = vmatprep.subr.bf16.mxu0 0
    %1305 = vmatpush2.bf16.xpose.msra.mxu0 0
    %1306 = vmatprep.subr.bf16.mxu0 0
    %1307 = vmatpush2.bf16.xpose.msra.mxu0 0
    %1308 = vmatprep.subr.bf16.mxu0 0
    %1309 = vmatpush2.bf16.xpose.msra.mxu0 0
    %1310 = vmatprep.subr.bf16.mxu0 0
    %1311 = vmatpush2.bf16.xpose.msra.mxu0 0
    %1312 = vmatprep.subr.bf16.mxu0 0
    %1313 = vmatpush2.bf16.xpose.msra.mxu0 0
    %1314 = vmatprep.mubr.bf16.mxu0 0
    %1315 = vmatmul.mubr.bf16.gmra.mxu0 %v1277
    %v1316 = vpop.f32.mrf.mxu0
    %v1317 = vadd.f32 0.0, %v1316
    %v1318 = vpop.f32.mrf.mxu0
    %v1319 = vpop.f32.mrf.mxu0
    %v1320 = vadd.f32 0.0, %v1319
    %v1321 = vpop.f32.mrf.mxu0
    %1322 = vdwg.mxu0
    %v1323 = vsel %vm273, %v1317, -inf
    %1324 = vmax.xlane.f32.xlu0 %v1323
    %v1325 = vpop.xlane.xlu0 %1324
    %v1326 = vsel %vm273, %v1320, -inf
    %1327 = vmax.xlane.f32.xlu0 %v1326
    %v1328 = vpop.xlane.xlu0 %1327
    %v1329 = vsub.f32 %v1317, %v1325
    %v1330 = vsub.f32 %v1320, %v1328
    %v1331 = vmul.f32 %v1329, 1.442695
    %v1332 = vpow.pop %v1331
    %v1333 = vmul.f32 %v1330, 1.442695
    %v1334 = vpow.pop %v1333
    %v1335 = vsel %vm273, %v1332, 0.0
    %1336 = vadd.xlane.f32.xlu0 %v1335
    %v1337 = vpop.xlane.xlu0 %1336
    %v1338 = vsel %vm273, %v1334, 0.0
    %1339 = vadd.xlane.f32.xlu0 %v1338
    %v1340 = vpop.xlane.xlu0 %1339
    %v1341 = vrcp.pop %v1337
    %v1342 = vrcp.pop %v1340
    %v1343 = vmul.f32 %v1332, %v1341
    %v1344 = vmul.f32 %v1334, %v1342
    %v1345 = vpack.c.bf16 %v1344, %v1343
    %1346 = vrot.lane.b32.xlu0 %v1272, 64
    %v1347 = vpop.permute.xlu0 %1346
    %v1350 = vsel %vm273, %v1345, 0
    %1352 = vmatprep.subr.bf16.mxu0 0
    %1353 = vmatpush1.bf16.msra.mxu0 0
    %1354 = vmatprep.subr.bf16.mxu0 0
    %1355 = vmatpush1.bf16.msra.mxu0 0
    %1356 = vmatprep.subr.bf16.mxu0 0
    %1357 = vmatpush1.bf16.msra.mxu0 0
    %1358 = vmatprep.subr.bf16.mxu0 0
    %1359 = vmatpush1.bf16.msra.mxu0 0
    %1360 = vmatprep.subr.bf16.mxu0 0
    %1361 = vmatpush1.bf16.msra.mxu0 0
    %1362 = vmatprep.subr.bf16.mxu0 0
    %1363 = vmatpush1.bf16.msra.mxu0 0
    %1364 = vmatprep.subr.bf16.mxu0 0
    %1365 = vmatpush1.bf16.msra.mxu0 0
    %1366 = vmatprep.subr.bf16.mxu0 0
    %1367 = vmatpush1.bf16.msra.mxu0 %v1347
    %1368 = vmatprep.subr.bf16.mxu0 0
    %1369 = vmatpush2.bf16.msra.mxu0 0
    %1370 = vmatprep.subr.bf16.mxu0 0
    %1371 = vmatpush2.bf16.msra.mxu0 0
    %1372 = vmatprep.subr.bf16.mxu0 0
    %1373 = vmatpush2.bf16.msra.mxu0 0
    %1374 = vmatprep.subr.bf16.mxu0 0
    %1375 = vmatpush2.bf16.msra.mxu0 0
    %1376 = vmatprep.subr.bf16.mxu0 0
    %1377 = vmatpush2.bf16.msra.mxu0 0
    %1378 = vmatprep.subr.bf16.mxu0 0
    %1379 = vmatpush2.bf16.msra.mxu0 0
    %1380 = vmatprep.subr.bf16.mxu0 0
    %1381 = vmatpush2.bf16.msra.mxu0 0
    %1382 = vmatprep.subr.bf16.mxu0 0
    %1383 = vmatpush2.bf16.msra.mxu0 0
    %1384 = vmatprep.mubr.bf16.mxu0 0
    %1385 = vmatmul.mubr.bf16.gmra.mxu0 %v1350
    %v1386 = vpop.f32.mrf.mxu0
    %v1387 = vadd.f32 0.0, %v1386
    %v1388 = vpop.f32.mrf.mxu0
    %v1389 = vpop.f32.mrf.mxu0
    %v1390 = vadd.f32 0.0, %v1389
    %v1391 = vpop.f32.mrf.mxu0
    %1392 = vdwg.mxu0
    %1393 = vst.msk [vmem:[#allocation2 + $0x10] sm:$0xff] %vm225, %v1387
    %1394 = vst.msk [vmem:[#allocation2 + $0x18] sm:$0xff] %vm225, %v1390
    %1396 = vrot.lane.b32.xlu0 %v1271, 124
    %v1397 = vpop.permute.xlu0 %1396
    %1398 = vrot.lane.b32.xlu0 %v1272, 92
    %v1399 = vpop.permute.xlu0 %1398
    %v1401 = vsel %vm225, %v1397, 0
    %v1404 = vsel %vm225, %v1399, 0
    %1406 = vmatprep.subr.bf16.mxu0 0
    %1407 = vmatpush1.bf16.xpose.msra.mxu0 0
    %1408 = vmatprep.subr.bf16.mxu0 0
    %1409 = vmatpush1.bf16.xpose.msra.mxu0 0
    %1410 = vmatprep.subr.bf16.mxu0 0
    %1411 = vmatpush1.bf16.xpose.msra.mxu0 0
    %1412 = vmatprep.subr.bf16.mxu0 0
    %1413 = vmatpush1.bf16.xpose.msra.mxu0 0
    %1414 = vmatprep.subr.bf16.mxu0 0
    %1415 = vmatpush1.bf16.xpose.msra.mxu0 0
    %1416 = vmatprep.subr.bf16.mxu0 0
    %1417 = vmatpush1.bf16.xpose.msra.mxu0 0
    %1418 = vmatprep.subr.bf16.mxu0 0
    %1419 = vmatpush1.bf16.xpose.msra.mxu0 0
    %1420 = vmatprep.subr.bf16.mxu0 0
    %1421 = vmatpush1.bf16.xpose.msra.mxu0 %v1404
    %1422 = vmatprep.subr.bf16.mxu0 0
    %1423 = vmatpush2.bf16.xpose.msra.mxu0 0
    %1424 = vmatprep.subr.bf16.mxu0 0
    %1425 = vmatpush2.bf16.xpose.msra.mxu0 0
    %1426 = vmatprep.subr.bf16.mxu0 0
    %1427 = vmatpush2.bf16.xpose.msra.mxu0 0
    %1428 = vmatprep.subr.bf16.mxu0 0
    %1429 = vmatpush2.bf16.xpose.msra.mxu0 0
    %1430 = vmatprep.subr.bf16.mxu0 0
    %1431 = vmatpush2.bf16.xpose.msra.mxu0 0
    %1432 = vmatprep.subr.bf16.mxu0 0
    %1433 = vmatpush2.bf16.xpose.msra.mxu0 0
    %1434 = vmatprep.subr.bf16.mxu0 0
    %1435 = vmatpush2.bf16.xpose.msra.mxu0 0
    %1436 = vmatprep.subr.bf16.mxu0 0
    %1437 = vmatpush2.bf16.xpose.msra.mxu0 0
    %1438 = vmatprep.mubr.bf16.mxu0 0
    %1439 = vmatmul.mubr.bf16.gmra.mxu0 %v1401
    %v1440 = vpop.f32.mrf.mxu0
    %v1441 = vadd.f32 0.0, %v1440
    %v1442 = vpop.f32.mrf.mxu0
    %v1443 = vpop.f32.mrf.mxu0
    %v1444 = vadd.f32 0.0, %v1443
    %v1445 = vpop.f32.mrf.mxu0
    %1446 = vdwg.mxu0
    %v1447 = vsel %vm273, %v1441, -inf
    %1448 = vmax.xlane.f32.xlu0 %v1447
    %v1449 = vpop.xlane.xlu0 %1448
    %v1450 = vsel %vm273, %v1444, -inf
    %1451 = vmax.xlane.f32.xlu0 %v1450
    %v1452 = vpop.xlane.xlu0 %1451
    %v1453 = vsub.f32 %v1441, %v1449
    %v1454 = vsub.f32 %v1444, %v1452
    %v1455 = vmul.f32 %v1453, 1.442695
    %v1456 = vpow.pop %v1455
    %v1457 = vmul.f32 %v1454, 1.442695
    %v1458 = vpow.pop %v1457
    %v1459 = vsel %vm273, %v1456, 0.0
    %1460 = vadd.xlane.f32.xlu0 %v1459
    %v1461 = vpop.xlane.xlu0 %1460
    %v1462 = vsel %vm273, %v1458, 0.0
    %1463 = vadd.xlane.f32.xlu0 %v1462
    %v1464 = vpop.xlane.xlu0 %1463
    %v1465 = vrcp.pop %v1461
    %v1466 = vrcp.pop %v1464
    %v1467 = vmul.f32 %v1456, %v1465
    %v1468 = vmul.f32 %v1458, %v1466
    %v1469 = vpack.c.bf16 %v1468, %v1467
    %1470 = vrot.lane.b32.xlu0 %v1272, 60
    %v1471 = vpop.permute.xlu0 %1470
    %v1474 = vsel %vm273, %v1469, 0
    %1476 = vmatprep.subr.bf16.mxu0 0
    %1477 = vmatpush1.bf16.msra.mxu0 0
    %1478 = vmatprep.subr.bf16.mxu0 0
    %1479 = vmatpush1.bf16.msra.mxu0 0
    %1480 = vmatprep.subr.bf16.mxu0 0
    %1481 = vmatpush1.bf16.msra.mxu0 0
    %1482 = vmatprep.subr.bf16.mxu0 0
    %1483 = vmatpush1.bf16.msra.mxu0 0
    %1484 = vmatprep.subr.bf16.mxu0 0
    %1485 = vmatpush1.bf16.msra.mxu0 0
    %1486 = vmatprep.subr.bf16.mxu0 0
    %1487 = vmatpush1.bf16.msra.mxu0 0
    %1488 = vmatprep.subr.bf16.mxu0 0
    %1489 = vmatpush1.bf16.msra.mxu0 0
    %1490 = vmatprep.subr.bf16.mxu0 0
    %1491 = vmatpush1.bf16.msra.mxu0 %v1471
    %1492 = vmatprep.subr.bf16.mxu0 0
    %1493 = vmatpush2.bf16.msra.mxu0 0
    %1494 = vmatprep.subr.bf16.mxu0 0
    %1495 = vmatpush2.bf16.msra.mxu0 0
    %1496 = vmatprep.subr.bf16.mxu0 0
    %1497 = vmatpush2.bf16.msra.mxu0 0
    %1498 = vmatprep.subr.bf16.mxu0 0
    %1499 = vmatpush2.bf16.msra.mxu0 0
    %1500 = vmatprep.subr.bf16.mxu0 0
    %1501 = vmatpush2.bf16.msra.mxu0 0
    %1502 = vmatprep.subr.bf16.mxu0 0
    %1503 = vmatpush2.bf16.msra.mxu0 0
    %1504 = vmatprep.subr.bf16.mxu0 0
    %1505 = vmatpush2.bf16.msra.mxu0 0
    %1506 = vmatprep.subr.bf16.mxu0 0
    %1507 = vmatpush2.bf16.msra.mxu0 0
    %1508 = vmatprep.mubr.bf16.mxu0 0
    %1509 = vmatmul.mubr.bf16.gmra.mxu0 %v1474
    %v1510 = vpop.f32.mrf.mxu0
    %v1511 = vadd.f32 0.0, %v1510
    %v1512 = vpop.f32.mrf.mxu0
    %v1513 = vpop.f32.mrf.mxu0
    %v1514 = vadd.f32 0.0, %v1513
    %v1515 = vpop.f32.mrf.mxu0
    %1516 = vdwg.mxu0
    %1519 = vrot.lane.b32.xlu0 %v1511, 4
    %v1520 = vpop.permute.xlu0 %1519
    %1521 = vrot.lane.b32.xlu0 %v1514, 4
    %v1522 = vpop.permute.xlu0 %1521
    %1525 = vst.msk [vmem:[#allocation2 + $0x10] sm:$0xff] %vm476, %v1520
    %1526 = vst.msk [vmem:[#allocation2 + $0x18] sm:$0xff] %vm476, %v1522
    %1527 = vrot.lane.b32.xlu0 %v1271, 120
    %v1528 = vpop.permute.xlu0 %1527
    %1529 = vrot.lane.b32.xlu0 %v1272, 88
    %v1530 = vpop.permute.xlu0 %1529
    %v1532 = vsel %vm225, %v1528, 0
    %v1535 = vsel %vm225, %v1530, 0
    %1537 = vmatprep.subr.bf16.mxu0 0
    %1538 = vmatpush1.bf16.xpose.msra.mxu0 0
    %1539 = vmatprep.subr.bf16.mxu0 0
    %1540 = vmatpush1.bf16.xpose.msra.mxu0 0
    %1541 = vmatprep.subr.bf16.mxu0 0
    %1542 = vmatpush1.bf16.xpose.msra.mxu0 0
    %1543 = vmatprep.subr.bf16.mxu0 0
    %1544 = vmatpush1.bf16.xpose.msra.mxu0 0
    %1545 = vmatprep.subr.bf16.mxu0 0
    %1546 = vmatpush1.bf16.xpose.msra.mxu0 0
    %1547 = vmatprep.subr.bf16.mxu0 0
    %1548 = vmatpush1.bf16.xpose.msra.mxu0 0
    %1549 = vmatprep.subr.bf16.mxu0 0
    %1550 = vmatpush1.bf16.xpose.msra.mxu0 0
    %1551 = vmatprep.subr.bf16.mxu0 0
    %1552 = vmatpush1.bf16.xpose.msra.mxu0 %v1535
    %1553 = vmatprep.subr.bf16.mxu0 0
    %1554 = vmatpush2.bf16.xpose.msra.mxu0 0
    %1555 = vmatprep.subr.bf16.mxu0 0
    %1556 = vmatpush2.bf16.xpose.msra.mxu0 0
    %1557 = vmatprep.subr.bf16.mxu0 0
    %1558 = vmatpush2.bf16.xpose.msra.mxu0 0
    %1559 = vmatprep.subr.bf16.mxu0 0
    %1560 = vmatpush2.bf16.xpose.msra.mxu0 0
    %1561 = vmatprep.subr.bf16.mxu0 0
    %1562 = vmatpush2.bf16.xpose.msra.mxu0 0
    %1563 = vmatprep.subr.bf16.mxu0 0
    %1564 = vmatpush2.bf16.xpose.msra.mxu0 0
    %1565 = vmatprep.subr.bf16.mxu0 0
    %1566 = vmatpush2.bf16.xpose.msra.mxu0 0
    %1567 = vmatprep.subr.bf16.mxu0 0
    %1568 = vmatpush2.bf16.xpose.msra.mxu0 0
    %1569 = vmatprep.mubr.bf16.mxu0 0
    %1570 = vmatmul.mubr.bf16.gmra.mxu0 %v1532
    %v1571 = vpop.f32.mrf.mxu0
    %v1572 = vadd.f32 0.0, %v1571
    %v1573 = vpop.f32.mrf.mxu0
    %v1574 = vpop.f32.mrf.mxu0
    %v1575 = vadd.f32 0.0, %v1574
    %v1576 = vpop.f32.mrf.mxu0
    %1577 = vdwg.mxu0
    %v1578 = vsel %vm273, %v1572, -inf
    %1579 = vmax.xlane.f32.xlu0 %v1578
    %v1580 = vpop.xlane.xlu0 %1579
    %v1581 = vsel %vm273, %v1575, -inf
    %1582 = vmax.xlane.f32.xlu0 %v1581
    %v1583 = vpop.xlane.xlu0 %1582
    %v1584 = vsub.f32 %v1572, %v1580
    %v1585 = vsub.f32 %v1575, %v1583
    %v1586 = vmul.f32 %v1584, 1.442695
    %v1587 = vpow.pop %v1586
    %v1588 = vmul.f32 %v1585, 1.442695
    %v1589 = vpow.pop %v1588
    %v1590 = vsel %vm273, %v1587, 0.0
    %1591 = vadd.xlane.f32.xlu0 %v1590
    %v1592 = vpop.xlane.xlu0 %1591
    %v1593 = vsel %vm273, %v1589, 0.0
    %1594 = vadd.xlane.f32.xlu0 %v1593
    %v1595 = vpop.xlane.xlu0 %1594
    %v1596 = vrcp.pop %v1592
    %v1597 = vrcp.pop %v1595
    %v1598 = vmul.f32 %v1587, %v1596
    %v1599 = vmul.f32 %v1589, %v1597
    %v1600 = vpack.c.bf16 %v1599, %v1598
    %1601 = vrot.lane.b32.xlu0 %v1272, 56
    %v1602 = vpop.permute.xlu0 %1601
    %v1605 = vsel %vm273, %v1600, 0
    %1607 = vmatprep.subr.bf16.mxu0 0
    %1608 = vmatpush1.bf16.msra.mxu0 0
    %1609 = vmatprep.subr.bf16.mxu0 0
    %1610 = vmatpush1.bf16.msra.mxu0 0
    %1611 = vmatprep.subr.bf16.mxu0 0
    %1612 = vmatpush1.bf16.msra.mxu0 0
    %1613 = vmatprep.subr.bf16.mxu0 0
    %1614 = vmatpush1.bf16.msra.mxu0 0
    %1615 = vmatprep.subr.bf16.mxu0 0
    %1616 = vmatpush1.bf16.msra.mxu0 0
    %1617 = vmatprep.subr.bf16.mxu0 0
    %1618 = vmatpush1.bf16.msra.mxu0 0
    %1619 = vmatprep.subr.bf16.mxu0 0
    %1620 = vmatpush1.bf16.msra.mxu0 0
    %1621 = vmatprep.subr.bf16.mxu0 0
    %1622 = vmatpush1.bf16.msra.mxu0 %v1602
    %1623 = vmatprep.subr.bf16.mxu0 0
    %1624 = vmatpush2.bf16.msra.mxu0 0
    %1625 = vmatprep.subr.bf16.mxu0 0
    %1626 = vmatpush2.bf16.msra.mxu0 0
    %1627 = vmatprep.subr.bf16.mxu0 0
    %1628 = vmatpush2.bf16.msra.mxu0 0
    %1629 = vmatprep.subr.bf16.mxu0 0
    %1630 = vmatpush2.bf16.msra.mxu0 0
    %1631 = vmatprep.subr.bf16.mxu0 0
    %1632 = vmatpush2.bf16.msra.mxu0 0
    %1633 = vmatprep.subr.bf16.mxu0 0
    %1634 = vmatpush2.bf16.msra.mxu0 0
    %1635 = vmatprep.subr.bf16.mxu0 0
    %1636 = vmatpush2.bf16.msra.mxu0 0
    %1637 = vmatprep.subr.bf16.mxu0 0
    %1638 = vmatpush2.bf16.msra.mxu0 0
    %1639 = vmatprep.mubr.bf16.mxu0 0
    %1640 = vmatmul.mubr.bf16.gmra.mxu0 %v1605
    %v1641 = vpop.f32.mrf.mxu0
    %v1642 = vadd.f32 0.0, %v1641
    %v1643 = vpop.f32.mrf.mxu0
    %v1644 = vpop.f32.mrf.mxu0
    %v1645 = vadd.f32 0.0, %v1644
    %v1646 = vpop.f32.mrf.mxu0
    %1647 = vdwg.mxu0
    %1650 = vrot.lane.b32.xlu0 %v1642, 8
    %v1651 = vpop.permute.xlu0 %1650
    %1652 = vrot.lane.b32.xlu0 %v1645, 8
    %v1653 = vpop.permute.xlu0 %1652
    %1656 = vst.msk [vmem:[#allocation2 + $0x10] sm:$0xff] %vm608, %v1651
    %1657 = vst.msk [vmem:[#allocation2 + $0x18] sm:$0xff] %vm608, %v1653
    %1658 = vrot.lane.b32.xlu0 %v1271, 116
    %v1659 = vpop.permute.xlu0 %1658
    %1660 = vrot.lane.b32.xlu0 %v1272, 84
    %v1661 = vpop.permute.xlu0 %1660
    %v1663 = vsel %vm225, %v1659, 0
    %v1666 = vsel %vm225, %v1661, 0
    %1668 = vmatprep.subr.bf16.mxu0 0
    %1669 = vmatpush1.bf16.xpose.msra.mxu0 0
    %1670 = vmatprep.subr.bf16.mxu0 0
    %1671 = vmatpush1.bf16.xpose.msra.mxu0 0
    %1672 = vmatprep.subr.bf16.mxu0 0
    %1673 = vmatpush1.bf16.xpose.msra.mxu0 0
    %1674 = vmatprep.subr.bf16.mxu0 0
    %1675 = vmatpush1.bf16.xpose.msra.mxu0 0
    %1676 = vmatprep.subr.bf16.mxu0 0
    %1677 = vmatpush1.bf16.xpose.msra.mxu0 0
    %1678 = vmatprep.subr.bf16.mxu0 0
    %1679 = vmatpush1.bf16.xpose.msra.mxu0 0
    %1680 = vmatprep.subr.bf16.mxu0 0
    %1681 = vmatpush1.bf16.xpose.msra.mxu0 0
    %1682 = vmatprep.subr.bf16.mxu0 0
    %1683 = vmatpush1.bf16.xpose.msra.mxu0 %v1666
    %1684 = vmatprep.subr.bf16.mxu0 0
    %1685 = vmatpush2.bf16.xpose.msra.mxu0 0
    %1686 = vmatprep.subr.bf16.mxu0 0
    %1687 = vmatpush2.bf16.xpose.msra.mxu0 0
    %1688 = vmatprep.subr.bf16.mxu0 0
    %1689 = vmatpush2.bf16.xpose.msra.mxu0 0
    %1690 = vmatprep.subr.bf16.mxu0 0
    %1691 = vmatpush2.bf16.xpose.msra.mxu0 0
    %1692 = vmatprep.subr.bf16.mxu0 0
    %1693 = vmatpush2.bf16.xpose.msra.mxu0 0
    %1694 = vmatprep.subr.bf16.mxu0 0
    %1695 = vmatpush2.bf16.xpose.msra.mxu0 0
    %1696 = vmatprep.subr.bf16.mxu0 0
    %1697 = vmatpush2.bf16.xpose.msra.mxu0 0
    %1698 = vmatprep.subr.bf16.mxu0 0
    %1699 = vmatpush2.bf16.xpose.msra.mxu0 0
    %1700 = vmatprep.mubr.bf16.mxu0 0
    %1701 = vmatmul.mubr.bf16.gmra.mxu0 %v1663
    %v1702 = vpop.f32.mrf.mxu0
    %v1703 = vadd.f32 0.0, %v1702
    %v1704 = vpop.f32.mrf.mxu0
    %v1705 = vpop.f32.mrf.mxu0
    %v1706 = vadd.f32 0.0, %v1705
    %v1707 = vpop.f32.mrf.mxu0
    %1708 = vdwg.mxu0
    %v1709 = vsel %vm273, %v1703, -inf
    %1710 = vmax.xlane.f32.xlu0 %v1709
    %v1711 = vpop.xlane.xlu0 %1710
    %v1712 = vsel %vm273, %v1706, -inf
    %1713 = vmax.xlane.f32.xlu0 %v1712
    %v1714 = vpop.xlane.xlu0 %1713
    %v1715 = vsub.f32 %v1703, %v1711
    %v1716 = vsub.f32 %v1706, %v1714
    %v1717 = vmul.f32 %v1715, 1.442695
    %v1718 = vpow.pop %v1717
    %v1719 = vmul.f32 %v1716, 1.442695
    %v1720 = vpow.pop %v1719
    %v1721 = vsel %vm273, %v1718, 0.0
    %1722 = vadd.xlane.f32.xlu0 %v1721
    %v1723 = vpop.xlane.xlu0 %1722
    %v1724 = vsel %vm273, %v1720, 0.0
    %1725 = vadd.xlane.f32.xlu0 %v1724
    %v1726 = vpop.xlane.xlu0 %1725
    %v1727 = vrcp.pop %v1723
    %v1728 = vrcp.pop %v1726
    %v1729 = vmul.f32 %v1718, %v1727
    %v1730 = vmul.f32 %v1720, %v1728
    %v1731 = vpack.c.bf16 %v1730, %v1729
    %1732 = vrot.lane.b32.xlu0 %v1272, 52
    %v1733 = vpop.permute.xlu0 %1732
    %v1736 = vsel %vm273, %v1731, 0
    %1738 = vmatprep.subr.bf16.mxu0 0
    %1739 = vmatpush1.bf16.msra.mxu0 0
    %1740 = vmatprep.subr.bf16.mxu0 0
    %1741 = vmatpush1.bf16.msra.mxu0 0
    %1742 = vmatprep.subr.bf16.mxu0 0
    %1743 = vmatpush1.bf16.msra.mxu0 0
    %1744 = vmatprep.subr.bf16.mxu0 0
    %1745 = vmatpush1.bf16.msra.mxu0 0
    %1746 = vmatprep.subr.bf16.mxu0 0
    %1747 = vmatpush1.bf16.msra.mxu0 0
    %1748 = vmatprep.subr.bf16.mxu0 0
    %1749 = vmatpush1.bf16.msra.mxu0 0
    %1750 = vmatprep.subr.bf16.mxu0 0
    %1751 = vmatpush1.bf16.msra.mxu0 0
    %1752 = vmatprep.subr.bf16.mxu0 0
    %1753 = vmatpush1.bf16.msra.mxu0 %v1733
    %1754 = vmatprep.subr.bf16.mxu0 0
    %1755 = vmatpush2.bf16.msra.mxu0 0
    %1756 = vmatprep.subr.bf16.mxu0 0
    %1757 = vmatpush2.bf16.msra.mxu0 0
    %1758 = vmatprep.subr.bf16.mxu0 0
    %1759 = vmatpush2.bf16.msra.mxu0 0
    %1760 = vmatprep.subr.bf16.mxu0 0
    %1761 = vmatpush2.bf16.msra.mxu0 0
    %1762 = vmatprep.subr.bf16.mxu0 0
    %1763 = vmatpush2.bf16.msra.mxu0 0
    %1764 = vmatprep.subr.bf16.mxu0 0
    %1765 = vmatpush2.bf16.msra.mxu0 0
    %1766 = vmatprep.subr.bf16.mxu0 0
    %1767 = vmatpush2.bf16.msra.mxu0 0
    %1768 = vmatprep.subr.bf16.mxu0 0
    %1769 = vmatpush2.bf16.msra.mxu0 0
    %1770 = vmatprep.mubr.bf16.mxu0 0
    %1771 = vmatmul.mubr.bf16.gmra.mxu0 %v1736
    %v1772 = vpop.f32.mrf.mxu0
    %v1773 = vadd.f32 0.0, %v1772
    %v1774 = vpop.f32.mrf.mxu0
    %v1775 = vpop.f32.mrf.mxu0
    %v1776 = vadd.f32 0.0, %v1775
    %v1777 = vpop.f32.mrf.mxu0
    %1778 = vdwg.mxu0
    %1781 = vrot.lane.b32.xlu0 %v1773, 12
    %v1782 = vpop.permute.xlu0 %1781
    %1783 = vrot.lane.b32.xlu0 %v1776, 12
    %v1784 = vpop.permute.xlu0 %1783
    %1787 = vst.msk [vmem:[#allocation2 + $0x10] sm:$0xff] %vm740, %v1782
    %1788 = vst.msk [vmem:[#allocation2 + $0x18] sm:$0xff] %vm740, %v1784
    %1789 = vrot.lane.b32.xlu0 %v1271, 112
    %v1790 = vpop.permute.xlu0 %1789
    %1791 = vrot.lane.b32.xlu0 %v1272, 80
    %v1792 = vpop.permute.xlu0 %1791
    %v1794 = vsel %vm225, %v1790, 0
    %v1797 = vsel %vm225, %v1792, 0
    %1799 = vmatprep.subr.bf16.mxu0 0
    %1800 = vmatpush1.bf16.xpose.msra.mxu0 0
    %1801 = vmatprep.subr.bf16.mxu0 0
    %1802 = vmatpush1.bf16.xpose.msra.mxu0 0
    %1803 = vmatprep.subr.bf16.mxu0 0
    %1804 = vmatpush1.bf16.xpose.msra.mxu0 0
    %1805 = vmatprep.subr.bf16.mxu0 0
    %1806 = vmatpush1.bf16.xpose.msra.mxu0 0
    %1807 = vmatprep.subr.bf16.mxu0 0
    %1808 = vmatpush1.bf16.xpose.msra.mxu0 0
    %1809 = vmatprep.subr.bf16.mxu0 0
    %1810 = vmatpush1.bf16.xpose.msra.mxu0 0
    %1811 = vmatprep.subr.bf16.mxu0 0
    %1812 = vmatpush1.bf16.xpose.msra.mxu0 0
    %1813 = vmatprep.subr.bf16.mxu0 0
    %1814 = vmatpush1.bf16.xpose.msra.mxu0 %v1797
    %1815 = vmatprep.subr.bf16.mxu0 0
    %1816 = vmatpush2.bf16.xpose.msra.mxu0 0
    %1817 = vmatprep.subr.bf16.mxu0 0
    %1818 = vmatpush2.bf16.xpose.msra.mxu0 0
    %1819 = vmatprep.subr.bf16.mxu0 0
    %1820 = vmatpush2.bf16.xpose.msra.mxu0 0
    %1821 = vmatprep.subr.bf16.mxu0 0
    %1822 = vmatpush2.bf16.xpose.msra.mxu0 0
    %1823 = vmatprep.subr.bf16.mxu0 0
    %1824 = vmatpush2.bf16.xpose.msra.mxu0 0
    %1825 = vmatprep.subr.bf16.mxu0 0
    %1826 = vmatpush2.bf16.xpose.msra.mxu0 0
    %1827 = vmatprep.subr.bf16.mxu0 0
    %1828 = vmatpush2.bf16.xpose.msra.mxu0 0
    %1829 = vmatprep.subr.bf16.mxu0 0
    %1830 = vmatpush2.bf16.xpose.msra.mxu0 0
    %1831 = vmatprep.mubr.bf16.mxu0 0
    %1832 = vmatmul.mubr.bf16.gmra.mxu0 %v1794
    %v1833 = vpop.f32.mrf.mxu0
    %v1834 = vadd.f32 0.0, %v1833
    %v1835 = vpop.f32.mrf.mxu0
    %v1836 = vpop.f32.mrf.mxu0
    %v1837 = vadd.f32 0.0, %v1836
    %v1838 = vpop.f32.mrf.mxu0
    %1839 = vdwg.mxu0
    %v1840 = vsel %vm273, %v1834, -inf
    %1841 = vmax.xlane.f32.xlu0 %v1840
    %v1842 = vpop.xlane.xlu0 %1841
    %v1843 = vsel %vm273, %v1837, -inf
    %1844 = vmax.xlane.f32.xlu0 %v1843
    %v1845 = vpop.xlane.xlu0 %1844
    %v1846 = vsub.f32 %v1834, %v1842
    %v1847 = vsub.f32 %v1837, %v1845
    %v1848 = vmul.f32 %v1846, 1.442695
    %v1849 = vpow.pop %v1848
    %v1850 = vmul.f32 %v1847, 1.442695
    %v1851 = vpow.pop %v1850
    %v1852 = vsel %vm273, %v1849, 0.0
    %1853 = vadd.xlane.f32.xlu0 %v1852
    %v1854 = vpop.xlane.xlu0 %1853
    %v1855 = vsel %vm273, %v1851, 0.0
    %1856 = vadd.xlane.f32.xlu0 %v1855
    %v1857 = vpop.xlane.xlu0 %1856
    %v1858 = vrcp.pop %v1854
    %v1859 = vrcp.pop %v1857
    %v1860 = vmul.f32 %v1849, %v1858
    %v1861 = vmul.f32 %v1851, %v1859
    %v1862 = vpack.c.bf16 %v1861, %v1860
    %1863 = vrot.lane.b32.xlu0 %v1272, 48
    %v1864 = vpop.permute.xlu0 %1863
    %v1867 = vsel %vm273, %v1862, 0
    %1869 = vmatprep.subr.bf16.mxu0 0
    %1870 = vmatpush1.bf16.msra.mxu0 0
    %1871 = vmatprep.subr.bf16.mxu0 0
    %1872 = vmatpush1.bf16.msra.mxu0 0
    %1873 = vmatprep.subr.bf16.mxu0 0
    %1874 = vmatpush1.bf16.msra.mxu0 0
    %1875 = vmatprep.subr.bf16.mxu0 0
    %1876 = vmatpush1.bf16.msra.mxu0 0
    %1877 = vmatprep.subr.bf16.mxu0 0
    %1878 = vmatpush1.bf16.msra.mxu0 0
    %1879 = vmatprep.subr.bf16.mxu0 0
    %1880 = vmatpush1.bf16.msra.mxu0 0
    %1881 = vmatprep.subr.bf16.mxu0 0
    %1882 = vmatpush1.bf16.msra.mxu0 0
    %1883 = vmatprep.subr.bf16.mxu0 0
    %1884 = vmatpush1.bf16.msra.mxu0 %v1864
    %1885 = vmatprep.subr.bf16.mxu0 0
    %1886 = vmatpush2.bf16.msra.mxu0 0
    %1887 = vmatprep.subr.bf16.mxu0 0
    %1888 = vmatpush2.bf16.msra.mxu0 0
    %1889 = vmatprep.subr.bf16.mxu0 0
    %1890 = vmatpush2.bf16.msra.mxu0 0
    %1891 = vmatprep.subr.bf16.mxu0 0
    %1892 = vmatpush2.bf16.msra.mxu0 0
    %1893 = vmatprep.subr.bf16.mxu0 0
    %1894 = vmatpush2.bf16.msra.mxu0 0
    %1895 = vmatprep.subr.bf16.mxu0 0
    %1896 = vmatpush2.bf16.msra.mxu0 0
    %1897 = vmatprep.subr.bf16.mxu0 0
    %1898 = vmatpush2.bf16.msra.mxu0 0
    %1899 = vmatprep.subr.bf16.mxu0 0
    %1900 = vmatpush2.bf16.msra.mxu0 0
    %1901 = vmatprep.mubr.bf16.mxu0 0
    %1902 = vmatmul.mubr.bf16.gmra.mxu0 %v1867
    %v1903 = vpop.f32.mrf.mxu0
    %v1904 = vadd.f32 0.0, %v1903
    %v1905 = vpop.f32.mrf.mxu0
    %v1906 = vpop.f32.mrf.mxu0
    %v1907 = vadd.f32 0.0, %v1906
    %v1908 = vpop.f32.mrf.mxu0
    %1909 = vdwg.mxu0
    %1912 = vrot.lane.b32.xlu0 %v1904, 16
    %v1913 = vpop.permute.xlu0 %1912
    %1914 = vrot.lane.b32.xlu0 %v1907, 16
    %v1915 = vpop.permute.xlu0 %1914
    %1918 = vst.msk [vmem:[#allocation2 + $0x10] sm:$0xff] %vm872, %v1913
    %1919 = vst.msk [vmem:[#allocation2 + $0x18] sm:$0xff] %vm872, %v1915
    %1920 = vrot.lane.b32.xlu0 %v1271, 108
    %v1921 = vpop.permute.xlu0 %1920
    %1922 = vrot.lane.b32.xlu0 %v1272, 76
    %v1923 = vpop.permute.xlu0 %1922
    %v1925 = vsel %vm225, %v1921, 0
    %v1928 = vsel %vm225, %v1923, 0
    %1930 = vmatprep.subr.bf16.mxu0 0
    %1931 = vmatpush1.bf16.xpose.msra.mxu0 0
    %1932 = vmatprep.subr.bf16.mxu0 0
    %1933 = vmatpush1.bf16.xpose.msra.mxu0 0
    %1934 = vmatprep.subr.bf16.mxu0 0
    %1935 = vmatpush1.bf16.xpose.msra.mxu0 0
    %1936 = vmatprep.subr.bf16.mxu0 0
    %1937 = vmatpush1.bf16.xpose.msra.mxu0 0
    %1938 = vmatprep.subr.bf16.mxu0 0
    %1939 = vmatpush1.bf16.xpose.msra.mxu0 0
    %1940 = vmatprep.subr.bf16.mxu0 0
    %1941 = vmatpush1.bf16.xpose.msra.mxu0 0
    %1942 = vmatprep.subr.bf16.mxu0 0
    %1943 = vmatpush1.bf16.xpose.msra.mxu0 0
    %1944 = vmatprep.subr.bf16.mxu0 0
    %1945 = vmatpush1.bf16.xpose.msra.mxu0 %v1928
    %1946 = vmatprep.subr.bf16.mxu0 0
    %1947 = vmatpush2.bf16.xpose.msra.mxu0 0
    %1948 = vmatprep.subr.bf16.mxu0 0
    %1949 = vmatpush2.bf16.xpose.msra.mxu0 0
    %1950 = vmatprep.subr.bf16.mxu0 0
    %1951 = vmatpush2.bf16.xpose.msra.mxu0 0
    %1952 = vmatprep.subr.bf16.mxu0 0
    %1953 = vmatpush2.bf16.xpose.msra.mxu0 0
    %1954 = vmatprep.subr.bf16.mxu0 0
    %1955 = vmatpush2.bf16.xpose.msra.mxu0 0
    %1956 = vmatprep.subr.bf16.mxu0 0
    %1957 = vmatpush2.bf16.xpose.msra.mxu0 0
    %1958 = vmatprep.subr.bf16.mxu0 0
    %1959 = vmatpush2.bf16.xpose.msra.mxu0 0
    %1960 = vmatprep.subr.bf16.mxu0 0
    %1961 = vmatpush2.bf16.xpose.msra.mxu0 0
    %1962 = vmatprep.mubr.bf16.mxu0 0
    %1963 = vmatmul.mubr.bf16.gmra.mxu0 %v1925
    %v1964 = vpop.f32.mrf.mxu0
    %v1965 = vadd.f32 0.0, %v1964
    %v1966 = vpop.f32.mrf.mxu0
    %v1967 = vpop.f32.mrf.mxu0
    %v1968 = vadd.f32 0.0, %v1967
    %v1969 = vpop.f32.mrf.mxu0
    %1970 = vdwg.mxu0
    %v1971 = vsel %vm273, %v1965, -inf
    %1972 = vmax.xlane.f32.xlu0 %v1971
    %v1973 = vpop.xlane.xlu0 %1972
    %v1974 = vsel %vm273, %v1968, -inf
    %1975 = vmax.xlane.f32.xlu0 %v1974
    %v1976 = vpop.xlane.xlu0 %1975
    %v1977 = vsub.f32 %v1965, %v1973
    %v1978 = vsub.f32 %v1968, %v1976
    %v1979 = vmul.f32 %v1977, 1.442695
    %v1980 = vpow.pop %v1979
    %v1981 = vmul.f32 %v1978, 1.442695
    %v1982 = vpow.pop %v1981
    %v1983 = vsel %vm273, %v1980, 0.0
    %1984 = vadd.xlane.f32.xlu0 %v1983
    %v1985 = vpop.xlane.xlu0 %1984
    %v1986 = vsel %vm273, %v1982, 0.0
    %1987 = vadd.xlane.f32.xlu0 %v1986
    %v1988 = vpop.xlane.xlu0 %1987
    %v1989 = vrcp.pop %v1985
    %v1990 = vrcp.pop %v1988
    %v1991 = vmul.f32 %v1980, %v1989
    %v1992 = vmul.f32 %v1982, %v1990
    %v1993 = vpack.c.bf16 %v1992, %v1991
    %1994 = vrot.lane.b32.xlu0 %v1272, 44
    %v1995 = vpop.permute.xlu0 %1994
    %v1998 = vsel %vm273, %v1993, 0
    %2000 = vmatprep.subr.bf16.mxu0 0
    %2001 = vmatpush1.bf16.msra.mxu0 0
    %2002 = vmatprep.subr.bf16.mxu0 0
    %2003 = vmatpush1.bf16.msra.mxu0 0
    %2004 = vmatprep.subr.bf16.mxu0 0
    %2005 = vmatpush1.bf16.msra.mxu0 0
    %2006 = vmatprep.subr.bf16.mxu0 0
    %2007 = vmatpush1.bf16.msra.mxu0 0
    %2008 = vmatprep.subr.bf16.mxu0 0
    %2009 = vmatpush1.bf16.msra.mxu0 0
    %2010 = vmatprep.subr.bf16.mxu0 0
    %2011 = vmatpush1.bf16.msra.mxu0 0
    %2012 = vmatprep.subr.bf16.mxu0 0
    %2013 = vmatpush1.bf16.msra.mxu0 0
    %2014 = vmatprep.subr.bf16.mxu0 0
    %2015 = vmatpush1.bf16.msra.mxu0 %v1995
    %2016 = vmatprep.subr.bf16.mxu0 0
    %2017 = vmatpush2.bf16.msra.mxu0 0
    %2018 = vmatprep.subr.bf16.mxu0 0
    %2019 = vmatpush2.bf16.msra.mxu0 0
    %2020 = vmatprep.subr.bf16.mxu0 0
    %2021 = vmatpush2.bf16.msra.mxu0 0
    %2022 = vmatprep.subr.bf16.mxu0 0
    %2023 = vmatpush2.bf16.msra.mxu0 0
    %2024 = vmatprep.subr.bf16.mxu0 0
    %2025 = vmatpush2.bf16.msra.mxu0 0
    %2026 = vmatprep.subr.bf16.mxu0 0
    %2027 = vmatpush2.bf16.msra.mxu0 0
    %2028 = vmatprep.subr.bf16.mxu0 0
    %2029 = vmatpush2.bf16.msra.mxu0 0
    %2030 = vmatprep.subr.bf16.mxu0 0
    %2031 = vmatpush2.bf16.msra.mxu0 0
    %2032 = vmatprep.mubr.bf16.mxu0 0
    %2033 = vmatmul.mubr.bf16.gmra.mxu0 %v1998
    %v2034 = vpop.f32.mrf.mxu0
    %v2035 = vadd.f32 0.0, %v2034
    %v2036 = vpop.f32.mrf.mxu0
    %v2037 = vpop.f32.mrf.mxu0
    %v2038 = vadd.f32 0.0, %v2037
    %v2039 = vpop.f32.mrf.mxu0
    %2040 = vdwg.mxu0
    %2043 = vrot.lane.b32.xlu0 %v2035, 20
    %v2044 = vpop.permute.xlu0 %2043
    %2045 = vrot.lane.b32.xlu0 %v2038, 20
    %v2046 = vpop.permute.xlu0 %2045
    %2049 = vst.msk [vmem:[#allocation2 + $0x10] sm:$0xff] %vm1004, %v2044
    %2050 = vst.msk [vmem:[#allocation2 + $0x18] sm:$0xff] %vm1004, %v2046
    %2051 = vrot.lane.b32.xlu0 %v1271, 104
    %v2052 = vpop.permute.xlu0 %2051
    %2053 = vrot.lane.b32.xlu0 %v1272, 72
    %v2054 = vpop.permute.xlu0 %2053
    %v2056 = vsel %vm225, %v2052, 0
    %v2059 = vsel %vm225, %v2054, 0
    %2061 = vmatprep.subr.bf16.mxu0 0
    %2062 = vmatpush1.bf16.xpose.msra.mxu0 0
    %2063 = vmatprep.subr.bf16.mxu0 0
    %2064 = vmatpush1.bf16.xpose.msra.mxu0 0
    %2065 = vmatprep.subr.bf16.mxu0 0
    %2066 = vmatpush1.bf16.xpose.msra.mxu0 0
    %2067 = vmatprep.subr.bf16.mxu0 0
    %2068 = vmatpush1.bf16.xpose.msra.mxu0 0
    %2069 = vmatprep.subr.bf16.mxu0 0
    %2070 = vmatpush1.bf16.xpose.msra.mxu0 0
    %2071 = vmatprep.subr.bf16.mxu0 0
    %2072 = vmatpush1.bf16.xpose.msra.mxu0 0
    %2073 = vmatprep.subr.bf16.mxu0 0
    %2074 = vmatpush1.bf16.xpose.msra.mxu0 0
    %2075 = vmatprep.subr.bf16.mxu0 0
    %2076 = vmatpush1.bf16.xpose.msra.mxu0 %v2059
    %2077 = vmatprep.subr.bf16.mxu0 0
    %2078 = vmatpush2.bf16.xpose.msra.mxu0 0
    %2079 = vmatprep.subr.bf16.mxu0 0
    %2080 = vmatpush2.bf16.xpose.msra.mxu0 0
    %2081 = vmatprep.subr.bf16.mxu0 0
    %2082 = vmatpush2.bf16.xpose.msra.mxu0 0
    %2083 = vmatprep.subr.bf16.mxu0 0
    %2084 = vmatpush2.bf16.xpose.msra.mxu0 0
    %2085 = vmatprep.subr.bf16.mxu0 0
    %2086 = vmatpush2.bf16.xpose.msra.mxu0 0
    %2087 = vmatprep.subr.bf16.mxu0 0
    %2088 = vmatpush2.bf16.xpose.msra.mxu0 0
    %2089 = vmatprep.subr.bf16.mxu0 0
    %2090 = vmatpush2.bf16.xpose.msra.mxu0 0
    %2091 = vmatprep.subr.bf16.mxu0 0
    %2092 = vmatpush2.bf16.xpose.msra.mxu0 0
    %2093 = vmatprep.mubr.bf16.mxu0 0
    %2094 = vmatmul.mubr.bf16.gmra.mxu0 %v2056
    %v2095 = vpop.f32.mrf.mxu0
    %v2096 = vadd.f32 0.0, %v2095
    %v2097 = vpop.f32.mrf.mxu0
    %v2098 = vpop.f32.mrf.mxu0
    %v2099 = vadd.f32 0.0, %v2098
    %v2100 = vpop.f32.mrf.mxu0
    %2101 = vdwg.mxu0
    %v2102 = vsel %vm273, %v2096, -inf
    %2103 = vmax.xlane.f32.xlu0 %v2102
    %v2104 = vpop.xlane.xlu0 %2103
    %v2105 = vsel %vm273, %v2099, -inf
    %2106 = vmax.xlane.f32.xlu0 %v2105
    %v2107 = vpop.xlane.xlu0 %2106
    %v2108 = vsub.f32 %v2096, %v2104
    %v2109 = vsub.f32 %v2099, %v2107
    %v2110 = vmul.f32 %v2108, 1.442695
    %v2111 = vpow.pop %v2110
    %v2112 = vmul.f32 %v2109, 1.442695
    %v2113 = vpow.pop %v2112
    %v2114 = vsel %vm273, %v2111, 0.0
    %2115 = vadd.xlane.f32.xlu0 %v2114
    %v2116 = vpop.xlane.xlu0 %2115
    %v2117 = vsel %vm273, %v2113, 0.0
    %2118 = vadd.xlane.f32.xlu0 %v2117
    %v2119 = vpop.xlane.xlu0 %2118
    %v2120 = vrcp.pop %v2116
    %v2121 = vrcp.pop %v2119
    %v2122 = vmul.f32 %v2111, %v2120
    %v2123 = vmul.f32 %v2113, %v2121
    %v2124 = vpack.c.bf16 %v2123, %v2122
    %2125 = vrot.lane.b32.xlu0 %v1272, 40
    %v2126 = vpop.permute.xlu0 %2125
    %v2129 = vsel %vm273, %v2124, 0
    %2131 = vmatprep.subr.bf16.mxu0 0
    %2132 = vmatpush1.bf16.msra.mxu0 0
    %2133 = vmatprep.subr.bf16.mxu0 0
    %2134 = vmatpush1.bf16.msra.mxu0 0
    %2135 = vmatprep.subr.bf16.mxu0 0
    %2136 = vmatpush1.bf16.msra.mxu0 0
    %2137 = vmatprep.subr.bf16.mxu0 0
    %2138 = vmatpush1.bf16.msra.mxu0 0
    %2139 = vmatprep.subr.bf16.mxu0 0
    %2140 = vmatpush1.bf16.msra.mxu0 0
    %2141 = vmatprep.subr.bf16.mxu0 0
    %2142 = vmatpush1.bf16.msra.mxu0 0
    %2143 = vmatprep.subr.bf16.mxu0 0
    %2144 = vmatpush1.bf16.msra.mxu0 0
    %2145 = vmatprep.subr.bf16.mxu0 0
    %2146 = vmatpush1.bf16.msra.mxu0 %v2126
    %2147 = vmatprep.subr.bf16.mxu0 0
    %2148 = vmatpush2.bf16.msra.mxu0 0
    %2149 = vmatprep.subr.bf16.mxu0 0
    %2150 = vmatpush2.bf16.msra.mxu0 0
    %2151 = vmatprep.subr.bf16.mxu0 0
    %2152 = vmatpush2.bf16.msra.mxu0 0
    %2153 = vmatprep.subr.bf16.mxu0 0
    %2154 = vmatpush2.bf16.msra.mxu0 0
    %2155 = vmatprep.subr.bf16.mxu0 0
    %2156 = vmatpush2.bf16.msra.mxu0 0
    %2157 = vmatprep.subr.bf16.mxu0 0
    %2158 = vmatpush2.bf16.msra.mxu0 0
    %2159 = vmatprep.subr.bf16.mxu0 0
    %2160 = vmatpush2.bf16.msra.mxu0 0
    %2161 = vmatprep.subr.bf16.mxu0 0
    %2162 = vmatpush2.bf16.msra.mxu0 0
    %2163 = vmatprep.mubr.bf16.mxu0 0
    %2164 = vmatmul.mubr.bf16.gmra.mxu0 %v2129
    %v2165 = vpop.f32.mrf.mxu0
    %v2166 = vadd.f32 0.0, %v2165
    %v2167 = vpop.f32.mrf.mxu0
    %v2168 = vpop.f32.mrf.mxu0
    %v2169 = vadd.f32 0.0, %v2168
    %v2170 = vpop.f32.mrf.mxu0
    %2171 = vdwg.mxu0
    %2174 = vrot.lane.b32.xlu0 %v2166, 24
    %v2175 = vpop.permute.xlu0 %2174
    %2176 = vrot.lane.b32.xlu0 %v2169, 24
    %v2177 = vpop.permute.xlu0 %2176
    %2180 = vst.msk [vmem:[#allocation2 + $0x10] sm:$0xff] %vm1136, %v2175
    %2181 = vst.msk [vmem:[#allocation2 + $0x18] sm:$0xff] %vm1136, %v2177
    %2182 = vrot.lane.b32.xlu0 %v1271, 100
    %v2183 = vpop.permute.xlu0 %2182
    %2184 = vrot.lane.b32.xlu0 %v1272, 68
    %v2185 = vpop.permute.xlu0 %2184
    %v2187 = vsel %vm225, %v2183, 0
    %v2190 = vsel %vm225, %v2185, 0
    %2192 = vmatprep.subr.bf16.mxu0 0
    %2193 = vmatpush1.bf16.xpose.msra.mxu0 0
    %2194 = vmatprep.subr.bf16.mxu0 0
    %2195 = vmatpush1.bf16.xpose.msra.mxu0 0
    %2196 = vmatprep.subr.bf16.mxu0 0
    %2197 = vmatpush1.bf16.xpose.msra.mxu0 0
    %2198 = vmatprep.subr.bf16.mxu0 0
    %2199 = vmatpush1.bf16.xpose.msra.mxu0 0
    %2200 = vmatprep.subr.bf16.mxu0 0
    %2201 = vmatpush1.bf16.xpose.msra.mxu0 0
    %2202 = vmatprep.subr.bf16.mxu0 0
    %2203 = vmatpush1.bf16.xpose.msra.mxu0 0
    %2204 = vmatprep.subr.bf16.mxu0 0
    %2205 = vmatpush1.bf16.xpose.msra.mxu0 0
    %2206 = vmatprep.subr.bf16.mxu0 0
    %2207 = vmatpush1.bf16.xpose.msra.mxu0 %v2190
    %2208 = vmatprep.subr.bf16.mxu0 0
    %2209 = vmatpush2.bf16.xpose.msra.mxu0 0
    %2210 = vmatprep.subr.bf16.mxu0 0
    %2211 = vmatpush2.bf16.xpose.msra.mxu0 0
    %2212 = vmatprep.subr.bf16.mxu0 0
    %2213 = vmatpush2.bf16.xpose.msra.mxu0 0
    %2214 = vmatprep.subr.bf16.mxu0 0
    %2215 = vmatpush2.bf16.xpose.msra.mxu0 0
    %2216 = vmatprep.subr.bf16.mxu0 0
    %2217 = vmatpush2.bf16.xpose.msra.mxu0 0
    %2218 = vmatprep.subr.bf16.mxu0 0
    %2219 = vmatpush2.bf16.xpose.msra.mxu0 0
    %2220 = vmatprep.subr.bf16.mxu0 0
    %2221 = vmatpush2.bf16.xpose.msra.mxu0 0
    %2222 = vmatprep.subr.bf16.mxu0 0
    %2223 = vmatpush2.bf16.xpose.msra.mxu0 0
    %2224 = vmatprep.mubr.bf16.mxu0 0
    %2225 = vmatmul.mubr.bf16.gmra.mxu0 %v2187
    %v2226 = vpop.f32.mrf.mxu0
    %v2227 = vadd.f32 0.0, %v2226
    %v2228 = vpop.f32.mrf.mxu0
    %v2229 = vpop.f32.mrf.mxu0
    %v2230 = vadd.f32 0.0, %v2229
    %v2231 = vpop.f32.mrf.mxu0
    %2232 = vdwg.mxu0
    %v2233 = vsel %vm273, %v2227, -inf
    %2234 = vmax.xlane.f32.xlu0 %v2233
    %v2235 = vpop.xlane.xlu0 %2234
    %v2236 = vsel %vm273, %v2230, -inf
    %2237 = vmax.xlane.f32.xlu0 %v2236
    %v2238 = vpop.xlane.xlu0 %2237
    %v2239 = vsub.f32 %v2227, %v2235
    %v2240 = vsub.f32 %v2230, %v2238
    %v2241 = vmul.f32 %v2239, 1.442695
    %v2242 = vpow.pop %v2241
    %v2243 = vmul.f32 %v2240, 1.442695
    %v2244 = vpow.pop %v2243
    %v2245 = vsel %vm273, %v2242, 0.0
    %2246 = vadd.xlane.f32.xlu0 %v2245
    %v2247 = vpop.xlane.xlu0 %2246
    %v2248 = vsel %vm273, %v2244, 0.0
    %2249 = vadd.xlane.f32.xlu0 %v2248
    %v2250 = vpop.xlane.xlu0 %2249
    %v2251 = vrcp.pop %v2247
    %v2252 = vrcp.pop %v2250
    %v2253 = vmul.f32 %v2242, %v2251
    %v2254 = vmul.f32 %v2244, %v2252
    %v2255 = vpack.c.bf16 %v2254, %v2253
    %2256 = vrot.lane.b32.xlu0 %v1272, 36
    %v2257 = vpop.permute.xlu0 %2256
    %v2260 = vsel %vm273, %v2255, 0
    %2262 = vmatprep.subr.bf16.mxu0 0
    %2263 = vmatpush1.bf16.msra.mxu0 0
    %2264 = vmatprep.subr.bf16.mxu0 0
    %2265 = vmatpush1.bf16.msra.mxu0 0
    %2266 = vmatprep.subr.bf16.mxu0 0
    %2267 = vmatpush1.bf16.msra.mxu0 0
    %2268 = vmatprep.subr.bf16.mxu0 0
    %2269 = vmatpush1.bf16.msra.mxu0 0
    %2270 = vmatprep.subr.bf16.mxu0 0
    %2271 = vmatpush1.bf16.msra.mxu0 0
    %2272 = vmatprep.subr.bf16.mxu0 0
    %2273 = vmatpush1.bf16.msra.mxu0 0
    %2274 = vmatprep.subr.bf16.mxu0 0
    %2275 = vmatpush1.bf16.msra.mxu0 0
    %2276 = vmatprep.subr.bf16.mxu0 0
    %2277 = vmatpush1.bf16.msra.mxu0 %v2257
    %2278 = vmatprep.subr.bf16.mxu0 0
    %2279 = vmatpush2.bf16.msra.mxu0 0
    %2280 = vmatprep.subr.bf16.mxu0 0
    %2281 = vmatpush2.bf16.msra.mxu0 0
    %2282 = vmatprep.subr.bf16.mxu0 0
    %2283 = vmatpush2.bf16.msra.mxu0 0
    %2284 = vmatprep.subr.bf16.mxu0 0
    %2285 = vmatpush2.bf16.msra.mxu0 0
    %2286 = vmatprep.subr.bf16.mxu0 0
    %2287 = vmatpush2.bf16.msra.mxu0 0
    %2288 = vmatprep.subr.bf16.mxu0 0
    %2289 = vmatpush2.bf16.msra.mxu0 0
    %2290 = vmatprep.subr.bf16.mxu0 0
    %2291 = vmatpush2.bf16.msra.mxu0 0
    %2292 = vmatprep.subr.bf16.mxu0 0
    %2293 = vmatpush2.bf16.msra.mxu0 0
    %2294 = vmatprep.mubr.bf16.mxu0 0
    %2295 = vmatmul.mubr.bf16.gmra.mxu0 %v2260
    %v2296 = vpop.f32.mrf.mxu0
    %v2297 = vadd.f32 0.0, %v2296
    %v2298 = vpop.f32.mrf.mxu0
    %v2299 = vpop.f32.mrf.mxu0
    %v2300 = vadd.f32 0.0, %v2299
    %v2301 = vpop.f32.mrf.mxu0
    %2302 = vdwg.mxu0
    %2305 = vrot.lane.b32.xlu0 %v2297, 28
    %v2306 = vpop.permute.xlu0 %2305
    %2307 = vrot.lane.b32.xlu0 %v2300, 28
    %v2308 = vpop.permute.xlu0 %2307
    %2311 = vst.msk [vmem:[#allocation2 + $0x10] sm:$0xff] %vm1268, %v2306
    %2312 = vst.msk [vmem:[#allocation2 + $0x18] sm:$0xff] %vm1268, %v2308
    %v2313 = vld [vmem:[#allocation2] sm:$0xff]
    %v2314 = vld [vmem:[#allocation2 + $0x8] sm:$0xff]
    %v2315 = vld [vmem:[#allocation2 + $0x10] sm:$0xff]
    %v2316 = vld [vmem:[#allocation2 + $0x18] sm:$0xff]
    %v2317 = vpack.c.bf16 %v2314, %v2313
    %v2318 = vpack.c.bf16 %v2316, %v2315
    %v2319 = vld [vmem:[#allocation8] sm:$0xf]
    %v2320 = vld [vmem:[#allocation8 + $0x4] sm:$0xf]
    %v2321 = vld [vmem:[#allocation8 + $0x8] sm:$0xf]
    %v2322 = vld [vmem:[#allocation8 + $0xc] sm:$0xf]
    %v2327 = vunpack.c.l.b16 %v2319
    %v2328 = vunpack.c.l.b16 %v2320
    %v2329 = vunpack.c.l.b16 %v2321
    %v2330 = vunpack.c.l.b16 %v2322
    %v2331 = vpack.c.b16 %v2328, %v2327
    %v2332 = vpack.c.b16 %v2330, %v2329
    %v2336 = vsel %vm67, %v2317, 0
    %v2339 = vsel %vm67, %v2318, 0
    %2341 = vmatprep.subr.bf16.mxu0 0
    %2342 = vmatpush1.bf16.msra.mxu0 0
    %2343 = vmatprep.subr.bf16.mxu0 0
    %2344 = vmatpush1.bf16.msra.mxu0 0
    %2345 = vmatprep.subr.bf16.mxu0 0
    %2346 = vmatpush1.bf16.msra.mxu0 0
    %2347 = vmatprep.subr.bf16.mxu0 0
    %2348 = vmatpush1.bf16.msra.mxu0 0
    %2349 = vmatprep.subr.bf16.mxu0 0
    %2350 = vmatpush1.bf16.msra.mxu0 0
    %2351 = vmatprep.subr.bf16.mxu0 0
    %2352 = vmatpush1.bf16.msra.mxu0 0
    %2353 = vmatprep.subr.bf16.mxu0 0
    %2354 = vmatpush1.bf16.msra.mxu0 %v2332
    %2355 = vmatprep.subr.bf16.mxu0 0
    %2356 = vmatpush1.bf16.msra.mxu0 %v2331
    %2357 = vmatprep.subr.bf16.mxu0 0
    %2358 = vmatpush2.bf16.msra.mxu0 0
    %2359 = vmatprep.subr.bf16.mxu0 0
    %2360 = vmatpush2.bf16.msra.mxu0 0
    %2361 = vmatprep.subr.bf16.mxu0 0
    %2362 = vmatpush2.bf16.msra.mxu0 0
    %2363 = vmatprep.subr.bf16.mxu0 0
    %2364 = vmatpush2.bf16.msra.mxu0 0
    %2365 = vmatprep.subr.bf16.mxu0 0
    %2366 = vmatpush2.bf16.msra.mxu0 0
    %2367 = vmatprep.subr.bf16.mxu0 0
    %2368 = vmatpush2.bf16.msra.mxu0 0
    %2369 = vmatprep.subr.bf16.mxu0 0
    %2370 = vmatpush2.bf16.msra.mxu0 0
    %2371 = vmatprep.subr.bf16.mxu0 0
    %2372 = vmatpush2.bf16.msra.mxu0 0
    %2373 = vmatprep.mubr.bf16.mxu0 0
    %2374 = vmatmul.mubr.bf16.gmra.mxu0 %v2336
    %v2375 = vpop.f32.mrf.mxu0
    %v2376 = vadd.f32 0.0, %v2375
    %v2377 = vpop.f32.mrf.mxu0
    %v2378 = vpop.f32.mrf.mxu0
    %v2379 = vadd.f32 0.0, %v2378
    %v2380 = vpop.f32.mrf.mxu0
    %2381 = vmatprep.mubr.bf16.mxu0 0
    %2382 = vmatmul.mubr.bf16.gmra.mxu0 %v2339
    %v2383 = vpop.f32.mrf.mxu0
    %v2384 = vadd.f32 0.0, %v2383
    %v2385 = vpop.f32.mrf.mxu0
    %v2386 = vpop.f32.mrf.mxu0
    %v2387 = vadd.f32 0.0, %v2386
    %v2388 = vpop.f32.mrf.mxu0
    %2389 = vdwg.mxu0
    %2390 = vst.msk [vmem:[#allocation9] sm:$0xff] %vm67, %v2376
    %2391 = vst.msk [vmem:[#allocation9 + $0x8] sm:$0xff] %vm67, %v2379
    %2392 = vst.msk [vmem:[#allocation9 + $0x10] sm:$0xff] %vm67, %v2384
    %2393 = vst.msk [vmem:[#allocation9 + $0x18] sm:$0xff] %vm67, %v2387
    // Predicated region
    $region34: #{tpu_custom_call.1} parent=1 // pred_check
      _
    $region35: #{tpu_custom_call.1} parent=1 // pred_check_branch
      %2395 = sbr.rel (0) target = $region37
    $region36: #{tpu_custom_call.1} parent=1 // pred_region
      %s2397 = ssub.s32 512, 512
      %2398 = vsyncadd [#allocation5], %s2397
      %s2399 = sshll.u32 [#allocation9], 4
      %s2400 = int_to_ptr.vmem [resolvable:$true] %s2399
      %2405 = dma.vmem_to_hbm [thread:$0]  %s2400, 512, %s5, [#allocation5], 128, 128, 8
    $region37: #{tpu_custom_call.1} parent=1 // pred_fallthru
      _
    // Predicated region
    $region38: #{tpu_custom_call.1} parent=1 // pred_check
      _
    $region39: #{tpu_custom_call.1} parent=1 // pred_check_branch
      %2407 = sbr.rel (0) target = $region41
    $region40: #{tpu_custom_call.1} parent=1 // pred_region
      %2408 = dma.done [#allocation5], 512
    $region41: #{tpu_custom_call.1} parent=1 // pred_fallthru
      _
    %2409 = vsyncpa [#allocation4], 1
    %2410 = vsyncpa [#allocation7], 1
    %2411 = vsyncpa [#allocation5], 1

</llo_original>
